<compile_context>
chip_gen: v7x
topology: tpu7x:2x2x1
jax: 0.10.0
libtpu: 0.0.40
codegen_flags: <defaults>
</compile_context>

<pallas_src>
import functools

import jax
import jax.numpy as jnp
from jax.experimental import pallas as pl
from jax.experimental.pallas import tpu as pltpu

KERNEL_SIZE = 7
PAD = 3  # padding = 3 for kernel_size 7 (matches the PyTorch module)


def _spatial_attention_kernel(coeff_ref, x_ref, o_ref, sum_ref, max_ref, *, W, hw):
    # coeff_ref: VMEM f32[2*7*7, 1, hw]   weight * boundary-mask per tap (1/C folded in)
    # x_ref:     VMEM    [B_blk, C_blk, hw] one channel-slab of a batch block
    # o_ref:     VMEM f32[B_blk, 1, hw]   attention map (written on last C step)
    # sum_ref:   VMEM f32[B_blk, hw]      running channel sum (accumulator)
    # max_ref:   VMEM f32[B_blk, hw]      running channel max (accumulator)
    c_idx = pl.program_id(1)
    n_c = pl.num_programs(1)

    x = x_ref[...].astype(jnp.float32)       # (B_blk, C_blk, hw)
    part_sum = jnp.sum(x, axis=1)            # (B_blk, hw)
    part_max = jnp.max(x, axis=1)            # (B_blk, hw)

    @pl.when(c_idx == 0)
    def _init():
        sum_ref[...] = part_sum
        max_ref[...] = part_max

    @pl.when(c_idx > 0)
    def _accum():
        sum_ref[...] = sum_ref[...] + part_sum
        max_ref[...] = jnp.maximum(max_ref[...], part_max)

    @pl.when(c_idx == n_c - 1)
    def _finalize():
        # Channel 0 = (scaled) sum pooling, channel 1 = max pooling.
        planes = (sum_ref[...], max_ref[...])          # each (B_blk, hw)
        # Cross-correlation via lane rotates + premasked coefficient vectors:
        #   out[k] += coeff[c,di,dj][k] * plane_c[(k + di*W + dj) mod hw]
        # Out-of-image taps have coeff == 0, so the circular wrap is harmless.
        # Two independent accumulation chains (one per pooled plane).
        accs = []
        for c in range(2):
            plane = planes[c]
            acc = jnp.zeros_like(plane)
            for di in range(-PAD, PAD + 1):
                for dj in range(-PAD, PAD + 1):
                    tap = (c * KERNEL_SIZE * KERNEL_SIZE
                           + (di + PAD) * KERNEL_SIZE + (dj + PAD))
                    shift = (-(di * W + dj)) % hw      # static Python int
                    shifted = pltpu.roll(plane, shift, 1) if shift else plane
                    acc = acc + coeff_ref[tap] * shifted   # (1,hw) * (B_blk,hw)
            accs.append(acc)
        o_ref[:, 0, :] = jax.nn.sigmoid(accs[0] + accs[1])


def _build_coeff(conv_weight, C, H, W):
    """coeff[c*49 + i*7 + j, 0, k] = w[0,c,i,j] * in-bounds-mask(k, i-3, j-3),
    with 1/C of the mean pooling folded into the c=0 (avg) channel."""
    hw = H * W
    w = conv_weight[0].astype(jnp.float32)                          # (2, 7, 7)
    w = w * jnp.array([1.0 / C, 1.0], jnp.float32)[:, None, None]   # fold mean's 1/C
    k = jnp.arange(hw)
    hh = k // W
    ww = k % W
    offs = jnp.arange(-PAD, PAD + 1)                                # (7,)
    row_ok = ((hh[None, :] + offs[:, None]) >= 0) & ((hh[None, :] + offs[:, None]) < H)
    col_ok = ((ww[None, :] + offs[:, None]) >= 0) & ((ww[None, :] + offs[:, None]) < W)
    mask = (row_ok[:, None, :] & col_ok[None, :, :]).astype(jnp.float32)  # (7, 7, hw)
    coeff = w[:, :, :, None] * mask[None, :, :, :]                  # (2, 7, 7, hw)
    return coeff.reshape(2 * KERNEL_SIZE * KERNEL_SIZE, 1, hw)


def _pick_channel_block(C, max_cb=64):
    if C <= max_cb:
        return C
    for cb in range(max_cb, 0, -8):            # multiples of 8 that divide C
        if cb % 8 == 0 and C % cb == 0:
            return cb
    return C


def _pick_batch_block(B, bytes_per_batch_row, target_bytes=2 << 20):
    best = 1
    for d in range(1, B + 1):
        if B % d:
            continue
        if d * bytes_per_batch_row > target_bytes:
            continue
        if B >= 2 and B // d < 2:
            continue                            # keep >=2 parallel steps (v7x megacore)
        best = d
    return best


def spatial_attention(x, conv_weight):
    """x: [B, C, H, W]; conv_weight: f32[1, 2, 7, 7] -> f32[B, 1, H, W]."""
    B, C, H, W = x.shape
    hw = H * W

    x_flat = x.reshape(B, C, hw)                           # lane-dense view (no cast)
    coeff = _build_coeff(conv_weight, C, H, W)             # (98, 1, hw)

    C_blk = _pick_channel_block(C)
    B_blk = _pick_batch_block(B, C_blk * hw * x.dtype.itemsize)
    nb = B // B_blk
    nc = C // C_blk

    n_taps = 2 * KERNEL_SIZE * KERNEL_SIZE
    coeff_bytes = n_taps * hw * 4
    x_tile_bytes = B_blk * C_blk * hw * x.dtype.itemsize
    out_tile_bytes = B_blk * hw * 4
    scratch_bytes = 2 * B_blk * hw * 4
    vmem_limit = int(min(
        32 * 1024 * 1024,
        2 * (coeff_bytes + x_tile_bytes + out_tile_bytes) + scratch_bytes + (4 << 20),
    ))

    kernel = functools.partial(_spatial_attention_kernel, W=W, hw=hw)

    out = pl.pallas_call(
        kernel,
        out_shape=jax.ShapeDtypeStruct((B, 1, hw), jnp.float32),
        grid_spec=pltpu.PrefetchScalarGridSpec(
            num_scalar_prefetch=0,
            grid=(nb, nc),                                 # reduction (C) axis last
            in_specs=[
                pl.BlockSpec((n_taps, 1, hw), lambda b, c: (0, 0, 0)),     # coeff (resident)
                pl.BlockSpec((B_blk, C_blk, hw), lambda b, c: (b, c, 0)),  # inputs
            ],
            out_specs=pl.BlockSpec((B_blk, 1, hw), lambda b, c: (b, 0, 0)),
            scratch_shapes=[
                pltpu.VMEM((B_blk, hw), jnp.float32),      # channel-sum accumulator
                pltpu.VMEM((B_blk, hw), jnp.float32),      # channel-max accumulator
            ],
        ),
        compiler_params=pltpu.CompilerParams(
            dimension_semantics=("parallel", "arbitrary"),
            vmem_limit_bytes=vmem_limit,
        ),
    )(coeff, x_flat)

    return out.reshape(B, 1, H, W)


def _reference(x, conv_weight):
    avg = jnp.mean(x, axis=1, keepdims=True)
    mx = jnp.max(x, axis=1, keepdims=True)
    cat = jnp.concatenate([avg, mx], axis=1)
    out = jax.lax.conv_general_dilated(
        cat, conv_weight, window_strides=(1, 1),
        padding=((PAD, PAD), (PAD, PAD)),
        dimension_numbers=("NCHW", "OIHW", "NCHW"),
    )
    return jax.nn.sigmoid(out)


if __name__ == "__main__":
    key = jax.random.PRNGKey(0)
    kx, kw = jax.random.split(key)

    B, C, H, W = 2, 4, 16, 16
    x = jax.random.normal(kx, (B, C, H, W), dtype=jnp.float32)

    # Deterministic conv weight init (Conv2d(2, 1, 7, bias=False)): shape (1, 2, 7, 7)
    fan_in = 2 * KERNEL_SIZE * KERNEL_SIZE
    conv_weight = jax.random.uniform(
        kw, (1, 2, KERNEL_SIZE, KERNEL_SIZE), dtype=jnp.float32,
        minval=-1.0, maxval=1.0) * (1.0 / (fan_in ** 0.5))

    out = spatial_attention(x, conv_weight)
    out = jax.block_until_ready(out)

    ref = _reference(x, conv_weight)
    assert out.shape == (B, 1, H, W)
    assert jnp.allclose(out, ref, atol=1e-5, rtol=1e-5), "mismatch vs reference"

    print("KERNEL_OK")
</pallas_src>

<mosaic_0001>
module attributes {stable_mosaic.version = 11 : i64} {
  func.func @_spatial_attention_kernel(%arg0: i32, %arg1: i32, %arg2: memref<98x1x256xf32, #tpu.memory_space<vmem>>, %arg3: memref<1x4x256xf32, #tpu.memory_space<vmem>>, %arg4: memref<1x1x256xf32, #tpu.memory_space<vmem>>, %arg5: memref<1x256xf32, #tpu.memory_space<vmem>>, %arg6: memref<1x256xf32, #tpu.memory_space<vmem>>) attributes {dimension_semantics = [#tpu.dimension_semantics<parallel>, #tpu.dimension_semantics<arbitrary>], iteration_bounds = array<i64: 2, 1>, scalar_prefetch = 0 : i64, scratch_operands = 2 : i64, tpu.core_type = #tpu.core_type<tc>, window_params = [{pipeline_mode = #tpu.pipeline_mode<synchronous>, transform_indices = @transform_0, window_bounds = array<i64: 98, 1, 256>}, {transform_indices = @transform_1, window_bounds = array<i64: 1, 4, 256>}, {transform_indices = @transform_2, window_bounds = array<i64: 1, 1, 256>}]} {
    %c0 = arith.constant 0 : index
    %c0_0 = arith.constant 0 : index
    %c0_1 = arith.constant 0 : index
    %0 = vector.load %arg3[%c0, %c0_0, %c0_1] : memref<1x4x256xf32, #tpu.memory_space<vmem>>, vector<1x4x256xf32>
    %cst = arith.constant dense<0.000000e+00> : vector<1x256xf32>
    %1 = vector.multi_reduction <add>, %0, %cst [1] : vector<1x4x256xf32> to vector<1x256xf32>
    %cst_2 = arith.constant dense<0xFF800000> : vector<1x256xf32>
    %2 = vector.multi_reduction <maximumf>, %0, %cst_2 [1] : vector<1x4x256xf32> to vector<1x256xf32>
    %c0_i32 = arith.constant 0 : i32
    %3 = arith.cmpi eq, %arg1, %c0_i32 : i32
    %4 = arith.extui %3 : i1 to i32
    %c0_i32_3 = arith.constant 0 : i32
    %5 = arith.cmpi ne, %4, %c0_i32_3 : i32
    scf.if %5 {
      %c0_8 = arith.constant 0 : index
      %c0_9 = arith.constant 0 : index
      %12 = vector.load %arg5[%c0_8, %c0_9] : memref<1x256xf32, #tpu.memory_space<vmem>>, vector<1x256xf32>
      tpu.vector_store %arg5[%c0_8, %c0_9], %1 {strides = array<i32>} : memref<1x256xf32, #tpu.memory_space<vmem>>, vector<1x256xf32>,
      %c0_10 = arith.constant 0 : index
      %c0_11 = arith.constant 0 : index
      %13 = vector.load %arg6[%c0_10, %c0_11] : memref<1x256xf32, #tpu.memory_space<vmem>>, vector<1x256xf32>
      tpu.vector_store %arg6[%c0_10, %c0_11], %2 {strides = array<i32>} : memref<1x256xf32, #tpu.memory_space<vmem>>, vector<1x256xf32>,
    } else {
    }
    %c0_i32_4 = arith.constant 0 : i32
    %6 = arith.cmpi sgt, %arg1, %c0_i32_4 : i32
    %7 = arith.extui %6 : i1 to i32
    %c0_i32_5 = arith.constant 0 : i32
    %8 = arith.cmpi ne, %7, %c0_i32_5 : i32
    scf.if %8 {
      %c0_8 = arith.constant 0 : index
      %c0_9 = arith.constant 0 : index
      %12 = vector.load %arg5[%c0_8, %c0_9] : memref<1x256xf32, #tpu.memory_space<vmem>>, vector<1x256xf32>
      %13 = arith.addf %12, %1 : vector<1x256xf32>
      %c0_10 = arith.constant 0 : index
      %c0_11 = arith.constant 0 : index
      %14 = vector.load %arg5[%c0_10, %c0_11] : memref<1x256xf32, #tpu.memory_space<vmem>>, vector<1x256xf32>
      tpu.vector_store %arg5[%c0_10, %c0_11], %13 {strides = array<i32>} : memref<1x256xf32, #tpu.memory_space<vmem>>, vector<1x256xf32>,
      %c0_12 = arith.constant 0 : index
      %c0_13 = arith.constant 0 : index
      %15 = vector.load %arg6[%c0_12, %c0_13] : memref<1x256xf32, #tpu.memory_space<vmem>>, vector<1x256xf32>
      %16 = arith.maximumf %15, %2 : vector<1x256xf32>
      %c0_14 = arith.constant 0 : index
      %c0_15 = arith.constant 0 : index
      %17 = vector.load %arg6[%c0_14, %c0_15] : memref<1x256xf32, #tpu.memory_space<vmem>>, vector<1x256xf32>
      tpu.vector_store %arg6[%c0_14, %c0_15], %16 {strides = array<i32>} : memref<1x256xf32, #tpu.memory_space<vmem>>, vector<1x256xf32>,
    } else {
    }
    %c0_i32_6 = arith.constant 0 : i32
    %9 = arith.cmpi eq, %arg1, %c0_i32_6 : i32
    %10 = arith.extui %9 : i1 to i32
    %c0_i32_7 = arith.constant 0 : i32
    %11 = arith.cmpi ne, %10, %c0_i32_7 : i32
    scf.if %11 {
      %c0_8 = arith.constant 0 : index
      %c0_9 = arith.constant 0 : index
      %12 = vector.load %arg5[%c0_8, %c0_9] : memref<1x256xf32, #tpu.memory_space<vmem>>, vector<1x256xf32>
      %c0_10 = arith.constant 0 : index
      %c0_11 = arith.constant 0 : index
      %13 = vector.load %arg6[%c0_10, %c0_11] : memref<1x256xf32, #tpu.memory_space<vmem>>, vector<1x256xf32>
      %cst_12 = arith.constant 0.000000e+00 : f32
      %14 = vector.broadcast %cst_12 : f32 to vector<1x256xf32>
      %c51_i32 = arith.constant 51 : i32
      %15 = tpu.dynamic_rotate %12 by %c51_i32 dim 1 : vector<1x256xf32>, i32 -> vector<1x256xf32>
      %c0_13 = arith.constant 0 : index
      %c0_14 = arith.constant 0 : index
      %c0_15 = arith.constant 0 : index
      %16 = vector.load %arg2[%c0_13, %c0_14, %c0_15] : memref<98x1x256xf32, #tpu.memory_space<vmem>>, vector<1x1x256xf32>
      %17 = vector.shape_cast %16 : vector<1x1x256xf32> to vector<1x256xf32>
      %18 = arith.mulf %17, %15 : vector<1x256xf32>
      %19 = arith.addf %14, %18 : vector<1x256xf32>
      %c50_i32 = arith.constant 50 : i32
      %20 = tpu.dynamic_rotate %12 by %c50_i32 dim 1 : vector<1x256xf32>, i32 -> vector<1x256xf32>
      %c1 = arith.constant 1 : index
      %c0_16 = arith.constant 0 : index
      %c0_17 = arith.constant 0 : index
      %21 = vector.load %arg2[%c1, %c0_16, %c0_17] : memref<98x1x256xf32, #tpu.memory_space<vmem>>, vector<1x1x256xf32>
      %22 = vector.shape_cast %21 : vector<1x1x256xf32> to vector<1x256xf32>
      %23 = arith.mulf %22, %20 : vector<1x256xf32>
      %24 = arith.addf %19, %23 : vector<1x256xf32>
      %c49_i32 = arith.constant 49 : i32
      %25 = tpu.dynamic_rotate %12 by %c49_i32 dim 1 : vector<1x256xf32>, i32 -> vector<1x256xf32>
      %c2 = arith.constant 2 : index
      %c0_18 = arith.constant 0 : index
      %c0_19 = arith.constant 0 : index
      %26 = vector.load %arg2[%c2, %c0_18, %c0_19] : memref<98x1x256xf32, #tpu.memory_space<vmem>>, vector<1x1x256xf32>
      %27 = vector.shape_cast %26 : vector<1x1x256xf32> to vector<1x256xf32>
      %28 = arith.mulf %27, %25 : vector<1x256xf32>
      %29 = arith.addf %24, %28 : vector<1x256xf32>
      %c48_i32 = arith.constant 48 : i32
      %30 = tpu.dynamic_rotate %12 by %c48_i32 dim 1 : vector<1x256xf32>, i32 -> vector<1x256xf32>
      %c3 = arith.constant 3 : index
      %c0_20 = arith.constant 0 : index
      %c0_21 = arith.constant 0 : index
      %31 = vector.load %arg2[%c3, %c0_20, %c0_21] : memref<98x1x256xf32, #tpu.memory_space<vmem>>, vector<1x1x256xf32>
      %32 = vector.shape_cast %31 : vector<1x1x256xf32> to vector<1x256xf32>
      %33 = arith.mulf %32, %30 : vector<1x256xf32>
      %34 = arith.addf %29, %33 : vector<1x256xf32>
      %c47_i32 = arith.constant 47 : i32
      %35 = tpu.dynamic_rotate %12 by %c47_i32 dim 1 : vector<1x256xf32>, i32 -> vector<1x256xf32>
      %c4 = arith.constant 4 : index
      %c0_22 = arith.constant 0 : index
      %c0_23 = arith.constant 0 : index
      %36 = vector.load %arg2[%c4, %c0_22, %c0_23] : memref<98x1x256xf32, #tpu.memory_space<vmem>>, vector<1x1x256xf32>
      %37 = vector.shape_cast %36 : vector<1x1x256xf32> to vector<1x256xf32>
      %38 = arith.mulf %37, %35 : vector<1x256xf32>
      %39 = arith.addf %34, %38 : vector<1x256xf32>
      %c46_i32 = arith.constant 46 : i32
      %40 = tpu.dynamic_rotate %12 by %c46_i32 dim 1 : vector<1x256xf32>, i32 -> vector<1x256xf32>
      %c5 = arith.constant 5 : index
      %c0_24 = arith.constant 0 : index
      %c0_25 = arith.constant 0 : index
      %41 = vector.load %arg2[%c5, %c0_24, %c0_25] : memref<98x1x256xf32, #tpu.memory_space<vmem>>, vector<1x1x256xf32>
      %42 = vector.shape_cast %41 : vector<1x1x256xf32> to vector<1x256xf32>
      %43 = arith.mulf %42, %40 : vector<1x256xf32>
      %44 = arith.addf %39, %43 : vector<1x256xf32>
      %c45_i32 = arith.constant 45 : i32
      %45 = tpu.dynamic_rotate %12 by %c45_i32 dim 1 : vector<1x256xf32>, i32 -> vector<1x256xf32>
      %c6 = arith.constant 6 : index
      %c0_26 = arith.constant 0 : index
      %c0_27 = arith.constant 0 : index
      %46 = vector.load %arg2[%c6, %c0_26, %c0_27] : memref<98x1x256xf32, #tpu.memory_space<vmem>>, vector<1x1x256xf32>
      %47 = vector.shape_cast %46 : vector<1x1x256xf32> to vector<1x256xf32>
      %48 = arith.mulf %47, %45 : vector<1x256xf32>
      %49 = arith.addf %44, %48 : vector<1x256xf32>
      %c35_i32 = arith.constant 35 : i32
      %50 = tpu.dynamic_rotate %12 by %c35_i32 dim 1 : vector<1x256xf32>, i32 -> vector<1x256xf32>
      %c7 = arith.constant 7 : index
      %c0_28 = arith.constant 0 : index
      %c0_29 = arith.constant 0 : index
      %51 = vector.load %arg2[%c7, %c0_28, %c0_29] : memref<98x1x256xf32, #tpu.memory_space<vmem>>, vector<1x1x256xf32>
      %52 = vector.shape_cast %51 : vector<1x1x256xf32> to vector<1x256xf32>
      %53 = arith.mulf %52, %50 : vector<1x256xf32>
      %54 = arith.addf %49, %53 : vector<1x256xf32>
      %c34_i32 = arith.constant 34 : i32
      %55 = tpu.dynamic_rotate %12 by %c34_i32 dim 1 : vector<1x256xf32>, i32 -> vector<1x256xf32>
      %c8 = arith.constant 8 : index
      %c0_30 = arith.constant 0 : index
      %c0_31 = arith.constant 0 : index
      %56 = vector.load %arg2[%c8, %c0_30, %c0_31] : memref<98x1x256xf32, #tpu.memory_space<vmem>>, vector<1x1x256xf32>
      %57 = vector.shape_cast %56 : vector<1x1x256xf32> to vector<1x256xf32>
      %58 = arith.mulf %57, %55 : vector<1x256xf32>
      %59 = arith.addf %54, %58 : vector<1x256xf32>
      %c33_i32 = arith.constant 33 : i32
      %60 = tpu.dynamic_rotate %12 by %c33_i32 dim 1 : vector<1x256xf32>, i32 -> vector<1x256xf32>
      %c9 = arith.constant 9 : index
      %c0_32 = arith.constant 0 : index
      %c0_33 = arith.constant 0 : index
      %61 = vector.load %arg2[%c9, %c0_32, %c0_33] : memref<98x1x256xf32, #tpu.memory_space<vmem>>, vector<1x1x256xf32>
      %62 = vector.shape_cast %61 : vector<1x1x256xf32> to vector<1x256xf32>
      %63 = arith.mulf %62, %60 : vector<1x256xf32>
      %64 = arith.addf %59, %63 : vector<1x256xf32>
      %c32_i32 = arith.constant 32 : i32
      %65 = tpu.dynamic_rotate %12 by %c32_i32 dim 1 : vector<1x256xf32>, i32 -> vector<1x256xf32>
      %c10 = arith.constant 10 : index
      %c0_34 = arith.constant 0 : index
      %c0_35 = arith.constant 0 : index
      %66 = vector.load %arg2[%c10, %c0_34, %c0_35] : memref<98x1x256xf32, #tpu.memory_space<vmem>>, vector<1x1x256xf32>
      %67 = vector.shape_cast %66 : vector<1x1x256xf32> to vector<1x256xf32>
      %68 = arith.mulf %67, %65 : vector<1x256xf32>
      %69 = arith.addf %64, %68 : vector<1x256xf32>
      %c31_i32 = arith.constant 31 : i32
      %70 = tpu.dynamic_rotate %12 by %c31_i32 dim 1 : vector<1x256xf32>, i32 -> vector<1x256xf32>
      %c11 = arith.constant 11 : index
      %c0_36 = arith.constant 0 : index
      %c0_37 = arith.constant 0 : index
      %71 = vector.load %arg2[%c11, %c0_36, %c0_37] : memref<98x1x256xf32, #tpu.memory_space<vmem>>, vector<1x1x256xf32>
      %72 = vector.shape_cast %71 : vector<1x1x256xf32> to vector<1x256xf32>
      %73 = arith.mulf %72, %70 : vector<1x256xf32>
      %74 = arith.addf %69, %73 : vector<1x256xf32>
      %c30_i32 = arith.constant 30 : i32
      %75 = tpu.dynamic_rotate %12 by %c30_i32 dim 1 : vector<1x256xf32>, i32 -> vector<1x256xf32>
      %c12 = arith.constant 12 : index
      %c0_38 = arith.constant 0 : index
      %c0_39 = arith.constant 0 : index
      %76 = vector.load %arg2[%c12, %c0_38, %c0_39] : memref<98x1x256xf32, #tpu.memory_space<vmem>>, vector<1x1x256xf32>
      %77 = vector.shape_cast %76 : vector<1x1x256xf32> to vector<1x256xf32>
      %78 = arith.mulf %77, %75 : vector<1x256xf32>
      %79 = arith.addf %74, %78 : vector<1x256xf32>
      %c29_i32 = arith.constant 29 : i32
      %80 = tpu.dynamic_rotate %12 by %c29_i32 dim 1 : vector<1x256xf32>, i32 -> vector<1x256xf32>
      %c13 = arith.constant 13 : index
      %c0_40 = arith.constant 0 : index
      %c0_41 = arith.constant 0 : index
      %81 = vector.load %arg2[%c13, %c0_40, %c0_41] : memref<98x1x256xf32, #tpu.memory_space<vmem>>, vector<1x1x256xf32>
      %82 = vector.shape_cast %81 : vector<1x1x256xf32> to vector<1x256xf32>
      %83 = arith.mulf %82, %80 : vector<1x256xf32>
      %84 = arith.addf %79, %83 : vector<1x256xf32>
      %c19_i32 = arith.constant 19 : i32
      %85 = tpu.dynamic_rotate %12 by %c19_i32 dim 1 : vector<1x256xf32>, i32 -> vector<1x256xf32>
      %c14 = arith.constant 14 : index
      %c0_42 = arith.constant 0 : index
      %c0_43 = arith.constant 0 : index
      %86 = vector.load %arg2[%c14, %c0_42, %c0_43] : memref<98x1x256xf32, #tpu.memory_space<vmem>>, vector<1x1x256xf32>
      %87 = vector.shape_cast %86 : vector<1x1x256xf32> to vector<1x256xf32>
      %88 = arith.mulf %87, %85 : vector<1x256xf32>
      %89 = arith.addf %84, %88 : vector<1x256xf32>
      %c18_i32 = arith.constant 18 : i32
      %90 = tpu.dynamic_rotate %12 by %c18_i32 dim 1 : vector<1x256xf32>, i32 -> vector<1x256xf32>
      %c15 = arith.constant 15 : index
      %c0_44 = arith.constant 0 : index
      %c0_45 = arith.constant 0 : index
      %91 = vector.load %arg2[%c15, %c0_44, %c0_45] : memref<98x1x256xf32, #tpu.memory_space<vmem>>, vector<1x1x256xf32>
      %92 = vector.shape_cast %91 : vector<1x1x256xf32> to vector<1x256xf32>
      %93 = arith.mulf %92, %90 : vector<1x256xf32>
      %94 = arith.addf %89, %93 : vector<1x256xf32>
      %c17_i32 = arith.constant 17 : i32
      %95 = tpu.dynamic_rotate %12 by %c17_i32 dim 1 : vector<1x256xf32>, i32 -> vector<1x256xf32>
      %c16 = arith.constant 16 : index
      %c0_46 = arith.constant 0 : index
      %c0_47 = arith.constant 0 : index
      %96 = vector.load %arg2[%c16, %c0_46, %c0_47] : memref<98x1x256xf32, #tpu.memory_space<vmem>>, vector<1x1x256xf32>
      %97 = vector.shape_cast %96 : vector<1x1x256xf32> to vector<1x256xf32>
      %98 = arith.mulf %97, %95 : vector<1x256xf32>
      %99 = arith.addf %94, %98 : vector<1x256xf32>
      %c16_i32 = arith.constant 16 : i32
      %100 = tpu.dynamic_rotate %12 by %c16_i32 dim 1 : vector<1x256xf32>, i32 -> vector<1x256xf32>
      %c17 = arith.constant 17 : index
      %c0_48 = arith.constant 0 : index
      %c0_49 = arith.constant 0 : index
      %101 = vector.load %arg2[%c17, %c0_48, %c0_49] : memref<98x1x256xf32, #tpu.memory_space<vmem>>, vector<1x1x256xf32>
      %102 = vector.shape_cast %101 : vector<1x1x256xf32> to vector<1x256xf32>
      %103 = arith.mulf %102, %100 : vector<1x256xf32>
      %104 = arith.addf %99, %103 : vector<1x256xf32>
      %c15_i32 = arith.constant 15 : i32
      %105 = tpu.dynamic_rotate %12 by %c15_i32 dim 1 : vector<1x256xf32>, i32 -> vector<1x256xf32>
      %c18 = arith.constant 18 : index
      %c0_50 = arith.constant 0 : index
      %c0_51 = arith.constant 0 : index
      %106 = vector.load %arg2[%c18, %c0_50, %c0_51] : memref<98x1x256xf32, #tpu.memory_space<vmem>>, vector<1x1x256xf32>
      %107 = vector.shape_cast %106 : vector<1x1x256xf32> to vector<1x256xf32>
      %108 = arith.mulf %107, %105 : vector<1x256xf32>
      %109 = arith.addf %104, %108 : vector<1x256xf32>
      %c14_i32 = arith.constant 14 : i32
      %110 = tpu.dynamic_rotate %12 by %c14_i32 dim 1 : vector<1x256xf32>, i32 -> vector<1x256xf32>
      %c19 = arith.constant 19 : index
      %c0_52 = arith.constant 0 : index
      %c0_53 = arith.constant 0 : index
      %111 = vector.load %arg2[%c19, %c0_52, %c0_53] : memref<98x1x256xf32, #tpu.memory_space<vmem>>, vector<1x1x256xf32>
      %112 = vector.shape_cast %111 : vector<1x1x256xf32> to vector<1x256xf32>
      %113 = arith.mulf %112, %110 : vector<1x256xf32>
      %114 = arith.addf %109, %113 : vector<1x256xf32>
      %c13_i32 = arith.constant 13 : i32
      %115 = tpu.dynamic_rotate %12 by %c13_i32 dim 1 : vector<1x256xf32>, i32 -> vector<1x256xf32>
      %c20 = arith.constant 20 : index
      %c0_54 = arith.constant 0 : index
      %c0_55 = arith.constant 0 : index
      %116 = vector.load %arg2[%c20, %c0_54, %c0_55] : memref<98x1x256xf32, #tpu.memory_space<vmem>>, vector<1x1x256xf32>
      %117 = vector.shape_cast %116 : vector<1x1x256xf32> to vector<1x256xf32>
      %118 = arith.mulf %117, %115 : vector<1x256xf32>
      %119 = arith.addf %114, %118 : vector<1x256xf32>
      %c3_i32 = arith.constant 3 : i32
      %120 = tpu.dynamic_rotate %12 by %c3_i32 dim 1 : vector<1x256xf32>, i32 -> vector<1x256xf32>
      %c21 = arith.constant 21 : index
      %c0_56 = arith.constant 0 : index
      %c0_57 = arith.constant 0 : index
      %121 = vector.load %arg2[%c21, %c0_56, %c0_57] : memref<98x1x256xf32, #tpu.memory_space<vmem>>, vector<1x1x256xf32>
      %122 = vector.shape_cast %121 : vector<1x1x256xf32> to vector<1x256xf32>
      %123 = arith.mulf %122, %120 : vector<1x256xf32>
      %124 = arith.addf %119, %123 : vector<1x256xf32>
      %c2_i32 = arith.constant 2 : i32
      %125 = tpu.dynamic_rotate %12 by %c2_i32 dim 1 : vector<1x256xf32>, i32 -> vector<1x256xf32>
      %c22 = arith.constant 22 : index
      %c0_58 = arith.constant 0 : index
      %c0_59 = arith.constant 0 : index
      %126 = vector.load %arg2[%c22, %c0_58, %c0_59] : memref<98x1x256xf32, #tpu.memory_space<vmem>>, vector<1x1x256xf32>
      %127 = vector.shape_cast %126 : vector<1x1x256xf32> to vector<1x256xf32>
      %128 = arith.mulf %127, %125 : vector<1x256xf32>
      %129 = arith.addf %124, %128 : vector<1x256xf32>
      %c1_i32 = arith.constant 1 : i32
      %130 = tpu.dynamic_rotate %12 by %c1_i32 dim 1 : vector<1x256xf32>, i32 -> vector<1x256xf32>
      %c23 = arith.constant 23 : index
      %c0_60 = arith.constant 0 : index
      %c0_61 = arith.constant 0 : index
      %131 = vector.load %arg2[%c23, %c0_60, %c0_61] : memref<98x1x256xf32, #tpu.memory_space<vmem>>, vector<1x1x256xf32>
      %132 = vector.shape_cast %131 : vector<1x1x256xf32> to vector<1x256xf32>
      %133 = arith.mulf %132, %130 : vector<1x256xf32>
      %134 = arith.addf %129, %133 : vector<1x256xf32>
      %c24 = arith.constant 24 : index
      %c0_62 = arith.constant 0 : index
      %c0_63 = arith.constant 0 : index
      %135 = vector.load %arg2[%c24, %c0_62, %c0_63] : memref<98x1x256xf32, #tpu.memory_space<vmem>>, vector<1x1x256xf32>
      %136 = vector.shape_cast %135 : vector<1x1x256xf32> to vector<1x256xf32>
      %137 = arith.mulf %136, %12 : vector<1x256xf32>
      %138 = arith.addf %134, %137 : vector<1x256xf32>
      %c255_i32 = arith.constant 255 : i32
      %139 = tpu.dynamic_rotate %12 by %c255_i32 dim 1 : vector<1x256xf32>, i32 -> vector<1x256xf32>
      %c25 = arith.constant 25 : index
      %c0_64 = arith.constant 0 : index
      %c0_65 = arith.constant 0 : index
      %140 = vector.load %arg2[%c25, %c0_64, %c0_65] : memref<98x1x256xf32, #tpu.memory_space<vmem>>, vector<1x1x256xf32>
      %141 = vector.shape_cast %140 : vector<1x1x256xf32> to vector<1x256xf32>
      %142 = arith.mulf %141, %139 : vector<1x256xf32>
      %143 = arith.addf %138, %142 : vector<1x256xf32>
      %c254_i32 = arith.constant 254 : i32
      %144 = tpu.dynamic_rotate %12 by %c254_i32 dim 1 : vector<1x256xf32>, i32 -> vector<1x256xf32>
      %c26 = arith.constant 26 : index
      %c0_66 = arith.constant 0 : index
      %c0_67 = arith.constant 0 : index
      %145 = vector.load %arg2[%c26, %c0_66, %c0_67] : memref<98x1x256xf32, #tpu.memory_space<vmem>>, vector<1x1x256xf32>
      %146 = vector.shape_cast %145 : vector<1x1x256xf32> to vector<1x256xf32>
      %147 = arith.mulf %146, %144 : vector<1x256xf32>
      %148 = arith.addf %143, %147 : vector<1x256xf32>
      %c253_i32 = arith.constant 253 : i32
      %149 = tpu.dynamic_rotate %12 by %c253_i32 dim 1 : vector<1x256xf32>, i32 -> vector<1x256xf32>
      %c27 = arith.constant 27 : index
      %c0_68 = arith.constant 0 : index
      %c0_69 = arith.constant 0 : index
      %150 = vector.load %arg2[%c27, %c0_68, %c0_69] : memref<98x1x256xf32, #tpu.memory_space<vmem>>, vector<1x1x256xf32>
      %151 = vector.shape_cast %150 : vector<1x1x256xf32> to vector<1x256xf32>
      %152 = arith.mulf %151, %149 : vector<1x256xf32>
      %153 = arith.addf %148, %152 : vector<1x256xf32>
      %c243_i32 = arith.constant 243 : i32
      %154 = tpu.dynamic_rotate %12 by %c243_i32 dim 1 : vector<1x256xf32>, i32 -> vector<1x256xf32>
      %c28 = arith.constant 28 : index
      %c0_70 = arith.constant 0 : index
      %c0_71 = arith.constant 0 : index
      %155 = vector.load %arg2[%c28, %c0_70, %c0_71] : memref<98x1x256xf32, #tpu.memory_space<vmem>>, vector<1x1x256xf32>
      %156 = vector.shape_cast %155 : vector<1x1x256xf32> to vector<1x256xf32>
      %157 = arith.mulf %156, %154 : vector<1x256xf32>
      %158 = arith.addf %153, %157 : vector<1x256xf32>
      %c242_i32 = arith.constant 242 : i32
      %159 = tpu.dynamic_rotate %12 by %c242_i32 dim 1 : vector<1x256xf32>, i32 -> vector<1x256xf32>
      %c29 = arith.constant 29 : index
      %c0_72 = arith.constant 0 : index
      %c0_73 = arith.constant 0 : index
      %160 = vector.load %arg2[%c29, %c0_72, %c0_73] : memref<98x1x256xf32, #tpu.memory_space<vmem>>, vector<1x1x256xf32>
      %161 = vector.shape_cast %160 : vector<1x1x256xf32> to vector<1x256xf32>
      %162 = arith.mulf %161, %159 : vector<1x256xf32>
      %163 = arith.addf %158, %162 : vector<1x256xf32>
      %c241_i32 = arith.constant 241 : i32
      %164 = tpu.dynamic_rotate %12 by %c241_i32 dim 1 : vector<1x256xf32>, i32 -> vector<1x256xf32>
      %c30 = arith.constant 30 : index
      %c0_74 = arith.constant 0 : index
      %c0_75 = arith.constant 0 : index
      %165 = vector.load %arg2[%c30, %c0_74, %c0_75] : memref<98x1x256xf32, #tpu.memory_space<vmem>>, vector<1x1x256xf32>
      %166 = vector.shape_cast %165 : vector<1x1x256xf32> to vector<1x256xf32>
      %167 = arith.mulf %166, %164 : vector<1x256xf32>
      %168 = arith.addf %163, %167 : vector<1x256xf32>
      %c240_i32 = arith.constant 240 : i32
      %169 = tpu.dynamic_rotate %12 by %c240_i32 dim 1 : vector<1x256xf32>, i32 -> vector<1x256xf32>
      %c31 = arith.constant 31 : index
      %c0_76 = arith.constant 0 : index
      %c0_77 = arith.constant 0 : index
      %170 = vector.load %arg2[%c31, %c0_76, %c0_77] : memref<98x1x256xf32, #tpu.memory_space<vmem>>, vector<1x1x256xf32>
      %171 = vector.shape_cast %170 : vector<1x1x256xf32> to vector<1x256xf32>
      %172 = arith.mulf %171, %169 : vector<1x256xf32>
      %173 = arith.addf %168, %172 : vector<1x256xf32>
      %c239_i32 = arith.constant 239 : i32
      %174 = tpu.dynamic_rotate %12 by %c239_i32 dim 1 : vector<1x256xf32>, i32 -> vector<1x256xf32>
      %c32 = arith.constant 32 : index
      %c0_78 = arith.constant 0 : index
      %c0_79 = arith.constant 0 : index
      %175 = vector.load %arg2[%c32, %c0_78, %c0_79] : memref<98x1x256xf32, #tpu.memory_space<vmem>>, vector<1x1x256xf32>
      %176 = vector.shape_cast %175 : vector<1x1x256xf32> to vector<1x256xf32>
      %177 = arith.mulf %176, %174 : vector<1x256xf32>
      %178 = arith.addf %173, %177 : vector<1x256xf32>
      %c238_i32 = arith.constant 238 : i32
      %179 = tpu.dynamic_rotate %12 by %c238_i32 dim 1 : vector<1x256xf32>, i32 -> vector<1x256xf32>
      %c33 = arith.constant 33 : index
      %c0_80 = arith.constant 0 : index
      %c0_81 = arith.constant 0 : index
      %180 = vector.load %arg2[%c33, %c0_80, %c0_81] : memref<98x1x256xf32, #tpu.memory_space<vmem>>, vector<1x1x256xf32>
      %181 = vector.shape_cast %180 : vector<1x1x256xf32> to vector<1x256xf32>
      %182 = arith.mulf %181, %179 : vector<1x256xf32>
      %183 = arith.addf %178, %182 : vector<1x256xf32>
      %c237_i32 = arith.constant 237 : i32
      %184 = tpu.dynamic_rotate %12 by %c237_i32 dim 1 : vector<1x256xf32>, i32 -> vector<1x256xf32>
      %c34 = arith.constant 34 : index
      %c0_82 = arith.constant 0 : index
      %c0_83 = arith.constant 0 : index
      %185 = vector.load %arg2[%c34, %c0_82, %c0_83] : memref<98x1x256xf32, #tpu.memory_space<vmem>>, vector<1x1x256xf32>
      %186 = vector.shape_cast %185 : vector<1x1x256xf32> to vector<1x256xf32>
      %187 = arith.mulf %186, %184 : vector<1x256xf32>
      %188 = arith.addf %183, %187 : vector<1x256xf32>
      %c227_i32 = arith.constant 227 : i32
      %189 = tpu.dynamic_rotate %12 by %c227_i32 dim 1 : vector<1x256xf32>, i32 -> vector<1x256xf32>
      %c35 = arith.constant 35 : index
      %c0_84 = arith.constant 0 : index
      %c0_85 = arith.constant 0 : index
      %190 = vector.load %arg2[%c35, %c0_84, %c0_85] : memref<98x1x256xf32, #tpu.memory_space<vmem>>, vector<1x1x256xf32>
      %191 = vector.shape_cast %190 : vector<1x1x256xf32> to vector<1x256xf32>
      %192 = arith.mulf %191, %189 : vector<1x256xf32>
      %193 = arith.addf %188, %192 : vector<1x256xf32>
      %c226_i32 = arith.constant 226 : i32
      %194 = tpu.dynamic_rotate %12 by %c226_i32 dim 1 : vector<1x256xf32>, i32 -> vector<1x256xf32>
      %c36 = arith.constant 36 : index
      %c0_86 = arith.constant 0 : index
      %c0_87 = arith.constant 0 : index
      %195 = vector.load %arg2[%c36, %c0_86, %c0_87] : memref<98x1x256xf32, #tpu.memory_space<vmem>>, vector<1x1x256xf32>
      %196 = vector.shape_cast %195 : vector<1x1x256xf32> to vector<1x256xf32>
      %197 = arith.mulf %196, %194 : vector<1x256xf32>
      %198 = arith.addf %193, %197 : vector<1x256xf32>
      %c225_i32 = arith.constant 225 : i32
      %199 = tpu.dynamic_rotate %12 by %c225_i32 dim 1 : vector<1x256xf32>, i32 -> vector<1x256xf32>
      %c37 = arith.constant 37 : index
      %c0_88 = arith.constant 0 : index
      %c0_89 = arith.constant 0 : index
      %200 = vector.load %arg2[%c37, %c0_88, %c0_89] : memref<98x1x256xf32, #tpu.memory_space<vmem>>, vector<1x1x256xf32>
      %201 = vector.shape_cast %200 : vector<1x1x256xf32> to vector<1x256xf32>
      %202 = arith.mulf %201, %199 : vector<1x256xf32>
      %203 = arith.addf %198, %202 : vector<1x256xf32>
      %c224_i32 = arith.constant 224 : i32
      %204 = tpu.dynamic_rotate %12 by %c224_i32 dim 1 : vector<1x256xf32>, i32 -> vector<1x256xf32>
      %c38 = arith.constant 38 : index
      %c0_90 = arith.constant 0 : index
      %c0_91 = arith.constant 0 : index
      %205 = vector.load %arg2[%c38, %c0_90, %c0_91] : memref<98x1x256xf32, #tpu.memory_space<vmem>>, vector<1x1x256xf32>
      %206 = vector.shape_cast %205 : vector<1x1x256xf32> to vector<1x256xf32>
      %207 = arith.mulf %206, %204 : vector<1x256xf32>
      %208 = arith.addf %203, %207 : vector<1x256xf32>
      %c223_i32 = arith.constant 223 : i32
      %209 = tpu.dynamic_rotate %12 by %c223_i32 dim 1 : vector<1x256xf32>, i32 -> vector<1x256xf32>
      %c39 = arith.constant 39 : index
      %c0_92 = arith.constant 0 : index
      %c0_93 = arith.constant 0 : index
      %210 = vector.load %arg2[%c39, %c0_92, %c0_93] : memref<98x1x256xf32, #tpu.memory_space<vmem>>, vector<1x1x256xf32>
      %211 = vector.shape_cast %210 : vector<1x1x256xf32> to vector<1x256xf32>
      %212 = arith.mulf %211, %209 : vector<1x256xf32>
      %213 = arith.addf %208, %212 : vector<1x256xf32>
      %c222_i32 = arith.constant 222 : i32
      %214 = tpu.dynamic_rotate %12 by %c222_i32 dim 1 : vector<1x256xf32>, i32 -> vector<1x256xf32>
      %c40 = arith.constant 40 : index
      %c0_94 = arith.constant 0 : index
      %c0_95 = arith.constant 0 : index
      %215 = vector.load %arg2[%c40, %c0_94, %c0_95] : memref<98x1x256xf32, #tpu.memory_space<vmem>>, vector<1x1x256xf32>
      %216 = vector.shape_cast %215 : vector<1x1x256xf32> to vector<1x256xf32>
      %217 = arith.mulf %216, %214 : vector<1x256xf32>
      %218 = arith.addf %213, %217 : vector<1x256xf32>
      %c221_i32 = arith.constant 221 : i32
      %219 = tpu.dynamic_rotate %12 by %c221_i32 dim 1 : vector<1x256xf32>, i32 -> vector<1x256xf32>
      %c41 = arith.constant 41 : index
      %c0_96 = arith.constant 0 : index
      %c0_97 = arith.constant 0 : index
      %220 = vector.load %arg2[%c41, %c0_96, %c0_97] : memref<98x1x256xf32, #tpu.memory_space<vmem>>, vector<1x1x256xf32>
      %221 = vector.shape_cast %220 : vector<1x1x256xf32> to vector<1x256xf32>
      %222 = arith.mulf %221, %219 : vector<1x256xf32>
      %223 = arith.addf %218, %222 : vector<1x256xf32>
      %c211_i32 = arith.constant 211 : i32
      %224 = tpu.dynamic_rotate %12 by %c211_i32 dim 1 : vector<1x256xf32>, i32 -> vector<1x256xf32>
      %c42 = arith.constant 42 : index
      %c0_98 = arith.constant 0 : index
      %c0_99 = arith.constant 0 : index
      %225 = vector.load %arg2[%c42, %c0_98, %c0_99] : memref<98x1x256xf32, #tpu.memory_space<vmem>>, vector<1x1x256xf32>
      %226 = vector.shape_cast %225 : vector<1x1x256xf32> to vector<1x256xf32>
      %227 = arith.mulf %226, %224 : vector<1x256xf32>
      %228 = arith.addf %223, %227 : vector<1x256xf32>
      %c210_i32 = arith.constant 210 : i32
      %229 = tpu.dynamic_rotate %12 by %c210_i32 dim 1 : vector<1x256xf32>, i32 -> vector<1x256xf32>
      %c43 = arith.constant 43 : index
      %c0_100 = arith.constant 0 : index
      %c0_101 = arith.constant 0 : index
      %230 = vector.load %arg2[%c43, %c0_100, %c0_101] : memref<98x1x256xf32, #tpu.memory_space<vmem>>, vector<1x1x256xf32>
      %231 = vector.shape_cast %230 : vector<1x1x256xf32> to vector<1x256xf32>
      %232 = arith.mulf %231, %229 : vector<1x256xf32>
      %233 = arith.addf %228, %232 : vector<1x256xf32>
      %c209_i32 = arith.constant 209 : i32
      %234 = tpu.dynamic_rotate %12 by %c209_i32 dim 1 : vector<1x256xf32>, i32 -> vector<1x256xf32>
      %c44 = arith.constant 44 : index
      %c0_102 = arith.constant 0 : index
      %c0_103 = arith.constant 0 : index
      %235 = vector.load %arg2[%c44, %c0_102, %c0_103] : memref<98x1x256xf32, #tpu.memory_space<vmem>>, vector<1x1x256xf32>
      %236 = vector.shape_cast %235 : vector<1x1x256xf32> to vector<1x256xf32>
      %237 = arith.mulf %236, %234 : vector<1x256xf32>
      %238 = arith.addf %233, %237 : vector<1x256xf32>
      %c208_i32 = arith.constant 208 : i32
      %239 = tpu.dynamic_rotate %12 by %c208_i32 dim 1 : vector<1x256xf32>, i32 -> vector<1x256xf32>
      %c45 = arith.constant 45 : index
      %c0_104 = arith.constant 0 : index
      %c0_105 = arith.constant 0 : index
      %240 = vector.load %arg2[%c45, %c0_104, %c0_105] : memref<98x1x256xf32, #tpu.memory_space<vmem>>, vector<1x1x256xf32>
      %241 = vector.shape_cast %240 : vector<1x1x256xf32> to vector<1x256xf32>
      %242 = arith.mulf %241, %239 : vector<1x256xf32>
      %243 = arith.addf %238, %242 : vector<1x256xf32>
      %c207_i32 = arith.constant 207 : i32
      %244 = tpu.dynamic_rotate %12 by %c207_i32 dim 1 : vector<1x256xf32>, i32 -> vector<1x256xf32>
      %c46 = arith.constant 46 : index
      %c0_106 = arith.constant 0 : index
      %c0_107 = arith.constant 0 : index
      %245 = vector.load %arg2[%c46, %c0_106, %c0_107] : memref<98x1x256xf32, #tpu.memory_space<vmem>>, vector<1x1x256xf32>
      %246 = vector.shape_cast %245 : vector<1x1x256xf32> to vector<1x256xf32>
      %247 = arith.mulf %246, %244 : vector<1x256xf32>
      %248 = arith.addf %243, %247 : vector<1x256xf32>
      %c206_i32 = arith.constant 206 : i32
      %249 = tpu.dynamic_rotate %12 by %c206_i32 dim 1 : vector<1x256xf32>, i32 -> vector<1x256xf32>
      %c47 = arith.constant 47 : index
      %c0_108 = arith.constant 0 : index
      %c0_109 = arith.constant 0 : index
      %250 = vector.load %arg2[%c47, %c0_108, %c0_109] : memref<98x1x256xf32, #tpu.memory_space<vmem>>, vector<1x1x256xf32>
      %251 = vector.shape_cast %250 : vector<1x1x256xf32> to vector<1x256xf32>
      %252 = arith.mulf %251, %249 : vector<1x256xf32>
      %253 = arith.addf %248, %252 : vector<1x256xf32>
      %c205_i32 = arith.constant 205 : i32
      %254 = tpu.dynamic_rotate %12 by %c205_i32 dim 1 : vector<1x256xf32>, i32 -> vector<1x256xf32>
      %c48 = arith.constant 48 : index
      %c0_110 = arith.constant 0 : index
      %c0_111 = arith.constant 0 : index
      %255 = vector.load %arg2[%c48, %c0_110, %c0_111] : memref<98x1x256xf32, #tpu.memory_space<vmem>>, vector<1x1x256xf32>
      %256 = vector.shape_cast %255 : vector<1x1x256xf32> to vector<1x256xf32>
      %257 = arith.mulf %256, %254 : vector<1x256xf32>
      %258 = arith.addf %253, %257 : vector<1x256xf32>
      %cst_112 = arith.constant 0.000000e+00 : f32
      %259 = vector.broadcast %cst_112 : f32 to vector<1x256xf32>
      %c51_i32_113 = arith.constant 51 : i32
      %260 = tpu.dynamic_rotate %13 by %c51_i32_113 dim 1 : vector<1x256xf32>, i32 -> vector<1x256xf32>
      %c49 = arith.constant 49 : index
      %c0_114 = arith.constant 0 : index
      %c0_115 = arith.constant 0 : index
      %261 = vector.load %arg2[%c49, %c0_114, %c0_115] : memref<98x1x256xf32, #tpu.memory_space<vmem>>, vector<1x1x256xf32>
      %262 = vector.shape_cast %261 : vector<1x1x256xf32> to vector<1x256xf32>
      %263 = arith.mulf %262, %260 : vector<1x256xf32>
      %264 = arith.addf %259, %263 : vector<1x256xf32>
      %c50_i32_116 = arith.constant 50 : i32
      %265 = tpu.dynamic_rotate %13 by %c50_i32_116 dim 1 : vector<1x256xf32>, i32 -> vector<1x256xf32>
      %c50 = arith.constant 50 : index
      %c0_117 = arith.constant 0 : index
      %c0_118 = arith.constant 0 : index
      %266 = vector.load %arg2[%c50, %c0_117, %c0_118] : memref<98x1x256xf32, #tpu.memory_space<vmem>>, vector<1x1x256xf32>
      %267 = vector.shape_cast %266 : vector<1x1x256xf32> to vector<1x256xf32>
      %268 = arith.mulf %267, %265 : vector<1x256xf32>
      %269 = arith.addf %264, %268 : vector<1x256xf32>
      %c49_i32_119 = arith.constant 49 : i32
      %270 = tpu.dynamic_rotate %13 by %c49_i32_119 dim 1 : vector<1x256xf32>, i32 -> vector<1x256xf32>
      %c51 = arith.constant 51 : index
      %c0_120 = arith.constant 0 : index
      %c0_121 = arith.constant 0 : index
      %271 = vector.load %arg2[%c51, %c0_120, %c0_121] : memref<98x1x256xf32, #tpu.memory_space<vmem>>, vector<1x1x256xf32>
      %272 = vector.shape_cast %271 : vector<1x1x256xf32> to vector<1x256xf32>
      %273 = arith.mulf %272, %270 : vector<1x256xf32>
      %274 = arith.addf %269, %273 : vector<1x256xf32>
      %c48_i32_122 = arith.constant 48 : i32
      %275 = tpu.dynamic_rotate %13 by %c48_i32_122 dim 1 : vector<1x256xf32>, i32 -> vector<1x256xf32>
      %c52 = arith.constant 52 : index
      %c0_123 = arith.constant 0 : index
      %c0_124 = arith.constant 0 : index
      %276 = vector.load %arg2[%c52, %c0_123, %c0_124] : memref<98x1x256xf32, #tpu.memory_space<vmem>>, vector<1x1x256xf32>
      %277 = vector.shape_cast %276 : vector<1x1x256xf32> to vector<1x256xf32>
      %278 = arith.mulf %277, %275 : vector<1x256xf32>
      %279 = arith.addf %274, %278 : vector<1x256xf32>
      %c47_i32_125 = arith.constant 47 : i32
      %280 = tpu.dynamic_rotate %13 by %c47_i32_125 dim 1 : vector<1x256xf32>, i32 -> vector<1x256xf32>
      %c53 = arith.constant 53 : index
      %c0_126 = arith.constant 0 : index
      %c0_127 = arith.constant 0 : index
      %281 = vector.load %arg2[%c53, %c0_126, %c0_127] : memref<98x1x256xf32, #tpu.memory_space<vmem>>, vector<1x1x256xf32>
      %282 = vector.shape_cast %281 : vector<1x1x256xf32> to vector<1x256xf32>
      %283 = arith.mulf %282, %280 : vector<1x256xf32>
      %284 = arith.addf %279, %283 : vector<1x256xf32>
      %c46_i32_128 = arith.constant 46 : i32
      %285 = tpu.dynamic_rotate %13 by %c46_i32_128 dim 1 : vector<1x256xf32>, i32 -> vector<1x256xf32>
      %c54 = arith.constant 54 : index
      %c0_129 = arith.constant 0 : index
      %c0_130 = arith.constant 0 : index
      %286 = vector.load %arg2[%c54, %c0_129, %c0_130] : memref<98x1x256xf32, #tpu.memory_space<vmem>>, vector<1x1x256xf32>
      %287 = vector.shape_cast %286 : vector<1x1x256xf32> to vector<1x256xf32>
      %288 = arith.mulf %287, %285 : vector<1x256xf32>
      %289 = arith.addf %284, %288 : vector<1x256xf32>
      %c45_i32_131 = arith.constant 45 : i32
      %290 = tpu.dynamic_rotate %13 by %c45_i32_131 dim 1 : vector<1x256xf32>, i32 -> vector<1x256xf32>
      %c55 = arith.constant 55 : index
      %c0_132 = arith.constant 0 : index
      %c0_133 = arith.constant 0 : index
      %291 = vector.load %arg2[%c55, %c0_132, %c0_133] : memref<98x1x256xf32, #tpu.memory_space<vmem>>, vector<1x1x256xf32>
      %292 = vector.shape_cast %291 : vector<1x1x256xf32> to vector<1x256xf32>
      %293 = arith.mulf %292, %290 : vector<1x256xf32>
      %294 = arith.addf %289, %293 : vector<1x256xf32>
      %c35_i32_134 = arith.constant 35 : i32
      %295 = tpu.dynamic_rotate %13 by %c35_i32_134 dim 1 : vector<1x256xf32>, i32 -> vector<1x256xf32>
      %c56 = arith.constant 56 : index
      %c0_135 = arith.constant 0 : index
      %c0_136 = arith.constant 0 : index
      %296 = vector.load %arg2[%c56, %c0_135, %c0_136] : memref<98x1x256xf32, #tpu.memory_space<vmem>>, vector<1x1x256xf32>
      %297 = vector.shape_cast %296 : vector<1x1x256xf32> to vector<1x256xf32>
      %298 = arith.mulf %297, %295 : vector<1x256xf32>
      %299 = arith.addf %294, %298 : vector<1x256xf32>
      %c34_i32_137 = arith.constant 34 : i32
      %300 = tpu.dynamic_rotate %13 by %c34_i32_137 dim 1 : vector<1x256xf32>, i32 -> vector<1x256xf32>
      %c57 = arith.constant 57 : index
      %c0_138 = arith.constant 0 : index
      %c0_139 = arith.constant 0 : index
      %301 = vector.load %arg2[%c57, %c0_138, %c0_139] : memref<98x1x256xf32, #tpu.memory_space<vmem>>, vector<1x1x256xf32>
      %302 = vector.shape_cast %301 : vector<1x1x256xf32> to vector<1x256xf32>
      %303 = arith.mulf %302, %300 : vector<1x256xf32>
      %304 = arith.addf %299, %303 : vector<1x256xf32>
      %c33_i32_140 = arith.constant 33 : i32
      %305 = tpu.dynamic_rotate %13 by %c33_i32_140 dim 1 : vector<1x256xf32>, i32 -> vector<1x256xf32>
      %c58 = arith.constant 58 : index
      %c0_141 = arith.constant 0 : index
      %c0_142 = arith.constant 0 : index
      %306 = vector.load %arg2[%c58, %c0_141, %c0_142] : memref<98x1x256xf32, #tpu.memory_space<vmem>>, vector<1x1x256xf32>
      %307 = vector.shape_cast %306 : vector<1x1x256xf32> to vector<1x256xf32>
      %308 = arith.mulf %307, %305 : vector<1x256xf32>
      %309 = arith.addf %304, %308 : vector<1x256xf32>
      %c32_i32_143 = arith.constant 32 : i32
      %310 = tpu.dynamic_rotate %13 by %c32_i32_143 dim 1 : vector<1x256xf32>, i32 -> vector<1x256xf32>
      %c59 = arith.constant 59 : index
      %c0_144 = arith.constant 0 : index
      %c0_145 = arith.constant 0 : index
      %311 = vector.load %arg2[%c59, %c0_144, %c0_145] : memref<98x1x256xf32, #tpu.memory_space<vmem>>, vector<1x1x256xf32>
      %312 = vector.shape_cast %311 : vector<1x1x256xf32> to vector<1x256xf32>
      %313 = arith.mulf %312, %310 : vector<1x256xf32>
      %314 = arith.addf %309, %313 : vector<1x256xf32>
      %c31_i32_146 = arith.constant 31 : i32
      %315 = tpu.dynamic_rotate %13 by %c31_i32_146 dim 1 : vector<1x256xf32>, i32 -> vector<1x256xf32>
      %c60 = arith.constant 60 : index
      %c0_147 = arith.constant 0 : index
      %c0_148 = arith.constant 0 : index
      %316 = vector.load %arg2[%c60, %c0_147, %c0_148] : memref<98x1x256xf32, #tpu.memory_space<vmem>>, vector<1x1x256xf32>
      %317 = vector.shape_cast %316 : vector<1x1x256xf32> to vector<1x256xf32>
      %318 = arith.mulf %317, %315 : vector<1x256xf32>
      %319 = arith.addf %314, %318 : vector<1x256xf32>
      %c30_i32_149 = arith.constant 30 : i32
      %320 = tpu.dynamic_rotate %13 by %c30_i32_149 dim 1 : vector<1x256xf32>, i32 -> vector<1x256xf32>
      %c61 = arith.constant 61 : index
      %c0_150 = arith.constant 0 : index
      %c0_151 = arith.constant 0 : index
      %321 = vector.load %arg2[%c61, %c0_150, %c0_151] : memref<98x1x256xf32, #tpu.memory_space<vmem>>, vector<1x1x256xf32>
      %322 = vector.shape_cast %321 : vector<1x1x256xf32> to vector<1x256xf32>
      %323 = arith.mulf %322, %320 : vector<1x256xf32>
      %324 = arith.addf %319, %323 : vector<1x256xf32>
      %c29_i32_152 = arith.constant 29 : i32
      %325 = tpu.dynamic_rotate %13 by %c29_i32_152 dim 1 : vector<1x256xf32>, i32 -> vector<1x256xf32>
      %c62 = arith.constant 62 : index
      %c0_153 = arith.constant 0 : index
      %c0_154 = arith.constant 0 : index
      %326 = vector.load %arg2[%c62, %c0_153, %c0_154] : memref<98x1x256xf32, #tpu.memory_space<vmem>>, vector<1x1x256xf32>
      %327 = vector.shape_cast %326 : vector<1x1x256xf32> to vector<1x256xf32>
      %328 = arith.mulf %327, %325 : vector<1x256xf32>
      %329 = arith.addf %324, %328 : vector<1x256xf32>
      %c19_i32_155 = arith.constant 19 : i32
      %330 = tpu.dynamic_rotate %13 by %c19_i32_155 dim 1 : vector<1x256xf32>, i32 -> vector<1x256xf32>
      %c63 = arith.constant 63 : index
      %c0_156 = arith.constant 0 : index
      %c0_157 = arith.constant 0 : index
      %331 = vector.load %arg2[%c63, %c0_156, %c0_157] : memref<98x1x256xf32, #tpu.memory_space<vmem>>, vector<1x1x256xf32>
      %332 = vector.shape_cast %331 : vector<1x1x256xf32> to vector<1x256xf32>
      %333 = arith.mulf %332, %330 : vector<1x256xf32>
      %334 = arith.addf %329, %333 : vector<1x256xf32>
      %c18_i32_158 = arith.constant 18 : i32
      %335 = tpu.dynamic_rotate %13 by %c18_i32_158 dim 1 : vector<1x256xf32>, i32 -> vector<1x256xf32>
      %c64 = arith.constant 64 : index
      %c0_159 = arith.constant 0 : index
      %c0_160 = arith.constant 0 : index
      %336 = vector.load %arg2[%c64, %c0_159, %c0_160] : memref<98x1x256xf32, #tpu.memory_space<vmem>>, vector<1x1x256xf32>
      %337 = vector.shape_cast %336 : vector<1x1x256xf32> to vector<1x256xf32>
      %338 = arith.mulf %337, %335 : vector<1x256xf32>
      %339 = arith.addf %334, %338 : vector<1x256xf32>
      %c17_i32_161 = arith.constant 17 : i32
      %340 = tpu.dynamic_rotate %13 by %c17_i32_161 dim 1 : vector<1x256xf32>, i32 -> vector<1x256xf32>
      %c65 = arith.constant 65 : index
      %c0_162 = arith.constant 0 : index
      %c0_163 = arith.constant 0 : index
      %341 = vector.load %arg2[%c65, %c0_162, %c0_163] : memref<98x1x256xf32, #tpu.memory_space<vmem>>, vector<1x1x256xf32>
      %342 = vector.shape_cast %341 : vector<1x1x256xf32> to vector<1x256xf32>
      %343 = arith.mulf %342, %340 : vector<1x256xf32>
      %344 = arith.addf %339, %343 : vector<1x256xf32>
      %c16_i32_164 = arith.constant 16 : i32
      %345 = tpu.dynamic_rotate %13 by %c16_i32_164 dim 1 : vector<1x256xf32>, i32 -> vector<1x256xf32>
      %c66 = arith.constant 66 : index
      %c0_165 = arith.constant 0 : index
      %c0_166 = arith.constant 0 : index
      %346 = vector.load %arg2[%c66, %c0_165, %c0_166] : memref<98x1x256xf32, #tpu.memory_space<vmem>>, vector<1x1x256xf32>
      %347 = vector.shape_cast %346 : vector<1x1x256xf32> to vector<1x256xf32>
      %348 = arith.mulf %347, %345 : vector<1x256xf32>
      %349 = arith.addf %344, %348 : vector<1x256xf32>
      %c15_i32_167 = arith.constant 15 : i32
      %350 = tpu.dynamic_rotate %13 by %c15_i32_167 dim 1 : vector<1x256xf32>, i32 -> vector<1x256xf32>
      %c67 = arith.constant 67 : index
      %c0_168 = arith.constant 0 : index
      %c0_169 = arith.constant 0 : index
      %351 = vector.load %arg2[%c67, %c0_168, %c0_169] : memref<98x1x256xf32, #tpu.memory_space<vmem>>, vector<1x1x256xf32>
      %352 = vector.shape_cast %351 : vector<1x1x256xf32> to vector<1x256xf32>
      %353 = arith.mulf %352, %350 : vector<1x256xf32>
      %354 = arith.addf %349, %353 : vector<1x256xf32>
      %c14_i32_170 = arith.constant 14 : i32
      %355 = tpu.dynamic_rotate %13 by %c14_i32_170 dim 1 : vector<1x256xf32>, i32 -> vector<1x256xf32>
      %c68 = arith.constant 68 : index
      %c0_171 = arith.constant 0 : index
      %c0_172 = arith.constant 0 : index
      %356 = vector.load %arg2[%c68, %c0_171, %c0_172] : memref<98x1x256xf32, #tpu.memory_space<vmem>>, vector<1x1x256xf32>
      %357 = vector.shape_cast %356 : vector<1x1x256xf32> to vector<1x256xf32>
      %358 = arith.mulf %357, %355 : vector<1x256xf32>
      %359 = arith.addf %354, %358 : vector<1x256xf32>
      %c13_i32_173 = arith.constant 13 : i32
      %360 = tpu.dynamic_rotate %13 by %c13_i32_173 dim 1 : vector<1x256xf32>, i32 -> vector<1x256xf32>
      %c69 = arith.constant 69 : index
      %c0_174 = arith.constant 0 : index
      %c0_175 = arith.constant 0 : index
      %361 = vector.load %arg2[%c69, %c0_174, %c0_175] : memref<98x1x256xf32, #tpu.memory_space<vmem>>, vector<1x1x256xf32>
      %362 = vector.shape_cast %361 : vector<1x1x256xf32> to vector<1x256xf32>
      %363 = arith.mulf %362, %360 : vector<1x256xf32>
      %364 = arith.addf %359, %363 : vector<1x256xf32>
      %c3_i32_176 = arith.constant 3 : i32
      %365 = tpu.dynamic_rotate %13 by %c3_i32_176 dim 1 : vector<1x256xf32>, i32 -> vector<1x256xf32>
      %c70 = arith.constant 70 : index
      %c0_177 = arith.constant 0 : index
      %c0_178 = arith.constant 0 : index
      %366 = vector.load %arg2[%c70, %c0_177, %c0_178] : memref<98x1x256xf32, #tpu.memory_space<vmem>>, vector<1x1x256xf32>
      %367 = vector.shape_cast %366 : vector<1x1x256xf32> to vector<1x256xf32>
      %368 = arith.mulf %367, %365 : vector<1x256xf32>
      %369 = arith.addf %364, %368 : vector<1x256xf32>
      %c2_i32_179 = arith.constant 2 : i32
      %370 = tpu.dynamic_rotate %13 by %c2_i32_179 dim 1 : vector<1x256xf32>, i32 -> vector<1x256xf32>
      %c71 = arith.constant 71 : index
      %c0_180 = arith.constant 0 : index
      %c0_181 = arith.constant 0 : index
      %371 = vector.load %arg2[%c71, %c0_180, %c0_181] : memref<98x1x256xf32, #tpu.memory_space<vmem>>, vector<1x1x256xf32>
      %372 = vector.shape_cast %371 : vector<1x1x256xf32> to vector<1x256xf32>
      %373 = arith.mulf %372, %370 : vector<1x256xf32>
      %374 = arith.addf %369, %373 : vector<1x256xf32>
      %c1_i32_182 = arith.constant 1 : i32
      %375 = tpu.dynamic_rotate %13 by %c1_i32_182 dim 1 : vector<1x256xf32>, i32 -> vector<1x256xf32>
      %c72 = arith.constant 72 : index
      %c0_183 = arith.constant 0 : index
      %c0_184 = arith.constant 0 : index
      %376 = vector.load %arg2[%c72, %c0_183, %c0_184] : memref<98x1x256xf32, #tpu.memory_space<vmem>>, vector<1x1x256xf32>
      %377 = vector.shape_cast %376 : vector<1x1x256xf32> to vector<1x256xf32>
      %378 = arith.mulf %377, %375 : vector<1x256xf32>
      %379 = arith.addf %374, %378 : vector<1x256xf32>
      %c73 = arith.constant 73 : index
      %c0_185 = arith.constant 0 : index
      %c0_186 = arith.constant 0 : index
      %380 = vector.load %arg2[%c73, %c0_185, %c0_186] : memref<98x1x256xf32, #tpu.memory_space<vmem>>, vector<1x1x256xf32>
      %381 = vector.shape_cast %380 : vector<1x1x256xf32> to vector<1x256xf32>
      %382 = arith.mulf %381, %13 : vector<1x256xf32>
      %383 = arith.addf %379, %382 : vector<1x256xf32>
      %c255_i32_187 = arith.constant 255 : i32
      %384 = tpu.dynamic_rotate %13 by %c255_i32_187 dim 1 : vector<1x256xf32>, i32 -> vector<1x256xf32>
      %c74 = arith.constant 74 : index
      %c0_188 = arith.constant 0 : index
      %c0_189 = arith.constant 0 : index
      %385 = vector.load %arg2[%c74, %c0_188, %c0_189] : memref<98x1x256xf32, #tpu.memory_space<vmem>>, vector<1x1x256xf32>
      %386 = vector.shape_cast %385 : vector<1x1x256xf32> to vector<1x256xf32>
      %387 = arith.mulf %386, %384 : vector<1x256xf32>
      %388 = arith.addf %383, %387 : vector<1x256xf32>
      %c254_i32_190 = arith.constant 254 : i32
      %389 = tpu.dynamic_rotate %13 by %c254_i32_190 dim 1 : vector<1x256xf32>, i32 -> vector<1x256xf32>
      %c75 = arith.constant 75 : index
      %c0_191 = arith.constant 0 : index
      %c0_192 = arith.constant 0 : index
      %390 = vector.load %arg2[%c75, %c0_191, %c0_192] : memref<98x1x256xf32, #tpu.memory_space<vmem>>, vector<1x1x256xf32>
      %391 = vector.shape_cast %390 : vector<1x1x256xf32> to vector<1x256xf32>
      %392 = arith.mulf %391, %389 : vector<1x256xf32>
      %393 = arith.addf %388, %392 : vector<1x256xf32>
      %c253_i32_193 = arith.constant 253 : i32
      %394 = tpu.dynamic_rotate %13 by %c253_i32_193 dim 1 : vector<1x256xf32>, i32 -> vector<1x256xf32>
      %c76 = arith.constant 76 : index
      %c0_194 = arith.constant 0 : index
      %c0_195 = arith.constant 0 : index
      %395 = vector.load %arg2[%c76, %c0_194, %c0_195] : memref<98x1x256xf32, #tpu.memory_space<vmem>>, vector<1x1x256xf32>
      %396 = vector.shape_cast %395 : vector<1x1x256xf32> to vector<1x256xf32>
      %397 = arith.mulf %396, %394 : vector<1x256xf32>
      %398 = arith.addf %393, %397 : vector<1x256xf32>
      %c243_i32_196 = arith.constant 243 : i32
      %399 = tpu.dynamic_rotate %13 by %c243_i32_196 dim 1 : vector<1x256xf32>, i32 -> vector<1x256xf32>
      %c77 = arith.constant 77 : index
      %c0_197 = arith.constant 0 : index
      %c0_198 = arith.constant 0 : index
      %400 = vector.load %arg2[%c77, %c0_197, %c0_198] : memref<98x1x256xf32, #tpu.memory_space<vmem>>, vector<1x1x256xf32>
      %401 = vector.shape_cast %400 : vector<1x1x256xf32> to vector<1x256xf32>
      %402 = arith.mulf %401, %399 : vector<1x256xf32>
      %403 = arith.addf %398, %402 : vector<1x256xf32>
      %c242_i32_199 = arith.constant 242 : i32
      %404 = tpu.dynamic_rotate %13 by %c242_i32_199 dim 1 : vector<1x256xf32>, i32 -> vector<1x256xf32>
      %c78 = arith.constant 78 : index
      %c0_200 = arith.constant 0 : index
      %c0_201 = arith.constant 0 : index
      %405 = vector.load %arg2[%c78, %c0_200, %c0_201] : memref<98x1x256xf32, #tpu.memory_space<vmem>>, vector<1x1x256xf32>
      %406 = vector.shape_cast %405 : vector<1x1x256xf32> to vector<1x256xf32>
      %407 = arith.mulf %406, %404 : vector<1x256xf32>
      %408 = arith.addf %403, %407 : vector<1x256xf32>
      %c241_i32_202 = arith.constant 241 : i32
      %409 = tpu.dynamic_rotate %13 by %c241_i32_202 dim 1 : vector<1x256xf32>, i32 -> vector<1x256xf32>
      %c79 = arith.constant 79 : index
      %c0_203 = arith.constant 0 : index
      %c0_204 = arith.constant 0 : index
      %410 = vector.load %arg2[%c79, %c0_203, %c0_204] : memref<98x1x256xf32, #tpu.memory_space<vmem>>, vector<1x1x256xf32>
      %411 = vector.shape_cast %410 : vector<1x1x256xf32> to vector<1x256xf32>
      %412 = arith.mulf %411, %409 : vector<1x256xf32>
      %413 = arith.addf %408, %412 : vector<1x256xf32>
      %c240_i32_205 = arith.constant 240 : i32
      %414 = tpu.dynamic_rotate %13 by %c240_i32_205 dim 1 : vector<1x256xf32>, i32 -> vector<1x256xf32>
      %c80 = arith.constant 80 : index
      %c0_206 = arith.constant 0 : index
      %c0_207 = arith.constant 0 : index
      %415 = vector.load %arg2[%c80, %c0_206, %c0_207] : memref<98x1x256xf32, #tpu.memory_space<vmem>>, vector<1x1x256xf32>
      %416 = vector.shape_cast %415 : vector<1x1x256xf32> to vector<1x256xf32>
      %417 = arith.mulf %416, %414 : vector<1x256xf32>
      %418 = arith.addf %413, %417 : vector<1x256xf32>
      %c239_i32_208 = arith.constant 239 : i32
      %419 = tpu.dynamic_rotate %13 by %c239_i32_208 dim 1 : vector<1x256xf32>, i32 -> vector<1x256xf32>
      %c81 = arith.constant 81 : index
      %c0_209 = arith.constant 0 : index
      %c0_210 = arith.constant 0 : index
      %420 = vector.load %arg2[%c81, %c0_209, %c0_210] : memref<98x1x256xf32, #tpu.memory_space<vmem>>, vector<1x1x256xf32>
      %421 = vector.shape_cast %420 : vector<1x1x256xf32> to vector<1x256xf32>
      %422 = arith.mulf %421, %419 : vector<1x256xf32>
      %423 = arith.addf %418, %422 : vector<1x256xf32>
      %c238_i32_211 = arith.constant 238 : i32
      %424 = tpu.dynamic_rotate %13 by %c238_i32_211 dim 1 : vector<1x256xf32>, i32 -> vector<1x256xf32>
      %c82 = arith.constant 82 : index
      %c0_212 = arith.constant 0 : index
      %c0_213 = arith.constant 0 : index
      %425 = vector.load %arg2[%c82, %c0_212, %c0_213] : memref<98x1x256xf32, #tpu.memory_space<vmem>>, vector<1x1x256xf32>
      %426 = vector.shape_cast %425 : vector<1x1x256xf32> to vector<1x256xf32>
      %427 = arith.mulf %426, %424 : vector<1x256xf32>
      %428 = arith.addf %423, %427 : vector<1x256xf32>
      %c237_i32_214 = arith.constant 237 : i32
      %429 = tpu.dynamic_rotate %13 by %c237_i32_214 dim 1 : vector<1x256xf32>, i32 -> vector<1x256xf32>
      %c83 = arith.constant 83 : index
      %c0_215 = arith.constant 0 : index
      %c0_216 = arith.constant 0 : index
      %430 = vector.load %arg2[%c83, %c0_215, %c0_216] : memref<98x1x256xf32, #tpu.memory_space<vmem>>, vector<1x1x256xf32>
      %431 = vector.shape_cast %430 : vector<1x1x256xf32> to vector<1x256xf32>
      %432 = arith.mulf %431, %429 : vector<1x256xf32>
      %433 = arith.addf %428, %432 : vector<1x256xf32>
      %c227_i32_217 = arith.constant 227 : i32
      %434 = tpu.dynamic_rotate %13 by %c227_i32_217 dim 1 : vector<1x256xf32>, i32 -> vector<1x256xf32>
      %c84 = arith.constant 84 : index
      %c0_218 = arith.constant 0 : index
      %c0_219 = arith.constant 0 : index
      %435 = vector.load %arg2[%c84, %c0_218, %c0_219] : memref<98x1x256xf32, #tpu.memory_space<vmem>>, vector<1x1x256xf32>
      %436 = vector.shape_cast %435 : vector<1x1x256xf32> to vector<1x256xf32>
      %437 = arith.mulf %436, %434 : vector<1x256xf32>
      %438 = arith.addf %433, %437 : vector<1x256xf32>
      %c226_i32_220 = arith.constant 226 : i32
      %439 = tpu.dynamic_rotate %13 by %c226_i32_220 dim 1 : vector<1x256xf32>, i32 -> vector<1x256xf32>
      %c85 = arith.constant 85 : index
      %c0_221 = arith.constant 0 : index
      %c0_222 = arith.constant 0 : index
      %440 = vector.load %arg2[%c85, %c0_221, %c0_222] : memref<98x1x256xf32, #tpu.memory_space<vmem>>, vector<1x1x256xf32>
      %441 = vector.shape_cast %440 : vector<1x1x256xf32> to vector<1x256xf32>
      %442 = arith.mulf %441, %439 : vector<1x256xf32>
      %443 = arith.addf %438, %442 : vector<1x256xf32>
      %c225_i32_223 = arith.constant 225 : i32
      %444 = tpu.dynamic_rotate %13 by %c225_i32_223 dim 1 : vector<1x256xf32>, i32 -> vector<1x256xf32>
      %c86 = arith.constant 86 : index
      %c0_224 = arith.constant 0 : index
      %c0_225 = arith.constant 0 : index
      %445 = vector.load %arg2[%c86, %c0_224, %c0_225] : memref<98x1x256xf32, #tpu.memory_space<vmem>>, vector<1x1x256xf32>
      %446 = vector.shape_cast %445 : vector<1x1x256xf32> to vector<1x256xf32>
      %447 = arith.mulf %446, %444 : vector<1x256xf32>
      %448 = arith.addf %443, %447 : vector<1x256xf32>
      %c224_i32_226 = arith.constant 224 : i32
      %449 = tpu.dynamic_rotate %13 by %c224_i32_226 dim 1 : vector<1x256xf32>, i32 -> vector<1x256xf32>
      %c87 = arith.constant 87 : index
      %c0_227 = arith.constant 0 : index
      %c0_228 = arith.constant 0 : index
      %450 = vector.load %arg2[%c87, %c0_227, %c0_228] : memref<98x1x256xf32, #tpu.memory_space<vmem>>, vector<1x1x256xf32>
      %451 = vector.shape_cast %450 : vector<1x1x256xf32> to vector<1x256xf32>
      %452 = arith.mulf %451, %449 : vector<1x256xf32>
      %453 = arith.addf %448, %452 : vector<1x256xf32>
      %c223_i32_229 = arith.constant 223 : i32
      %454 = tpu.dynamic_rotate %13 by %c223_i32_229 dim 1 : vector<1x256xf32>, i32 -> vector<1x256xf32>
      %c88 = arith.constant 88 : index
      %c0_230 = arith.constant 0 : index
      %c0_231 = arith.constant 0 : index
      %455 = vector.load %arg2[%c88, %c0_230, %c0_231] : memref<98x1x256xf32, #tpu.memory_space<vmem>>, vector<1x1x256xf32>
      %456 = vector.shape_cast %455 : vector<1x1x256xf32> to vector<1x256xf32>
      %457 = arith.mulf %456, %454 : vector<1x256xf32>
      %458 = arith.addf %453, %457 : vector<1x256xf32>
      %c222_i32_232 = arith.constant 222 : i32
      %459 = tpu.dynamic_rotate %13 by %c222_i32_232 dim 1 : vector<1x256xf32>, i32 -> vector<1x256xf32>
      %c89 = arith.constant 89 : index
      %c0_233 = arith.constant 0 : index
      %c0_234 = arith.constant 0 : index
      %460 = vector.load %arg2[%c89, %c0_233, %c0_234] : memref<98x1x256xf32, #tpu.memory_space<vmem>>, vector<1x1x256xf32>
      %461 = vector.shape_cast %460 : vector<1x1x256xf32> to vector<1x256xf32>
      %462 = arith.mulf %461, %459 : vector<1x256xf32>
      %463 = arith.addf %458, %462 : vector<1x256xf32>
      %c221_i32_235 = arith.constant 221 : i32
      %464 = tpu.dynamic_rotate %13 by %c221_i32_235 dim 1 : vector<1x256xf32>, i32 -> vector<1x256xf32>
      %c90 = arith.constant 90 : index
      %c0_236 = arith.constant 0 : index
      %c0_237 = arith.constant 0 : index
      %465 = vector.load %arg2[%c90, %c0_236, %c0_237] : memref<98x1x256xf32, #tpu.memory_space<vmem>>, vector<1x1x256xf32>
      %466 = vector.shape_cast %465 : vector<1x1x256xf32> to vector<1x256xf32>
      %467 = arith.mulf %466, %464 : vector<1x256xf32>
      %468 = arith.addf %463, %467 : vector<1x256xf32>
      %c211_i32_238 = arith.constant 211 : i32
      %469 = tpu.dynamic_rotate %13 by %c211_i32_238 dim 1 : vector<1x256xf32>, i32 -> vector<1x256xf32>
      %c91 = arith.constant 91 : index
      %c0_239 = arith.constant 0 : index
      %c0_240 = arith.constant 0 : index
      %470 = vector.load %arg2[%c91, %c0_239, %c0_240] : memref<98x1x256xf32, #tpu.memory_space<vmem>>, vector<1x1x256xf32>
      %471 = vector.shape_cast %470 : vector<1x1x256xf32> to vector<1x256xf32>
      %472 = arith.mulf %471, %469 : vector<1x256xf32>
      %473 = arith.addf %468, %472 : vector<1x256xf32>
      %c210_i32_241 = arith.constant 210 : i32
      %474 = tpu.dynamic_rotate %13 by %c210_i32_241 dim 1 : vector<1x256xf32>, i32 -> vector<1x256xf32>
      %c92 = arith.constant 92 : index
      %c0_242 = arith.constant 0 : index
      %c0_243 = arith.constant 0 : index
      %475 = vector.load %arg2[%c92, %c0_242, %c0_243] : memref<98x1x256xf32, #tpu.memory_space<vmem>>, vector<1x1x256xf32>
      %476 = vector.shape_cast %475 : vector<1x1x256xf32> to vector<1x256xf32>
      %477 = arith.mulf %476, %474 : vector<1x256xf32>
      %478 = arith.addf %473, %477 : vector<1x256xf32>
      %c209_i32_244 = arith.constant 209 : i32
      %479 = tpu.dynamic_rotate %13 by %c209_i32_244 dim 1 : vector<1x256xf32>, i32 -> vector<1x256xf32>
      %c93 = arith.constant 93 : index
      %c0_245 = arith.constant 0 : index
      %c0_246 = arith.constant 0 : index
      %480 = vector.load %arg2[%c93, %c0_245, %c0_246] : memref<98x1x256xf32, #tpu.memory_space<vmem>>, vector<1x1x256xf32>
      %481 = vector.shape_cast %480 : vector<1x1x256xf32> to vector<1x256xf32>
      %482 = arith.mulf %481, %479 : vector<1x256xf32>
      %483 = arith.addf %478, %482 : vector<1x256xf32>
      %c208_i32_247 = arith.constant 208 : i32
      %484 = tpu.dynamic_rotate %13 by %c208_i32_247 dim 1 : vector<1x256xf32>, i32 -> vector<1x256xf32>
      %c94 = arith.constant 94 : index
      %c0_248 = arith.constant 0 : index
      %c0_249 = arith.constant 0 : index
      %485 = vector.load %arg2[%c94, %c0_248, %c0_249] : memref<98x1x256xf32, #tpu.memory_space<vmem>>, vector<1x1x256xf32>
      %486 = vector.shape_cast %485 : vector<1x1x256xf32> to vector<1x256xf32>
      %487 = arith.mulf %486, %484 : vector<1x256xf32>
      %488 = arith.addf %483, %487 : vector<1x256xf32>
      %c207_i32_250 = arith.constant 207 : i32
      %489 = tpu.dynamic_rotate %13 by %c207_i32_250 dim 1 : vector<1x256xf32>, i32 -> vector<1x256xf32>
      %c95 = arith.constant 95 : index
      %c0_251 = arith.constant 0 : index
      %c0_252 = arith.constant 0 : index
      %490 = vector.load %arg2[%c95, %c0_251, %c0_252] : memref<98x1x256xf32, #tpu.memory_space<vmem>>, vector<1x1x256xf32>
      %491 = vector.shape_cast %490 : vector<1x1x256xf32> to vector<1x256xf32>
      %492 = arith.mulf %491, %489 : vector<1x256xf32>
      %493 = arith.addf %488, %492 : vector<1x256xf32>
      %c206_i32_253 = arith.constant 206 : i32
      %494 = tpu.dynamic_rotate %13 by %c206_i32_253 dim 1 : vector<1x256xf32>, i32 -> vector<1x256xf32>
      %c96 = arith.constant 96 : index
      %c0_254 = arith.constant 0 : index
      %c0_255 = arith.constant 0 : index
      %495 = vector.load %arg2[%c96, %c0_254, %c0_255] : memref<98x1x256xf32, #tpu.memory_space<vmem>>, vector<1x1x256xf32>
      %496 = vector.shape_cast %495 : vector<1x1x256xf32> to vector<1x256xf32>
      %497 = arith.mulf %496, %494 : vector<1x256xf32>
      %498 = arith.addf %493, %497 : vector<1x256xf32>
      %c205_i32_256 = arith.constant 205 : i32
      %499 = tpu.dynamic_rotate %13 by %c205_i32_256 dim 1 : vector<1x256xf32>, i32 -> vector<1x256xf32>
      %c97 = arith.constant 97 : index
      %c0_257 = arith.constant 0 : index
      %c0_258 = arith.constant 0 : index
      %500 = vector.load %arg2[%c97, %c0_257, %c0_258] : memref<98x1x256xf32, #tpu.memory_space<vmem>>, vector<1x1x256xf32>
      %501 = vector.shape_cast %500 : vector<1x1x256xf32> to vector<1x256xf32>
      %502 = arith.mulf %501, %499 : vector<1x256xf32>
      %503 = arith.addf %498, %502 : vector<1x256xf32>
      %504 = arith.addf %258, %503 : vector<1x256xf32>
      %505 = arith.negf %504 : vector<1x256xf32>
      %506 = math.exp %505 : vector<1x256xf32>
      %cst_259 = arith.constant 1.000000e+00 : f32
      %507 = vector.broadcast %cst_259 : f32 to vector<1x256xf32>
      %508 = arith.addf %507, %506 : vector<1x256xf32>
      %509 = arith.divf %507, %508 : vector<1x256xf32>
      %c0_260 = arith.constant 0 : index
      %c0_261 = arith.constant 0 : index
      %c0_262 = arith.constant 0 : index
      %510 = vector.load %arg4[%c0_260, %c0_261, %c0_262] : memref<1x1x256xf32, #tpu.memory_space<vmem>>, vector<1x1x256xf32>
      %511 = vector.shape_cast %510 : vector<1x1x256xf32> to vector<1x256xf32>
      %512 = vector.shape_cast %509 : vector<1x256xf32> to vector<1x1x256xf32>
      tpu.vector_store %arg4[%c0_260, %c0_261, %c0_262], %512 {strides = array<i32>} : memref<1x1x256xf32, #tpu.memory_space<vmem>>, vector<1x1x256xf32>,
    } else {
    }
    return
  }
  func.func @transform_0(%arg0: i32, %arg1: i32) -> (i32, i32, i32) {
    %c0_i32 = arith.constant 0 : i32
    %c0_i32_0 = arith.constant 0 : i32
    %c0_i32_1 = arith.constant 0 : i32
    %c0_i32_2 = arith.constant 0 : i32
    return %c0_i32, %c0_i32_0, %c0_i32_1 : i32, i32, i32
  }
  func.func @transform_1(%arg0: i32, %arg1: i32) -> (i32, i32, i32) {
    %c0_i32 = arith.constant 0 : i32
    %c0_i32_0 = arith.constant 0 : i32
    return %arg0, %arg1, %c0_i32 : i32, i32, i32
  }
  func.func @transform_2(%arg0: i32, %arg1: i32) -> (i32, i32, i32) {
    %c0_i32 = arith.constant 0 : i32
    %c0_i32_0 = arith.constant 0 : i32
    %c0_i32_1 = arith.constant 0 : i32
    return %arg0, %c0_i32, %c0_i32_0 : i32, i32, i32
  }
}

</mosaic_0001>

<llo_original>
// kernel: tpu_custom_call.1
$region0: #{tpu_custom_call.1}
  #allocation0 [shape = 'u32[]', space=smem, size = 0x4, offset = 0x4, fixed_abs, tag = 'smem constant byte address 0x4 - core index']
  #allocation1 [shape = 'u32[144,128]{1,0:T(1,128)}', space=vmem, size = 0x12000, scoped, tag = 'internal scratch']
  #allocation2 [shape = 'f32[1,256]{1,0:T(1,128)}', space=vmem, size = 0x400, scoped, tag = 'scratch operand']
  #allocation3 [shape = 'f32[1,256]{1,0:T(1,128)}', space=vmem, size = 0x400, scoped, tag = 'scratch operand']
  %s0 = inlined_call_operand.hbm [shape: f32[98,1,256], index: 0, kind: input, shape index: {}]
  %s1 = inlined_call_operand.hbm [shape: f32[2,4,256], index: 1, kind: input, shape index: {}]
  %s2 = inlined_call_operand.hbm [shape: f32[2,1,256], index: 2, kind: output, shape index: {}]
  %s3 = sld [smem:[#allocation0]]
  $region61: #{tpu_custom_call.1} parent=0
    _
  %s5 = ssub.s32 1, %s3
  %s6 = scalar_select 0, %s5, %s3
  $region1: #{tpu_custom_call.1} parent=0
    #allocation4 [shape = 'u8[100352]{0}', space=vmem, size = 0x18800, scoped, tag = 'input window, operand 0, single buffered']
    #allocation5 [shape = 's32[2]{0}', space=sflag, size = 0x8, scoped, tag = 'scoped memory for tpu_custom_call.1']
    #allocation6 [shape = 's32[2]{0}', space=sflag, size = 0x8, scoped, tag = 'scoped memory for tpu_custom_call.1']
    #allocation7 [shape = 'u8[8192]{0}', space=vmem, size = 0x2000, scoped, tag = 'input window, operand 1']
    #allocation8 [shape = 's32[2]{0}', space=sflag, size = 0x8, scoped, tag = 'scoped memory for tpu_custom_call.1']
    #allocation9 [shape = 'u8[2048]{0}', space=vmem, size = 0x800, scoped, tag = 'output window, operand 0']
    %7 = vsyncpa [#allocation5], 0
    %8 = vsyncpa [#allocation8], 0
    %s9 = scalar_lea.sflag [#allocation8], 1
    %10 = vsyncpa %s9, 0
    %11 = vsyncpa [#allocation6], 0
    %s12 = scalar_lea.sflag [#allocation6], 1
    %13 = vsyncpa %s12, 0
    loop: start=0, step=1, limit=4
    $region2: #{tpu_custom_call.1} parent=1 // loop_pre_header
      _
    $region3: #{tpu_custom_call.1} parent=1 // loop_header
      %s15 = sphi 0, %s19
      %p16 = scmp.ge.s32.totalorder %s15, 4
      %s22 = sphi 0, %s34
      %s23 = sphi 0, %s30
      %s24 = sphi 0, %s22
      %s25 = sphi 0, %s23
      %s26 = sphi 0, %s24
      %s27 = sphi 0, %s25
      %s35 = sphi 0, %s35
      %s37 = sphi 0, %s35
      %s38 = sphi 0, %s37
      %s52 = sphi 0, %s38
      %s60 = sphi 0, %s62
      %s63 = sphi 0, %s60
      %s64 = sphi 0, %s63
      %s80 = sphi 0, %s64
      %s86 = sphi 0, %s88
      %s89 = sphi 0, %s86
      %s90 = sphi 0, %s89
      %s106 = sphi 0, %s90
    $region4: #{tpu_custom_call.1} parent=1 // loop_header_branch
      %18 = sbr.rel (%p16) target = $region8
    $region5: #{tpu_custom_call.1} parent=1 // loop_body
      %s20 = ssub.s32 %s15, 1
      %s21 = ssub.s32 %s15, 2
      %s28 = sadd.s32 1, %s23
      %p29 = scmp.ge.s32.totalorder %s28, 1
      %s30 = scalar_select %p29, 0, %s28
      %s31 = sadd.s32 1, %s22
      %s32 = scalar_select %p29, %s31, %s22
      %p33 = scmp.ge.s32.totalorder %s32, 2
      %s34 = scalar_select %p33, 0, %s32
      %s36 = sadd.s32 %s35, 1
      %p39 = scmp.eq.s32.totalorder %s15, 1
      %p40 = scmp.ne.s32.totalorder %s35, %s37
      %p41 = scmp.eq.s32.totalorder %s15, 0
      %p42 = por %p40, %p41
      %p43 = scmp.ne.s32.totalorder %s35, %s37
      %p44 = scmp.eq.s32.totalorder %s20, 1
      %p45 = por %p43, %p44
      %p46 = scmp.ne.s32.totalorder %s37, %s38
      %p47 = scmp.eq.s32.totalorder %s20, 0
      %p48 = por %p46, %p47
      %p49 = scmp.ne.s32.totalorder %s37, %s38
      %p50 = scmp.eq.s32.totalorder %s21, 1
      %p51 = por %p49, %p50
      %p53 = scmp.ne.s32.totalorder %s38, %s52
      %p54 = scmp.eq.s32.totalorder %s21, 0
      %p55 = por %p53, %p54
      %s56 = ssub.s32 %s22, %s34
      %s57 = ssub.s32 %s23, %s30
      %s58 = sor.u32 %s56, %s57
      %p59 = scmp.eq.s32.totalorder %s58, 0
      %s61 = sadd.s32 %s60, 1
      %s62 = scalar_select %p59, %s60, %s61
      %p65 = pneg %p59
      %p66 = scmp.eq.s32.totalorder %s15, 1
      %p67 = por %p65, %p66
      %p68 = scmp.ne.s32.totalorder %s60, %s63
      %p69 = scmp.eq.s32.totalorder %s15, 0
      %p70 = por %p68, %p69
      %p71 = scmp.ne.s32.totalorder %s60, %s63
      %p72 = scmp.eq.s32.totalorder %s20, 1
      %p73 = por %p71, %p72
      %p74 = scmp.ne.s32.totalorder %s63, %s64
      %p75 = scmp.eq.s32.totalorder %s20, 0
      %p76 = por %p74, %p75
      %p77 = scmp.ne.s32.totalorder %s63, %s64
      %p78 = scmp.eq.s32.totalorder %s21, 1
      %p79 = por %p77, %p78
      %p81 = scmp.ne.s32.totalorder %s64, %s80
      %p82 = scmp.eq.s32.totalorder %s21, 0
      %p83 = por %p81, %p82
      %s84 = ssub.s32 %s22, %s34
      %p85 = scmp.eq.s32.totalorder %s84, 0
      %s87 = sadd.s32 %s86, 1
      %s88 = scalar_select %p85, %s86, %s87
      %p91 = pneg %p85
      %p92 = scmp.eq.s32.totalorder %s15, 1
      %p93 = por %p91, %p92
      %p94 = scmp.ne.s32.totalorder %s86, %s89
      %p95 = scmp.eq.s32.totalorder %s15, 0
      %p96 = por %p94, %p95
      %p97 = scmp.ne.s32.totalorder %s86, %s89
      %p98 = scmp.eq.s32.totalorder %s20, 1
      %p99 = por %p97, %p98
      %p100 = scmp.ne.s32.totalorder %s89, %s90
      %p101 = scmp.eq.s32.totalorder %s20, 0
      %p102 = por %p100, %p101
      %p103 = scmp.ne.s32.totalorder %s89, %s90
      %p104 = scmp.eq.s32.totalorder %s21, 1
      %p105 = por %p103, %p104
      %p107 = scmp.ne.s32.totalorder %s90, %s106
      %p108 = scmp.eq.s32.totalorder %s21, 0
      %p109 = por %p107, %p108
      %p110 = scmp.le.s32.totalorder 1, %s15
      %p111 = scmp.lt.s32.totalorder %s15, 3
      %p112 = pnand %p110, %p111
      %p113 = pneg %p112
      // Predicated region
      $region9: #{tpu_custom_call.1} parent=5 // pred_check
        _
      $region10: #{tpu_custom_call.1} parent=5 // pred_check_branch
        %115 = sbr.rel (%p112) target = $region12
      $region11: #{tpu_custom_call.1} parent=5 // pred_region
        %s116 = ssub.s32 %s15, 1
        // Predicated region
        $region13: #{tpu_custom_call.1} parent=11 // pred_check
          %p117 = pneg %p48
        $region14: #{tpu_custom_call.1} parent=11 // pred_check_branch
          %119 = sbr.rel (%p117) target = $region16
        $region15: #{tpu_custom_call.1} parent=11 // pred_region
          %s121 = ssub.s32 3136, 3136
          %122 = vsyncadd [#allocation5], %s121
          %s123 = sshll.u32 [#allocation4], 4
          %s124 = int_to_ptr.vmem [resolvable:$true] %s123
          %129 = dma.hbm_to_vmem [thread:$0]  %s0, 3136, %s124, [#allocation5], 32, 32, 2
        $region16: #{tpu_custom_call.1} parent=11 // pred_fallthru
          _
      $region12: #{tpu_custom_call.1} parent=5 // pred_fallthru
        _
      %p130 = scmp.lt.s32.totalorder %s15, 2
      // Predicated region
      $region17: #{tpu_custom_call.1} parent=5 // pred_check
        %p131 = pneg %p130
      $region18: #{tpu_custom_call.1} parent=5 // pred_check_branch
        %133 = sbr.rel (%p131) target = $region20
      $region19: #{tpu_custom_call.1} parent=5 // pred_region
        // Predicated region
        $region21: #{tpu_custom_call.1} parent=19 // pred_check
          %p134 = pneg %p70
        $region22: #{tpu_custom_call.1} parent=19 // pred_check_branch
          %136 = sbr.rel (%p134) target = $region24
        $region23: #{tpu_custom_call.1} parent=19 // pred_region
          %s137 = sand.u32 %s60, 1
          %s138 = scalar_lea.sflag [#allocation8], %s137
          %s139 = sand.u32 %s60, 1
          %s140 = smul.addr %s139, 8
          %s141 = scalar_lea.vmem [#allocation7], %s140
          %s143 = ssub.s32 128, 128
          %144 = vsyncadd %s138, %s143
          %s145 = smul.addr %s23, 2
          %s146 = smul.addr %s22, 2
          %s147 = sadd.s32 %s145, %s146
          %s148 = smul.addr %s147, 64
          %s149 = scalar_lea.hbm %s1, %s148
          %s151 = sshll.u32 %s141, 4
          %s152 = int_to_ptr.vmem [resolvable:$true] %s151
          %154 = dma.hbm_to_vmem [thread:$0]  %s149, 128, %s152, %s138
        $region24: #{tpu_custom_call.1} parent=19 // pred_fallthru
          _
      $region20: #{tpu_custom_call.1} parent=5 // pred_fallthru
        _
      %p155 = scmp.le.s32.totalorder 1, %s15
      %p156 = scmp.lt.s32.totalorder %s15, 3
      %p157 = pnand %p155, %p156
      %p158 = pneg %p157
      // Predicated region
      $region25: #{tpu_custom_call.1} parent=5 // pred_check
        _
      $region26: #{tpu_custom_call.1} parent=5 // pred_check_branch
        %160 = sbr.rel (%p157) target = $region28
      $region27: #{tpu_custom_call.1} parent=5 // pred_region
        %s161 = ssub.s32 %s15, 1
        // Predicated region
        $region29: #{tpu_custom_call.1} parent=27 // pred_check
          %p162 = pneg %p48
        $region30: #{tpu_custom_call.1} parent=27 // pred_check_branch
          %164 = sbr.rel (%p162) target = $region32
        $region31: #{tpu_custom_call.1} parent=27 // pred_region
          %165 = dma.done [#allocation5], 3136
        $region32: #{tpu_custom_call.1} parent=27 // pred_fallthru
          _
        %s166 = sand.u32 %s63, 1
        %s167 = scalar_lea.sflag [#allocation8], %s166
        %s168 = sand.u32 %s63, 1
        %s169 = smul.addr %s168, 8
        %s170 = scalar_lea.vmem [#allocation7], %s169
        // Predicated region
        $region33: #{tpu_custom_call.1} parent=27 // pred_check
          %p171 = pneg %p76
        $region34: #{tpu_custom_call.1} parent=27 // pred_check_branch
          %173 = sbr.rel (%p171) target = $region36
        $region35: #{tpu_custom_call.1} parent=27 // pred_region
          %174 = dma.done %s167, 128
        $region36: #{tpu_custom_call.1} parent=27 // pred_fallthru
          _
        %p175 = pneg %p48
        %p176 = pneg %p45
        %s177 = sand.u32 %s63, 1
        %s178 = scalar_lea.sflag [#allocation8], %s177
        %s179 = sand.u32 %s63, 1
        %s180 = smul.addr %s179, 8
        %s181 = scalar_lea.vmem [#allocation7], %s180
        %p182 = pneg %p76
        %p183 = pneg %p73
        %p184 = pneg %p102
        %p185 = pneg %p99
        %s186 = sand.u32 %s89, 1
        %s187 = scalar_lea.sflag [#allocation6], %s186
        %s188 = sand.u32 %s89, 1
        %s189 = smul.addr %s188, 2
        %s190 = scalar_lea.vmem [#allocation9], %s189
        %v191 = vld [vmem:[%s170] sm:$0xff]
        %v193 = vcombine.high %v191, %v191
        %vm195 = vcmask 1043456
        %v196 = vsel %vm195, %v191, 0.0
        %v197 = vrot.slane %v196, 4
        %v198 = vadd.f32 %v196, %v197
        %v199 = vrot.slane %v198, 2
        %v200 = vadd.f32 %v198, %v199
        %v201 = vrot.slane %v200, 1
        %v202 = vadd.f32 %v200, %v201
        %v203 = vsel %vm195, %v193, 0.0
        %v204 = vrot.slane %v203, 4
        %v205 = vadd.f32 %v203, %v204
        %v206 = vrot.slane %v205, 2
        %v207 = vadd.f32 %v205, %v206
        %v208 = vrot.slane %v207, 1
        %v209 = vadd.f32 %v207, %v208
        %v210 = vsel %vm195, %v191, -inf
        %v211 = vrot.slane %v210, 4
        %v212 = vmax.f32 %v210, %v211
        %v213 = vrot.slane %v212, 2
        %v214 = vmax.f32 %v212, %v213
        %v215 = vrot.slane %v214, 1
        %v216 = vmax.f32 %v214, %v215
        %v217 = vsel %vm195, %v193, -inf
        %v218 = vrot.slane %v217, 4
        %v219 = vmax.f32 %v217, %v218
        %v220 = vrot.slane %v219, 2
        %v221 = vmax.f32 %v219, %v220
        %v222 = vrot.slane %v221, 1
        %v223 = vmax.f32 %v221, %v222
        %p224 = scmp.eq.s32.totalorder %s25, 0
        // Predicated region
        $region37: #{tpu_custom_call.1} parent=27 // pred_check
          %p225 = pneg %p224
        $region38: #{tpu_custom_call.1} parent=27 // pred_check_branch
          %227 = sbr.rel (%p225) target = $region40
        $region39: #{tpu_custom_call.1} parent=27 // pred_region
          %v230 = vcombine.low %v202, %v209
          %v232 = vunpack.c.l.s4 1966171168
          %v233 = vunpack.c.0.s8 %v232
          %v234 = vlaneseq
          %v235 = vshrl.u32 %v234, 7
          %v236 = vsub.s32 %v233, %v235
          %v237 = vrot.slane %v230, %v236
          %v239 = vunpack.c.l.s4 1966171168
          %v240 = vunpack.c.0.s8 %v239
          %v241 = vlaneseq
          %v242 = vshrl.u32 %v241, 7
          %v243 = vsub.s32 %v240, %v242
          %v244 = vrot.slane %v237, %v243
          %v246 = vlaneseq
          %vm247 = vcmp.ge.s32.totalorder %v246, 0
          %vm248 = vcmp.lt.s32.totalorder %v246, 256
          %vm249 = vmand %vm247, %vm248
          %250 = vst.msk [vmem:[#allocation2] sm:$0x3] %vm249, %v244
          %v253 = vcombine.low %v216, %v223
          %v255 = vunpack.c.l.s4 1966171168
          %v256 = vunpack.c.0.s8 %v255
          %v257 = vlaneseq
          %v258 = vshrl.u32 %v257, 7
          %v259 = vsub.s32 %v256, %v258
          %v260 = vrot.slane %v253, %v259
          %v262 = vunpack.c.l.s4 1966171168
          %v263 = vunpack.c.0.s8 %v262
          %v264 = vlaneseq
          %v265 = vshrl.u32 %v264, 7
          %v266 = vsub.s32 %v263, %v265
          %v267 = vrot.slane %v260, %v266
          %269 = vst.msk [vmem:[#allocation3] sm:$0x3] %vm249, %v267
        $region40: #{tpu_custom_call.1} parent=27 // pred_fallthru
          _
        %p270 = scmp.gt.s32.totalorder %s25, 0
        // Predicated region
        $region41: #{tpu_custom_call.1} parent=27 // pred_check
          %p271 = pneg %p270
        $region42: #{tpu_custom_call.1} parent=27 // pred_check_branch
          %273 = sbr.rel (%p271) target = $region44
        $region43: #{tpu_custom_call.1} parent=27 // pred_region
          %v274 = vld [vmem:[#allocation2] sm:$0x3]
          %v277 = vcombine.low %v202, %v209
          %v279 = vunpack.c.l.s4 1966171168
          %v280 = vunpack.c.0.s8 %v279
          %v281 = vlaneseq
          %v282 = vshrl.u32 %v281, 7
          %v283 = vsub.s32 %v280, %v282
          %v284 = vrot.slane %v277, %v283
          %v286 = vunpack.c.l.s4 1966171168
          %v287 = vunpack.c.0.s8 %v286
          %v288 = vlaneseq
          %v289 = vshrl.u32 %v288, 7
          %v290 = vsub.s32 %v287, %v289
          %v291 = vrot.slane %v284, %v290
          %v293 = vadd.f32 %v274, %v291
          %v294 = vlaneseq
          %vm295 = vcmp.ge.s32.totalorder %v294, 0
          %vm296 = vcmp.lt.s32.totalorder %v294, 256
          %vm297 = vmand %vm295, %vm296
          %298 = vst.msk [vmem:[#allocation2] sm:$0x3] %vm297, %v293
          %v299 = vld [vmem:[#allocation3] sm:$0x3]
          %v302 = vcombine.low %v216, %v223
          %v304 = vunpack.c.l.s4 1966171168
          %v305 = vunpack.c.0.s8 %v304
          %v306 = vlaneseq
          %v307 = vshrl.u32 %v306, 7
          %v308 = vsub.s32 %v305, %v307
          %v309 = vrot.slane %v302, %v308
          %v311 = vunpack.c.l.s4 1966171168
          %v312 = vunpack.c.0.s8 %v311
          %v313 = vlaneseq
          %v314 = vshrl.u32 %v313, 7
          %v315 = vsub.s32 %v312, %v314
          %v316 = vrot.slane %v309, %v315
          %v318 = vmax.f32 %v299, %v316
          %319 = vst.msk [vmem:[#allocation3] sm:$0x3] %vm297, %v318
        $region44: #{tpu_custom_call.1} parent=27 // pred_fallthru
          _
        // Predicated region
        $region45: #{tpu_custom_call.1} parent=27 // pred_check
          %p320 = pneg %p224
        $region46: #{tpu_custom_call.1} parent=27 // pred_check_branch
          %322 = sbr.rel (%p320) target = $region48
        $region47: #{tpu_custom_call.1} parent=27 // pred_region
          %v323 = vld [vmem:[#allocation2] sm:$0x3]
          %v324 = vld [vmem:[#allocation3] sm:$0x3]
          %v326 = vlaneseq
          %v327 = vshrl.u32 %v326, 7
          %v328 = vsub.s32 0, %v327
          %v329 = vrot.slane %v323, %v328
          %v330 = vlaneseq
          %v331 = vshrl.u32 %v330, 7
          %v332 = vsub.s32 1, %v331
          %v333 = vrot.slane %v323, %v332
          %336 = vrot.lane.b32.xlu0 %v329, 51
          %v337 = vpop.permute.xlu0 %336
          %338 = vrot.lane.b32.xlu0 %v333, 51
          %v339 = vpop.permute.xlu0 %338
          %v340 = vlaneseq
          %v341 = vand.u32 %v340, 127
          %vm342 = vcmp.lt.s32.totalorder %v341, 51
          %v343 = vsel %vm342, %v337, %v339
          %v344 = vsel %vm342, %v339, %v337
          %v345 = vld [vmem:[#allocation4] sm:$0x3]
          %v348 = vcombine.low %v344, %v343
          %v350 = vunpack.c.l.s4 1966171168
          %v351 = vunpack.c.0.s8 %v350
          %v352 = vlaneseq
          %v353 = vshrl.u32 %v352, 7
          %v354 = vsub.s32 %v351, %v353
          %v355 = vrot.slane %v348, %v354
          %v357 = vunpack.c.l.s4 1966171168
          %v358 = vunpack.c.0.s8 %v357
          %v359 = vlaneseq
          %v360 = vshrl.u32 %v359, 7
          %v361 = vsub.s32 %v358, %v360
          %v362 = vrot.slane %v355, %v361
          %v364 = vmul.f32 %v345, %v362
          %v365 = vadd.f32 %v364, 0.0
          %366 = vrot.lane.b32.xlu0 %v329, 50
          %v367 = vpop.permute.xlu0 %366
          %368 = vrot.lane.b32.xlu0 %v333, 50
          %v369 = vpop.permute.xlu0 %368
          %vm370 = vcmp.lt.s32.totalorder %v341, 50
          %v371 = vsel %vm370, %v367, %v369
          %v372 = vsel %vm370, %v369, %v367
          %s373 = scalar_lea.vmem [#allocation4], 2
          %v374 = vld [vmem:[%s373] sm:$0x3]
          %v377 = vcombine.low %v372, %v371
          %v379 = vunpack.c.l.s4 1966171168
          %v380 = vunpack.c.0.s8 %v379
          %v381 = vlaneseq
          %v382 = vshrl.u32 %v381, 7
          %v383 = vsub.s32 %v380, %v382
          %v384 = vrot.slane %v377, %v383
          %v386 = vunpack.c.l.s4 1966171168
          %v387 = vunpack.c.0.s8 %v386
          %v388 = vlaneseq
          %v389 = vshrl.u32 %v388, 7
          %v390 = vsub.s32 %v387, %v389
          %v391 = vrot.slane %v384, %v390
          %v393 = vmul.f32 %v374, %v391
          %v394 = vadd.f32 %v365, %v393
          %395 = vrot.lane.b32.xlu0 %v329, 49
          %v396 = vpop.permute.xlu0 %395
          %397 = vrot.lane.b32.xlu0 %v333, 49
          %v398 = vpop.permute.xlu0 %397
          %vm399 = vcmp.lt.s32.totalorder %v341, 49
          %v400 = vsel %vm399, %v396, %v398
          %v401 = vsel %vm399, %v398, %v396
          %s402 = scalar_lea.vmem [#allocation4], 4
          %v403 = vld [vmem:[%s402] sm:$0x3]
          %v406 = vcombine.low %v401, %v400
          %v408 = vunpack.c.l.s4 1966171168
          %v409 = vunpack.c.0.s8 %v408
          %v410 = vlaneseq
          %v411 = vshrl.u32 %v410, 7
          %v412 = vsub.s32 %v409, %v411
          %v413 = vrot.slane %v406, %v412
          %v415 = vunpack.c.l.s4 1966171168
          %v416 = vunpack.c.0.s8 %v415
          %v417 = vlaneseq
          %v418 = vshrl.u32 %v417, 7
          %v419 = vsub.s32 %v416, %v418
          %v420 = vrot.slane %v413, %v419
          %v422 = vmul.f32 %v403, %v420
          %v423 = vadd.f32 %v394, %v422
          %424 = vrot.lane.b32.xlu0 %v329, 48
          %v425 = vpop.permute.xlu0 %424
          %426 = vrot.lane.b32.xlu0 %v333, 48
          %v427 = vpop.permute.xlu0 %426
          %vm428 = vcmp.lt.s32.totalorder %v341, 48
          %v429 = vsel %vm428, %v425, %v427
          %v430 = vsel %vm428, %v427, %v425
          %s431 = scalar_lea.vmem [#allocation4], 6
          %v432 = vld [vmem:[%s431] sm:$0x3]
          %v435 = vcombine.low %v430, %v429
          %v437 = vunpack.c.l.s4 1966171168
          %v438 = vunpack.c.0.s8 %v437
          %v439 = vlaneseq
          %v440 = vshrl.u32 %v439, 7
          %v441 = vsub.s32 %v438, %v440
          %v442 = vrot.slane %v435, %v441
          %v444 = vunpack.c.l.s4 1966171168
          %v445 = vunpack.c.0.s8 %v444
          %v446 = vlaneseq
          %v447 = vshrl.u32 %v446, 7
          %v448 = vsub.s32 %v445, %v447
          %v449 = vrot.slane %v442, %v448
          %v451 = vmul.f32 %v432, %v449
          %v452 = vadd.f32 %v423, %v451
          %453 = vrot.lane.b32.xlu0 %v329, 47
          %v454 = vpop.permute.xlu0 %453
          %455 = vrot.lane.b32.xlu0 %v333, 47
          %v456 = vpop.permute.xlu0 %455
          %vm457 = vcmp.lt.s32.totalorder %v341, 47
          %v458 = vsel %vm457, %v454, %v456
          %v459 = vsel %vm457, %v456, %v454
          %s460 = scalar_lea.vmem [#allocation4], 8
          %v461 = vld [vmem:[%s460] sm:$0x3]
          %v464 = vcombine.low %v459, %v458
          %v466 = vunpack.c.l.s4 1966171168
          %v467 = vunpack.c.0.s8 %v466
          %v468 = vlaneseq
          %v469 = vshrl.u32 %v468, 7
          %v470 = vsub.s32 %v467, %v469
          %v471 = vrot.slane %v464, %v470
          %v473 = vunpack.c.l.s4 1966171168
          %v474 = vunpack.c.0.s8 %v473
          %v475 = vlaneseq
          %v476 = vshrl.u32 %v475, 7
          %v477 = vsub.s32 %v474, %v476
          %v478 = vrot.slane %v471, %v477
          %v480 = vmul.f32 %v461, %v478
          %v481 = vadd.f32 %v452, %v480
          %482 = vrot.lane.b32.xlu0 %v329, 46
          %v483 = vpop.permute.xlu0 %482
          %484 = vrot.lane.b32.xlu0 %v333, 46
          %v485 = vpop.permute.xlu0 %484
          %vm486 = vcmp.lt.s32.totalorder %v341, 46
          %v487 = vsel %vm486, %v483, %v485
          %v488 = vsel %vm486, %v485, %v483
          %s489 = scalar_lea.vmem [#allocation4], 10
          %v490 = vld [vmem:[%s489] sm:$0x3]
          %v493 = vcombine.low %v488, %v487
          %v495 = vunpack.c.l.s4 1966171168
          %v496 = vunpack.c.0.s8 %v495
          %v497 = vlaneseq
          %v498 = vshrl.u32 %v497, 7
          %v499 = vsub.s32 %v496, %v498
          %v500 = vrot.slane %v493, %v499
          %v502 = vunpack.c.l.s4 1966171168
          %v503 = vunpack.c.0.s8 %v502
          %v504 = vlaneseq
          %v505 = vshrl.u32 %v504, 7
          %v506 = vsub.s32 %v503, %v505
          %v507 = vrot.slane %v500, %v506
          %v509 = vmul.f32 %v490, %v507
          %v510 = vadd.f32 %v481, %v509
          %511 = vrot.lane.b32.xlu0 %v329, 45
          %v512 = vpop.permute.xlu0 %511
          %513 = vrot.lane.b32.xlu0 %v333, 45
          %v514 = vpop.permute.xlu0 %513
          %vm515 = vcmp.lt.s32.totalorder %v341, 45
          %v516 = vsel %vm515, %v512, %v514
          %v517 = vsel %vm515, %v514, %v512
          %s518 = scalar_lea.vmem [#allocation4], 12
          %v519 = vld [vmem:[%s518] sm:$0x3]
          %v522 = vcombine.low %v517, %v516
          %v524 = vunpack.c.l.s4 1966171168
          %v525 = vunpack.c.0.s8 %v524
          %v526 = vlaneseq
          %v527 = vshrl.u32 %v526, 7
          %v528 = vsub.s32 %v525, %v527
          %v529 = vrot.slane %v522, %v528
          %v531 = vunpack.c.l.s4 1966171168
          %v532 = vunpack.c.0.s8 %v531
          %v533 = vlaneseq
          %v534 = vshrl.u32 %v533, 7
          %v535 = vsub.s32 %v532, %v534
          %v536 = vrot.slane %v529, %v535
          %v538 = vmul.f32 %v519, %v536
          %v539 = vadd.f32 %v510, %v538
          %540 = vrot.lane.b32.xlu0 %v329, 35
          %v541 = vpop.permute.xlu0 %540
          %542 = vrot.lane.b32.xlu0 %v333, 35
          %v543 = vpop.permute.xlu0 %542
          %vm544 = vcmp.lt.s32.totalorder %v341, 35
          %v545 = vsel %vm544, %v541, %v543
          %v546 = vsel %vm544, %v543, %v541
          %s547 = scalar_lea.vmem [#allocation4], 14
          %v548 = vld [vmem:[%s547] sm:$0x3]
          %v551 = vcombine.low %v546, %v545
          %v553 = vunpack.c.l.s4 1966171168
          %v554 = vunpack.c.0.s8 %v553
          %v555 = vlaneseq
          %v556 = vshrl.u32 %v555, 7
          %v557 = vsub.s32 %v554, %v556
          %v558 = vrot.slane %v551, %v557
          %v560 = vunpack.c.l.s4 1966171168
          %v561 = vunpack.c.0.s8 %v560
          %v562 = vlaneseq
          %v563 = vshrl.u32 %v562, 7
          %v564 = vsub.s32 %v561, %v563
          %v565 = vrot.slane %v558, %v564
          %v567 = vmul.f32 %v548, %v565
          %v568 = vadd.f32 %v539, %v567
          %569 = vrot.lane.b32.xlu0 %v329, 34
          %v570 = vpop.permute.xlu0 %569
          %571 = vrot.lane.b32.xlu0 %v333, 34
          %v572 = vpop.permute.xlu0 %571
          %vm573 = vcmp.lt.s32.totalorder %v341, 34
          %v574 = vsel %vm573, %v570, %v572
          %v575 = vsel %vm573, %v572, %v570
          %s576 = scalar_lea.vmem [#allocation4], 16
          %v577 = vld [vmem:[%s576] sm:$0x3]
          %v580 = vcombine.low %v575, %v574
          %v582 = vunpack.c.l.s4 1966171168
          %v583 = vunpack.c.0.s8 %v582
          %v584 = vlaneseq
          %v585 = vshrl.u32 %v584, 7
          %v586 = vsub.s32 %v583, %v585
          %v587 = vrot.slane %v580, %v586
          %v589 = vunpack.c.l.s4 1966171168
          %v590 = vunpack.c.0.s8 %v589
          %v591 = vlaneseq
          %v592 = vshrl.u32 %v591, 7
          %v593 = vsub.s32 %v590, %v592
          %v594 = vrot.slane %v587, %v593
          %v596 = vmul.f32 %v577, %v594
          %v597 = vadd.f32 %v568, %v596
          %598 = vrot.lane.b32.xlu0 %v329, 33
          %v599 = vpop.permute.xlu0 %598
          %600 = vrot.lane.b32.xlu0 %v333, 33
          %v601 = vpop.permute.xlu0 %600
          %vm602 = vcmp.lt.s32.totalorder %v341, 33
          %v603 = vsel %vm602, %v599, %v601
          %v604 = vsel %vm602, %v601, %v599
          %s605 = scalar_lea.vmem [#allocation4], 18
          %v606 = vld [vmem:[%s605] sm:$0x3]
          %v609 = vcombine.low %v604, %v603
          %v611 = vunpack.c.l.s4 1966171168
          %v612 = vunpack.c.0.s8 %v611
          %v613 = vlaneseq
          %v614 = vshrl.u32 %v613, 7
          %v615 = vsub.s32 %v612, %v614
          %v616 = vrot.slane %v609, %v615
          %v618 = vunpack.c.l.s4 1966171168
          %v619 = vunpack.c.0.s8 %v618
          %v620 = vlaneseq
          %v621 = vshrl.u32 %v620, 7
          %v622 = vsub.s32 %v619, %v621
          %v623 = vrot.slane %v616, %v622
          %v625 = vmul.f32 %v606, %v623
          %v626 = vadd.f32 %v597, %v625
          %627 = vrot.lane.b32.xlu0 %v329, 32
          %v628 = vpop.permute.xlu0 %627
          %629 = vrot.lane.b32.xlu0 %v333, 32
          %v630 = vpop.permute.xlu0 %629
          %vm631 = vcmp.lt.s32.totalorder %v341, 32
          %v632 = vsel %vm631, %v628, %v630
          %v633 = vsel %vm631, %v630, %v628
          %s634 = scalar_lea.vmem [#allocation4], 20
          %v635 = vld [vmem:[%s634] sm:$0x3]
          %v638 = vcombine.low %v633, %v632
          %v640 = vunpack.c.l.s4 1966171168
          %v641 = vunpack.c.0.s8 %v640
          %v642 = vlaneseq
          %v643 = vshrl.u32 %v642, 7
          %v644 = vsub.s32 %v641, %v643
          %v645 = vrot.slane %v638, %v644
          %v647 = vunpack.c.l.s4 1966171168
          %v648 = vunpack.c.0.s8 %v647
          %v649 = vlaneseq
          %v650 = vshrl.u32 %v649, 7
          %v651 = vsub.s32 %v648, %v650
          %v652 = vrot.slane %v645, %v651
          %v654 = vmul.f32 %v635, %v652
          %v655 = vadd.f32 %v626, %v654
          %656 = vrot.lane.b32.xlu0 %v329, 31
          %v657 = vpop.permute.xlu0 %656
          %658 = vrot.lane.b32.xlu0 %v333, 31
          %v659 = vpop.permute.xlu0 %658
          %vm660 = vcmp.lt.s32.totalorder %v341, 31
          %v661 = vsel %vm660, %v657, %v659
          %v662 = vsel %vm660, %v659, %v657
          %s663 = scalar_lea.vmem [#allocation4], 22
          %v664 = vld [vmem:[%s663] sm:$0x3]
          %v667 = vcombine.low %v662, %v661
          %v669 = vunpack.c.l.s4 1966171168
          %v670 = vunpack.c.0.s8 %v669
          %v671 = vlaneseq
          %v672 = vshrl.u32 %v671, 7
          %v673 = vsub.s32 %v670, %v672
          %v674 = vrot.slane %v667, %v673
          %v676 = vunpack.c.l.s4 1966171168
          %v677 = vunpack.c.0.s8 %v676
          %v678 = vlaneseq
          %v679 = vshrl.u32 %v678, 7
          %v680 = vsub.s32 %v677, %v679
          %v681 = vrot.slane %v674, %v680
          %v683 = vmul.f32 %v664, %v681
          %v684 = vadd.f32 %v655, %v683
          %685 = vrot.lane.b32.xlu0 %v329, 30
          %v686 = vpop.permute.xlu0 %685
          %687 = vrot.lane.b32.xlu0 %v333, 30
          %v688 = vpop.permute.xlu0 %687
          %vm689 = vcmp.lt.s32.totalorder %v341, 30
          %v690 = vsel %vm689, %v686, %v688
          %v691 = vsel %vm689, %v688, %v686
          %s692 = scalar_lea.vmem [#allocation4], 24
          %v693 = vld [vmem:[%s692] sm:$0x3]
          %v696 = vcombine.low %v691, %v690
          %v698 = vunpack.c.l.s4 1966171168
          %v699 = vunpack.c.0.s8 %v698
          %v700 = vlaneseq
          %v701 = vshrl.u32 %v700, 7
          %v702 = vsub.s32 %v699, %v701
          %v703 = vrot.slane %v696, %v702
          %v705 = vunpack.c.l.s4 1966171168
          %v706 = vunpack.c.0.s8 %v705
          %v707 = vlaneseq
          %v708 = vshrl.u32 %v707, 7
          %v709 = vsub.s32 %v706, %v708
          %v710 = vrot.slane %v703, %v709
          %v712 = vmul.f32 %v693, %v710
          %v713 = vadd.f32 %v684, %v712
          %714 = vrot.lane.b32.xlu0 %v329, 29
          %v715 = vpop.permute.xlu0 %714
          %716 = vrot.lane.b32.xlu0 %v333, 29
          %v717 = vpop.permute.xlu0 %716
          %vm718 = vcmp.lt.s32.totalorder %v341, 29
          %v719 = vsel %vm718, %v715, %v717
          %v720 = vsel %vm718, %v717, %v715
          %s721 = scalar_lea.vmem [#allocation4], 26
          %v722 = vld [vmem:[%s721] sm:$0x3]
          %v725 = vcombine.low %v720, %v719
          %v727 = vunpack.c.l.s4 1966171168
          %v728 = vunpack.c.0.s8 %v727
          %v729 = vlaneseq
          %v730 = vshrl.u32 %v729, 7
          %v731 = vsub.s32 %v728, %v730
          %v732 = vrot.slane %v725, %v731
          %v734 = vunpack.c.l.s4 1966171168
          %v735 = vunpack.c.0.s8 %v734
          %v736 = vlaneseq
          %v737 = vshrl.u32 %v736, 7
          %v738 = vsub.s32 %v735, %v737
          %v739 = vrot.slane %v732, %v738
          %v741 = vmul.f32 %v722, %v739
          %v742 = vadd.f32 %v713, %v741
          %743 = vrot.lane.b32.xlu0 %v329, 19
          %v744 = vpop.permute.xlu0 %743
          %745 = vrot.lane.b32.xlu0 %v333, 19
          %v746 = vpop.permute.xlu0 %745
          %vm747 = vcmp.lt.s32.totalorder %v341, 19
          %v748 = vsel %vm747, %v744, %v746
          %v749 = vsel %vm747, %v746, %v744
          %s750 = scalar_lea.vmem [#allocation4], 28
          %v751 = vld [vmem:[%s750] sm:$0x3]
          %v754 = vcombine.low %v749, %v748
          %v756 = vunpack.c.l.s4 1966171168
          %v757 = vunpack.c.0.s8 %v756
          %v758 = vlaneseq
          %v759 = vshrl.u32 %v758, 7
          %v760 = vsub.s32 %v757, %v759
          %v761 = vrot.slane %v754, %v760
          %v763 = vunpack.c.l.s4 1966171168
          %v764 = vunpack.c.0.s8 %v763
          %v765 = vlaneseq
          %v766 = vshrl.u32 %v765, 7
          %v767 = vsub.s32 %v764, %v766
          %v768 = vrot.slane %v761, %v767
          %v770 = vmul.f32 %v751, %v768
          %v771 = vadd.f32 %v742, %v770
          %772 = vrot.lane.b32.xlu0 %v329, 18
          %v773 = vpop.permute.xlu0 %772
          %774 = vrot.lane.b32.xlu0 %v333, 18
          %v775 = vpop.permute.xlu0 %774
          %vm776 = vcmp.lt.s32.totalorder %v341, 18
          %v777 = vsel %vm776, %v773, %v775
          %v778 = vsel %vm776, %v775, %v773
          %s779 = scalar_lea.vmem [#allocation4], 30
          %v780 = vld [vmem:[%s779] sm:$0x3]
          %v783 = vcombine.low %v778, %v777
          %v785 = vunpack.c.l.s4 1966171168
          %v786 = vunpack.c.0.s8 %v785
          %v787 = vlaneseq
          %v788 = vshrl.u32 %v787, 7
          %v789 = vsub.s32 %v786, %v788
          %v790 = vrot.slane %v783, %v789
          %v792 = vunpack.c.l.s4 1966171168
          %v793 = vunpack.c.0.s8 %v792
          %v794 = vlaneseq
          %v795 = vshrl.u32 %v794, 7
          %v796 = vsub.s32 %v793, %v795
          %v797 = vrot.slane %v790, %v796
          %v799 = vmul.f32 %v780, %v797
          %v800 = vadd.f32 %v771, %v799
          %801 = vrot.lane.b32.xlu0 %v329, 17
          %v802 = vpop.permute.xlu0 %801
          %803 = vrot.lane.b32.xlu0 %v333, 17
          %v804 = vpop.permute.xlu0 %803
          %vm805 = vcmp.lt.s32.totalorder %v341, 17
          %v806 = vsel %vm805, %v802, %v804
          %v807 = vsel %vm805, %v804, %v802
          %s808 = scalar_lea.vmem [#allocation4], 32
          %v809 = vld [vmem:[%s808] sm:$0x3]
          %v812 = vcombine.low %v807, %v806
          %v814 = vunpack.c.l.s4 1966171168
          %v815 = vunpack.c.0.s8 %v814
          %v816 = vlaneseq
          %v817 = vshrl.u32 %v816, 7
          %v818 = vsub.s32 %v815, %v817
          %v819 = vrot.slane %v812, %v818
          %v821 = vunpack.c.l.s4 1966171168
          %v822 = vunpack.c.0.s8 %v821
          %v823 = vlaneseq
          %v824 = vshrl.u32 %v823, 7
          %v825 = vsub.s32 %v822, %v824
          %v826 = vrot.slane %v819, %v825
          %v828 = vmul.f32 %v809, %v826
          %v829 = vadd.f32 %v800, %v828
          %830 = vrot.lane.b32.xlu0 %v329, 16
          %v831 = vpop.permute.xlu0 %830
          %832 = vrot.lane.b32.xlu0 %v333, 16
          %v833 = vpop.permute.xlu0 %832
          %vm834 = vcmp.lt.s32.totalorder %v341, 16
          %v835 = vsel %vm834, %v831, %v833
          %v836 = vsel %vm834, %v833, %v831
          %s837 = scalar_lea.vmem [#allocation4], 34
          %v838 = vld [vmem:[%s837] sm:$0x3]
          %v841 = vcombine.low %v836, %v835
          %v843 = vunpack.c.l.s4 1966171168
          %v844 = vunpack.c.0.s8 %v843
          %v845 = vlaneseq
          %v846 = vshrl.u32 %v845, 7
          %v847 = vsub.s32 %v844, %v846
          %v848 = vrot.slane %v841, %v847
          %v850 = vunpack.c.l.s4 1966171168
          %v851 = vunpack.c.0.s8 %v850
          %v852 = vlaneseq
          %v853 = vshrl.u32 %v852, 7
          %v854 = vsub.s32 %v851, %v853
          %v855 = vrot.slane %v848, %v854
          %v857 = vmul.f32 %v838, %v855
          %v858 = vadd.f32 %v829, %v857
          %859 = vrot.lane.b32.xlu0 %v329, 15
          %v860 = vpop.permute.xlu0 %859
          %861 = vrot.lane.b32.xlu0 %v333, 15
          %v862 = vpop.permute.xlu0 %861
          %vm863 = vcmp.lt.s32.totalorder %v341, 15
          %v864 = vsel %vm863, %v860, %v862
          %v865 = vsel %vm863, %v862, %v860
          %s866 = scalar_lea.vmem [#allocation4], 36
          %v867 = vld [vmem:[%s866] sm:$0x3]
          %v870 = vcombine.low %v865, %v864
          %v872 = vunpack.c.l.s4 1966171168
          %v873 = vunpack.c.0.s8 %v872
          %v874 = vlaneseq
          %v875 = vshrl.u32 %v874, 7
          %v876 = vsub.s32 %v873, %v875
          %v877 = vrot.slane %v870, %v876
          %v879 = vunpack.c.l.s4 1966171168
          %v880 = vunpack.c.0.s8 %v879
          %v881 = vlaneseq
          %v882 = vshrl.u32 %v881, 7
          %v883 = vsub.s32 %v880, %v882
          %v884 = vrot.slane %v877, %v883
          %v886 = vmul.f32 %v867, %v884
          %v887 = vadd.f32 %v858, %v886
          %888 = vrot.lane.b32.xlu0 %v329, 14
          %v889 = vpop.permute.xlu0 %888
          %890 = vrot.lane.b32.xlu0 %v333, 14
          %v891 = vpop.permute.xlu0 %890
          %vm892 = vcmp.lt.s32.totalorder %v341, 14
          %v893 = vsel %vm892, %v889, %v891
          %v894 = vsel %vm892, %v891, %v889
          %s895 = scalar_lea.vmem [#allocation4], 38
          %v896 = vld [vmem:[%s895] sm:$0x3]
          %v899 = vcombine.low %v894, %v893
          %v901 = vunpack.c.l.s4 1966171168
          %v902 = vunpack.c.0.s8 %v901
          %v903 = vlaneseq
          %v904 = vshrl.u32 %v903, 7
          %v905 = vsub.s32 %v902, %v904
          %v906 = vrot.slane %v899, %v905
          %v908 = vunpack.c.l.s4 1966171168
          %v909 = vunpack.c.0.s8 %v908
          %v910 = vlaneseq
          %v911 = vshrl.u32 %v910, 7
          %v912 = vsub.s32 %v909, %v911
          %v913 = vrot.slane %v906, %v912
          %v915 = vmul.f32 %v896, %v913
          %v916 = vadd.f32 %v887, %v915
          %917 = vrot.lane.b32.xlu0 %v329, 13
          %v918 = vpop.permute.xlu0 %917
          %919 = vrot.lane.b32.xlu0 %v333, 13
          %v920 = vpop.permute.xlu0 %919
          %vm921 = vcmp.lt.s32.totalorder %v341, 13
          %v922 = vsel %vm921, %v918, %v920
          %v923 = vsel %vm921, %v920, %v918
          %s924 = scalar_lea.vmem [#allocation4], 40
          %v925 = vld [vmem:[%s924] sm:$0x3]
          %v928 = vcombine.low %v923, %v922
          %v930 = vunpack.c.l.s4 1966171168
          %v931 = vunpack.c.0.s8 %v930
          %v932 = vlaneseq
          %v933 = vshrl.u32 %v932, 7
          %v934 = vsub.s32 %v931, %v933
          %v935 = vrot.slane %v928, %v934
          %v937 = vunpack.c.l.s4 1966171168
          %v938 = vunpack.c.0.s8 %v937
          %v939 = vlaneseq
          %v940 = vshrl.u32 %v939, 7
          %v941 = vsub.s32 %v938, %v940
          %v942 = vrot.slane %v935, %v941
          %v944 = vmul.f32 %v925, %v942
          %v945 = vadd.f32 %v916, %v944
          %946 = vrot.lane.b32.xlu0 %v329, 3
          %v947 = vpop.permute.xlu0 %946
          %948 = vrot.lane.b32.xlu0 %v333, 3
          %v949 = vpop.permute.xlu0 %948
          %vm950 = vcmp.lt.s32.totalorder %v341, 3
          %v951 = vsel %vm950, %v947, %v949
          %v952 = vsel %vm950, %v949, %v947
          %s953 = scalar_lea.vmem [#allocation4], 42
          %v954 = vld [vmem:[%s953] sm:$0x3]
          %v957 = vcombine.low %v952, %v951
          %v959 = vunpack.c.l.s4 1966171168
          %v960 = vunpack.c.0.s8 %v959
          %v961 = vlaneseq
          %v962 = vshrl.u32 %v961, 7
          %v963 = vsub.s32 %v960, %v962
          %v964 = vrot.slane %v957, %v963
          %v966 = vunpack.c.l.s4 1966171168
          %v967 = vunpack.c.0.s8 %v966
          %v968 = vlaneseq
          %v969 = vshrl.u32 %v968, 7
          %v970 = vsub.s32 %v967, %v969
          %v971 = vrot.slane %v964, %v970
          %v973 = vmul.f32 %v954, %v971
          %v974 = vadd.f32 %v945, %v973
          %975 = vrot.lane.b32.xlu0 %v329, 2
          %v976 = vpop.permute.xlu0 %975
          %977 = vrot.lane.b32.xlu0 %v333, 2
          %v978 = vpop.permute.xlu0 %977
          %vm979 = vcmp.lt.s32.totalorder %v341, 2
          %v980 = vsel %vm979, %v976, %v978
          %v981 = vsel %vm979, %v978, %v976
          %s982 = scalar_lea.vmem [#allocation4], 44
          %v983 = vld [vmem:[%s982] sm:$0x3]
          %v986 = vcombine.low %v981, %v980
          %v988 = vunpack.c.l.s4 1966171168
          %v989 = vunpack.c.0.s8 %v988
          %v990 = vlaneseq
          %v991 = vshrl.u32 %v990, 7
          %v992 = vsub.s32 %v989, %v991
          %v993 = vrot.slane %v986, %v992
          %v995 = vunpack.c.l.s4 1966171168
          %v996 = vunpack.c.0.s8 %v995
          %v997 = vlaneseq
          %v998 = vshrl.u32 %v997, 7
          %v999 = vsub.s32 %v996, %v998
          %v1000 = vrot.slane %v993, %v999
          %v1002 = vmul.f32 %v983, %v1000
          %v1003 = vadd.f32 %v974, %v1002
          %1004 = vrot.lane.b32.xlu0 %v329, 1
          %v1005 = vpop.permute.xlu0 %1004
          %1006 = vrot.lane.b32.xlu0 %v333, 1
          %v1007 = vpop.permute.xlu0 %1006
          %vm1008 = vcmp.lt.s32.totalorder %v341, 1
          %v1009 = vsel %vm1008, %v1005, %v1007
          %v1010 = vsel %vm1008, %v1007, %v1005
          %s1011 = scalar_lea.vmem [#allocation4], 46
          %v1012 = vld [vmem:[%s1011] sm:$0x3]
          %v1015 = vcombine.low %v1010, %v1009
          %v1017 = vunpack.c.l.s4 1966171168
          %v1018 = vunpack.c.0.s8 %v1017
          %v1019 = vlaneseq
          %v1020 = vshrl.u32 %v1019, 7
          %v1021 = vsub.s32 %v1018, %v1020
          %v1022 = vrot.slane %v1015, %v1021
          %v1024 = vunpack.c.l.s4 1966171168
          %v1025 = vunpack.c.0.s8 %v1024
          %v1026 = vlaneseq
          %v1027 = vshrl.u32 %v1026, 7
          %v1028 = vsub.s32 %v1025, %v1027
          %v1029 = vrot.slane %v1022, %v1028
          %v1031 = vmul.f32 %v1012, %v1029
          %v1032 = vadd.f32 %v1003, %v1031
          %s1033 = scalar_lea.vmem [#allocation4], 48
          %v1034 = vld [vmem:[%s1033] sm:$0x3]
          %v1035 = vmul.f32 %v1034, %v323
          %v1036 = vadd.f32 %v1032, %v1035
          %1037 = vrot.lane.b32.xlu0 %v329, 127
          %v1038 = vpop.permute.xlu0 %1037
          %1039 = vrot.lane.b32.xlu0 %v333, 127
          %v1040 = vpop.permute.xlu0 %1039
          %vm1041 = vcmp.lt.s32.totalorder %v341, 127
          %v1042 = vsel %vm1041, %v1038, %v1040
          %v1043 = vsel %vm1041, %v1040, %v1038
          %s1044 = scalar_lea.vmem [#allocation4], 50
          %v1045 = vld [vmem:[%s1044] sm:$0x3]
          %v1048 = vcombine.low %v1042, %v1043
          %v1050 = vunpack.c.l.s4 1966171168
          %v1051 = vunpack.c.0.s8 %v1050
          %v1052 = vlaneseq
          %v1053 = vshrl.u32 %v1052, 7
          %v1054 = vsub.s32 %v1051, %v1053
          %v1055 = vrot.slane %v1048, %v1054
          %v1057 = vunpack.c.l.s4 1966171168
          %v1058 = vunpack.c.0.s8 %v1057
          %v1059 = vlaneseq
          %v1060 = vshrl.u32 %v1059, 7
          %v1061 = vsub.s32 %v1058, %v1060
          %v1062 = vrot.slane %v1055, %v1061
          %v1064 = vmul.f32 %v1045, %v1062
          %v1065 = vadd.f32 %v1036, %v1064
          %1066 = vrot.lane.b32.xlu0 %v329, 126
          %v1067 = vpop.permute.xlu0 %1066
          %1068 = vrot.lane.b32.xlu0 %v333, 126
          %v1069 = vpop.permute.xlu0 %1068
          %vm1070 = vcmp.lt.s32.totalorder %v341, 126
          %v1071 = vsel %vm1070, %v1067, %v1069
          %v1072 = vsel %vm1070, %v1069, %v1067
          %s1073 = scalar_lea.vmem [#allocation4], 52
          %v1074 = vld [vmem:[%s1073] sm:$0x3]
          %v1077 = vcombine.low %v1071, %v1072
          %v1079 = vunpack.c.l.s4 1966171168
          %v1080 = vunpack.c.0.s8 %v1079
          %v1081 = vlaneseq
          %v1082 = vshrl.u32 %v1081, 7
          %v1083 = vsub.s32 %v1080, %v1082
          %v1084 = vrot.slane %v1077, %v1083
          %v1086 = vunpack.c.l.s4 1966171168
          %v1087 = vunpack.c.0.s8 %v1086
          %v1088 = vlaneseq
          %v1089 = vshrl.u32 %v1088, 7
          %v1090 = vsub.s32 %v1087, %v1089
          %v1091 = vrot.slane %v1084, %v1090
          %v1093 = vmul.f32 %v1074, %v1091
          %v1094 = vadd.f32 %v1065, %v1093
          %1095 = vrot.lane.b32.xlu0 %v329, 125
          %v1096 = vpop.permute.xlu0 %1095
          %1097 = vrot.lane.b32.xlu0 %v333, 125
          %v1098 = vpop.permute.xlu0 %1097
          %vm1099 = vcmp.lt.s32.totalorder %v341, 125
          %v1100 = vsel %vm1099, %v1096, %v1098
          %v1101 = vsel %vm1099, %v1098, %v1096
          %s1102 = scalar_lea.vmem [#allocation4], 54
          %v1103 = vld [vmem:[%s1102] sm:$0x3]
          %v1106 = vcombine.low %v1100, %v1101
          %v1108 = vunpack.c.l.s4 1966171168
          %v1109 = vunpack.c.0.s8 %v1108
          %v1110 = vlaneseq
          %v1111 = vshrl.u32 %v1110, 7
          %v1112 = vsub.s32 %v1109, %v1111
          %v1113 = vrot.slane %v1106, %v1112
          %v1115 = vunpack.c.l.s4 1966171168
          %v1116 = vunpack.c.0.s8 %v1115
          %v1117 = vlaneseq
          %v1118 = vshrl.u32 %v1117, 7
          %v1119 = vsub.s32 %v1116, %v1118
          %v1120 = vrot.slane %v1113, %v1119
          %v1122 = vmul.f32 %v1103, %v1120
          %v1123 = vadd.f32 %v1094, %v1122
          %1124 = vrot.lane.b32.xlu0 %v329, 115
          %v1125 = vpop.permute.xlu0 %1124
          %1126 = vrot.lane.b32.xlu0 %v333, 115
          %v1127 = vpop.permute.xlu0 %1126
          %vm1128 = vcmp.lt.s32.totalorder %v341, 115
          %v1129 = vsel %vm1128, %v1125, %v1127
          %v1130 = vsel %vm1128, %v1127, %v1125
          %s1131 = scalar_lea.vmem [#allocation4], 56
          %v1132 = vld [vmem:[%s1131] sm:$0x3]
          %v1135 = vcombine.low %v1129, %v1130
          %v1137 = vunpack.c.l.s4 1966171168
          %v1138 = vunpack.c.0.s8 %v1137
          %v1139 = vlaneseq
          %v1140 = vshrl.u32 %v1139, 7
          %v1141 = vsub.s32 %v1138, %v1140
          %v1142 = vrot.slane %v1135, %v1141
          %v1144 = vunpack.c.l.s4 1966171168
          %v1145 = vunpack.c.0.s8 %v1144
          %v1146 = vlaneseq
          %v1147 = vshrl.u32 %v1146, 7
          %v1148 = vsub.s32 %v1145, %v1147
          %v1149 = vrot.slane %v1142, %v1148
          %v1151 = vmul.f32 %v1132, %v1149
          %v1152 = vadd.f32 %v1123, %v1151
          %1153 = vrot.lane.b32.xlu0 %v329, 114
          %v1154 = vpop.permute.xlu0 %1153
          %1155 = vrot.lane.b32.xlu0 %v333, 114
          %v1156 = vpop.permute.xlu0 %1155
          %vm1157 = vcmp.lt.s32.totalorder %v341, 114
          %v1158 = vsel %vm1157, %v1154, %v1156
          %v1159 = vsel %vm1157, %v1156, %v1154
          %s1160 = scalar_lea.vmem [#allocation4], 58
          %v1161 = vld [vmem:[%s1160] sm:$0x3]
          %v1164 = vcombine.low %v1158, %v1159
          %v1166 = vunpack.c.l.s4 1966171168
          %v1167 = vunpack.c.0.s8 %v1166
          %v1168 = vlaneseq
          %v1169 = vshrl.u32 %v1168, 7
          %v1170 = vsub.s32 %v1167, %v1169
          %v1171 = vrot.slane %v1164, %v1170
          %v1173 = vunpack.c.l.s4 1966171168
          %v1174 = vunpack.c.0.s8 %v1173
          %v1175 = vlaneseq
          %v1176 = vshrl.u32 %v1175, 7
          %v1177 = vsub.s32 %v1174, %v1176
          %v1178 = vrot.slane %v1171, %v1177
          %v1180 = vmul.f32 %v1161, %v1178
          %v1181 = vadd.f32 %v1152, %v1180
          %1182 = vrot.lane.b32.xlu0 %v329, 113
          %v1183 = vpop.permute.xlu0 %1182
          %1184 = vrot.lane.b32.xlu0 %v333, 113
          %v1185 = vpop.permute.xlu0 %1184
          %vm1186 = vcmp.lt.s32.totalorder %v341, 113
          %v1187 = vsel %vm1186, %v1183, %v1185
          %v1188 = vsel %vm1186, %v1185, %v1183
          %s1189 = scalar_lea.vmem [#allocation4], 60
          %v1190 = vld [vmem:[%s1189] sm:$0x3]
          %v1193 = vcombine.low %v1187, %v1188
          %v1195 = vunpack.c.l.s4 1966171168
          %v1196 = vunpack.c.0.s8 %v1195
          %v1197 = vlaneseq
          %v1198 = vshrl.u32 %v1197, 7
          %v1199 = vsub.s32 %v1196, %v1198
          %v1200 = vrot.slane %v1193, %v1199
          %v1202 = vunpack.c.l.s4 1966171168
          %v1203 = vunpack.c.0.s8 %v1202
          %v1204 = vlaneseq
          %v1205 = vshrl.u32 %v1204, 7
          %v1206 = vsub.s32 %v1203, %v1205
          %v1207 = vrot.slane %v1200, %v1206
          %v1209 = vmul.f32 %v1190, %v1207
          %v1210 = vadd.f32 %v1181, %v1209
          %1211 = vrot.lane.b32.xlu0 %v329, 112
          %v1212 = vpop.permute.xlu0 %1211
          %1213 = vrot.lane.b32.xlu0 %v333, 112
          %v1214 = vpop.permute.xlu0 %1213
          %vm1215 = vcmp.lt.s32.totalorder %v341, 112
          %v1216 = vsel %vm1215, %v1212, %v1214
          %v1217 = vsel %vm1215, %v1214, %v1212
          %s1218 = scalar_lea.vmem [#allocation4], 62
          %v1219 = vld [vmem:[%s1218] sm:$0x3]
          %v1222 = vcombine.low %v1216, %v1217
          %v1224 = vunpack.c.l.s4 1966171168
          %v1225 = vunpack.c.0.s8 %v1224
          %v1226 = vlaneseq
          %v1227 = vshrl.u32 %v1226, 7
          %v1228 = vsub.s32 %v1225, %v1227
          %v1229 = vrot.slane %v1222, %v1228
          %v1231 = vunpack.c.l.s4 1966171168
          %v1232 = vunpack.c.0.s8 %v1231
          %v1233 = vlaneseq
          %v1234 = vshrl.u32 %v1233, 7
          %v1235 = vsub.s32 %v1232, %v1234
          %v1236 = vrot.slane %v1229, %v1235
          %v1238 = vmul.f32 %v1219, %v1236
          %v1239 = vadd.f32 %v1210, %v1238
          %1240 = vrot.lane.b32.xlu0 %v329, 111
          %v1241 = vpop.permute.xlu0 %1240
          %1242 = vrot.lane.b32.xlu0 %v333, 111
          %v1243 = vpop.permute.xlu0 %1242
          %vm1244 = vcmp.lt.s32.totalorder %v341, 111
          %v1245 = vsel %vm1244, %v1241, %v1243
          %v1246 = vsel %vm1244, %v1243, %v1241
          %s1247 = scalar_lea.vmem [#allocation4], 64
          %v1248 = vld [vmem:[%s1247] sm:$0x3]
          %v1251 = vcombine.low %v1245, %v1246
          %v1253 = vunpack.c.l.s4 1966171168
          %v1254 = vunpack.c.0.s8 %v1253
          %v1255 = vlaneseq
          %v1256 = vshrl.u32 %v1255, 7
          %v1257 = vsub.s32 %v1254, %v1256
          %v1258 = vrot.slane %v1251, %v1257
          %v1260 = vunpack.c.l.s4 1966171168
          %v1261 = vunpack.c.0.s8 %v1260
          %v1262 = vlaneseq
          %v1263 = vshrl.u32 %v1262, 7
          %v1264 = vsub.s32 %v1261, %v1263
          %v1265 = vrot.slane %v1258, %v1264
          %v1267 = vmul.f32 %v1248, %v1265
          %v1268 = vadd.f32 %v1239, %v1267
          %1269 = vrot.lane.b32.xlu0 %v329, 110
          %v1270 = vpop.permute.xlu0 %1269
          %1271 = vrot.lane.b32.xlu0 %v333, 110
          %v1272 = vpop.permute.xlu0 %1271
          %vm1273 = vcmp.lt.s32.totalorder %v341, 110
          %v1274 = vsel %vm1273, %v1270, %v1272
          %v1275 = vsel %vm1273, %v1272, %v1270
          %s1276 = scalar_lea.vmem [#allocation4], 66
          %v1277 = vld [vmem:[%s1276] sm:$0x3]
          %v1280 = vcombine.low %v1274, %v1275
          %v1282 = vunpack.c.l.s4 1966171168
          %v1283 = vunpack.c.0.s8 %v1282
          %v1284 = vlaneseq
          %v1285 = vshrl.u32 %v1284, 7
          %v1286 = vsub.s32 %v1283, %v1285
          %v1287 = vrot.slane %v1280, %v1286
          %v1289 = vunpack.c.l.s4 1966171168
          %v1290 = vunpack.c.0.s8 %v1289
          %v1291 = vlaneseq
          %v1292 = vshrl.u32 %v1291, 7
          %v1293 = vsub.s32 %v1290, %v1292
          %v1294 = vrot.slane %v1287, %v1293
          %v1296 = vmul.f32 %v1277, %v1294
          %v1297 = vadd.f32 %v1268, %v1296
          %1298 = vrot.lane.b32.xlu0 %v329, 109
          %v1299 = vpop.permute.xlu0 %1298
          %1300 = vrot.lane.b32.xlu0 %v333, 109
          %v1301 = vpop.permute.xlu0 %1300
          %vm1302 = vcmp.lt.s32.totalorder %v341, 109
          %v1303 = vsel %vm1302, %v1299, %v1301
          %v1304 = vsel %vm1302, %v1301, %v1299
          %s1305 = scalar_lea.vmem [#allocation4], 68
          %v1306 = vld [vmem:[%s1305] sm:$0x3]
          %v1309 = vcombine.low %v1303, %v1304
          %v1311 = vunpack.c.l.s4 1966171168
          %v1312 = vunpack.c.0.s8 %v1311
          %v1313 = vlaneseq
          %v1314 = vshrl.u32 %v1313, 7
          %v1315 = vsub.s32 %v1312, %v1314
          %v1316 = vrot.slane %v1309, %v1315
          %v1318 = vunpack.c.l.s4 1966171168
          %v1319 = vunpack.c.0.s8 %v1318
          %v1320 = vlaneseq
          %v1321 = vshrl.u32 %v1320, 7
          %v1322 = vsub.s32 %v1319, %v1321
          %v1323 = vrot.slane %v1316, %v1322
          %v1325 = vmul.f32 %v1306, %v1323
          %v1326 = vadd.f32 %v1297, %v1325
          %1327 = vrot.lane.b32.xlu0 %v329, 99
          %v1328 = vpop.permute.xlu0 %1327
          %1329 = vrot.lane.b32.xlu0 %v333, 99
          %v1330 = vpop.permute.xlu0 %1329
          %vm1331 = vcmp.lt.s32.totalorder %v341, 99
          %v1332 = vsel %vm1331, %v1328, %v1330
          %v1333 = vsel %vm1331, %v1330, %v1328
          %s1334 = scalar_lea.vmem [#allocation4], 70
          %v1335 = vld [vmem:[%s1334] sm:$0x3]
          %v1338 = vcombine.low %v1332, %v1333
          %v1340 = vunpack.c.l.s4 1966171168
          %v1341 = vunpack.c.0.s8 %v1340
          %v1342 = vlaneseq
          %v1343 = vshrl.u32 %v1342, 7
          %v1344 = vsub.s32 %v1341, %v1343
          %v1345 = vrot.slane %v1338, %v1344
          %v1347 = vunpack.c.l.s4 1966171168
          %v1348 = vunpack.c.0.s8 %v1347
          %v1349 = vlaneseq
          %v1350 = vshrl.u32 %v1349, 7
          %v1351 = vsub.s32 %v1348, %v1350
          %v1352 = vrot.slane %v1345, %v1351
          %v1354 = vmul.f32 %v1335, %v1352
          %v1355 = vadd.f32 %v1326, %v1354
          %1356 = vrot.lane.b32.xlu0 %v329, 98
          %v1357 = vpop.permute.xlu0 %1356
          %1358 = vrot.lane.b32.xlu0 %v333, 98
          %v1359 = vpop.permute.xlu0 %1358
          %vm1360 = vcmp.lt.s32.totalorder %v341, 98
          %v1361 = vsel %vm1360, %v1357, %v1359
          %v1362 = vsel %vm1360, %v1359, %v1357
          %s1363 = scalar_lea.vmem [#allocation4], 72
          %v1364 = vld [vmem:[%s1363] sm:$0x3]
          %v1367 = vcombine.low %v1361, %v1362
          %v1369 = vunpack.c.l.s4 1966171168
          %v1370 = vunpack.c.0.s8 %v1369
          %v1371 = vlaneseq
          %v1372 = vshrl.u32 %v1371, 7
          %v1373 = vsub.s32 %v1370, %v1372
          %v1374 = vrot.slane %v1367, %v1373
          %v1376 = vunpack.c.l.s4 1966171168
          %v1377 = vunpack.c.0.s8 %v1376
          %v1378 = vlaneseq
          %v1379 = vshrl.u32 %v1378, 7
          %v1380 = vsub.s32 %v1377, %v1379
          %v1381 = vrot.slane %v1374, %v1380
          %v1383 = vmul.f32 %v1364, %v1381
          %v1384 = vadd.f32 %v1355, %v1383
          %1385 = vrot.lane.b32.xlu0 %v329, 97
          %v1386 = vpop.permute.xlu0 %1385
          %1387 = vrot.lane.b32.xlu0 %v333, 97
          %v1388 = vpop.permute.xlu0 %1387
          %vm1389 = vcmp.lt.s32.totalorder %v341, 97
          %v1390 = vsel %vm1389, %v1386, %v1388
          %v1391 = vsel %vm1389, %v1388, %v1386
          %s1392 = scalar_lea.vmem [#allocation4], 74
          %v1393 = vld [vmem:[%s1392] sm:$0x3]
          %v1396 = vcombine.low %v1390, %v1391
          %v1398 = vunpack.c.l.s4 1966171168
          %v1399 = vunpack.c.0.s8 %v1398
          %v1400 = vlaneseq
          %v1401 = vshrl.u32 %v1400, 7
          %v1402 = vsub.s32 %v1399, %v1401
          %v1403 = vrot.slane %v1396, %v1402
          %v1405 = vunpack.c.l.s4 1966171168
          %v1406 = vunpack.c.0.s8 %v1405
          %v1407 = vlaneseq
          %v1408 = vshrl.u32 %v1407, 7
          %v1409 = vsub.s32 %v1406, %v1408
          %v1410 = vrot.slane %v1403, %v1409
          %v1412 = vmul.f32 %v1393, %v1410
          %v1413 = vadd.f32 %v1384, %v1412
          %1414 = vrot.lane.b32.xlu0 %v329, 96
          %v1415 = vpop.permute.xlu0 %1414
          %1416 = vrot.lane.b32.xlu0 %v333, 96
          %v1417 = vpop.permute.xlu0 %1416
          %vm1418 = vcmp.lt.s32.totalorder %v341, 96
          %v1419 = vsel %vm1418, %v1415, %v1417
          %v1420 = vsel %vm1418, %v1417, %v1415
          %s1421 = scalar_lea.vmem [#allocation4], 76
          %v1422 = vld [vmem:[%s1421] sm:$0x3]
          %v1425 = vcombine.low %v1419, %v1420
          %v1427 = vunpack.c.l.s4 1966171168
          %v1428 = vunpack.c.0.s8 %v1427
          %v1429 = vlaneseq
          %v1430 = vshrl.u32 %v1429, 7
          %v1431 = vsub.s32 %v1428, %v1430
          %v1432 = vrot.slane %v1425, %v1431
          %v1434 = vunpack.c.l.s4 1966171168
          %v1435 = vunpack.c.0.s8 %v1434
          %v1436 = vlaneseq
          %v1437 = vshrl.u32 %v1436, 7
          %v1438 = vsub.s32 %v1435, %v1437
          %v1439 = vrot.slane %v1432, %v1438
          %v1441 = vmul.f32 %v1422, %v1439
          %v1442 = vadd.f32 %v1413, %v1441
          %1443 = vrot.lane.b32.xlu0 %v329, 95
          %v1444 = vpop.permute.xlu0 %1443
          %1445 = vrot.lane.b32.xlu0 %v333, 95
          %v1446 = vpop.permute.xlu0 %1445
          %vm1447 = vcmp.lt.s32.totalorder %v341, 95
          %v1448 = vsel %vm1447, %v1444, %v1446
          %v1449 = vsel %vm1447, %v1446, %v1444
          %s1450 = scalar_lea.vmem [#allocation4], 78
          %v1451 = vld [vmem:[%s1450] sm:$0x3]
          %v1454 = vcombine.low %v1448, %v1449
          %v1456 = vunpack.c.l.s4 1966171168
          %v1457 = vunpack.c.0.s8 %v1456
          %v1458 = vlaneseq
          %v1459 = vshrl.u32 %v1458, 7
          %v1460 = vsub.s32 %v1457, %v1459
          %v1461 = vrot.slane %v1454, %v1460
          %v1463 = vunpack.c.l.s4 1966171168
          %v1464 = vunpack.c.0.s8 %v1463
          %v1465 = vlaneseq
          %v1466 = vshrl.u32 %v1465, 7
          %v1467 = vsub.s32 %v1464, %v1466
          %v1468 = vrot.slane %v1461, %v1467
          %v1470 = vmul.f32 %v1451, %v1468
          %v1471 = vadd.f32 %v1442, %v1470
          %1472 = vrot.lane.b32.xlu0 %v329, 94
          %v1473 = vpop.permute.xlu0 %1472
          %1474 = vrot.lane.b32.xlu0 %v333, 94
          %v1475 = vpop.permute.xlu0 %1474
          %vm1476 = vcmp.lt.s32.totalorder %v341, 94
          %v1477 = vsel %vm1476, %v1473, %v1475
          %v1478 = vsel %vm1476, %v1475, %v1473
          %s1479 = scalar_lea.vmem [#allocation4], 80
          %v1480 = vld [vmem:[%s1479] sm:$0x3]
          %v1483 = vcombine.low %v1477, %v1478
          %v1485 = vunpack.c.l.s4 1966171168
          %v1486 = vunpack.c.0.s8 %v1485
          %v1487 = vlaneseq
          %v1488 = vshrl.u32 %v1487, 7
          %v1489 = vsub.s32 %v1486, %v1488
          %v1490 = vrot.slane %v1483, %v1489
          %v1492 = vunpack.c.l.s4 1966171168
          %v1493 = vunpack.c.0.s8 %v1492
          %v1494 = vlaneseq
          %v1495 = vshrl.u32 %v1494, 7
          %v1496 = vsub.s32 %v1493, %v1495
          %v1497 = vrot.slane %v1490, %v1496
          %v1499 = vmul.f32 %v1480, %v1497
          %v1500 = vadd.f32 %v1471, %v1499
          %1501 = vrot.lane.b32.xlu0 %v329, 93
          %v1502 = vpop.permute.xlu0 %1501
          %1503 = vrot.lane.b32.xlu0 %v333, 93
          %v1504 = vpop.permute.xlu0 %1503
          %vm1505 = vcmp.lt.s32.totalorder %v341, 93
          %v1506 = vsel %vm1505, %v1502, %v1504
          %v1507 = vsel %vm1505, %v1504, %v1502
          %s1508 = scalar_lea.vmem [#allocation4], 82
          %v1509 = vld [vmem:[%s1508] sm:$0x3]
          %v1512 = vcombine.low %v1506, %v1507
          %v1514 = vunpack.c.l.s4 1966171168
          %v1515 = vunpack.c.0.s8 %v1514
          %v1516 = vlaneseq
          %v1517 = vshrl.u32 %v1516, 7
          %v1518 = vsub.s32 %v1515, %v1517
          %v1519 = vrot.slane %v1512, %v1518
          %v1521 = vunpack.c.l.s4 1966171168
          %v1522 = vunpack.c.0.s8 %v1521
          %v1523 = vlaneseq
          %v1524 = vshrl.u32 %v1523, 7
          %v1525 = vsub.s32 %v1522, %v1524
          %v1526 = vrot.slane %v1519, %v1525
          %v1528 = vmul.f32 %v1509, %v1526
          %v1529 = vadd.f32 %v1500, %v1528
          %1530 = vrot.lane.b32.xlu0 %v329, 83
          %v1531 = vpop.permute.xlu0 %1530
          %1532 = vrot.lane.b32.xlu0 %v333, 83
          %v1533 = vpop.permute.xlu0 %1532
          %vm1534 = vcmp.lt.s32.totalorder %v341, 83
          %v1535 = vsel %vm1534, %v1531, %v1533
          %v1536 = vsel %vm1534, %v1533, %v1531
          %s1537 = scalar_lea.vmem [#allocation4], 84
          %v1538 = vld [vmem:[%s1537] sm:$0x3]
          %v1541 = vcombine.low %v1535, %v1536
          %v1543 = vunpack.c.l.s4 1966171168
          %v1544 = vunpack.c.0.s8 %v1543
          %v1545 = vlaneseq
          %v1546 = vshrl.u32 %v1545, 7
          %v1547 = vsub.s32 %v1544, %v1546
          %v1548 = vrot.slane %v1541, %v1547
          %v1550 = vunpack.c.l.s4 1966171168
          %v1551 = vunpack.c.0.s8 %v1550
          %v1552 = vlaneseq
          %v1553 = vshrl.u32 %v1552, 7
          %v1554 = vsub.s32 %v1551, %v1553
          %v1555 = vrot.slane %v1548, %v1554
          %v1557 = vmul.f32 %v1538, %v1555
          %v1558 = vadd.f32 %v1529, %v1557
          %1559 = vrot.lane.b32.xlu0 %v329, 82
          %v1560 = vpop.permute.xlu0 %1559
          %1561 = vrot.lane.b32.xlu0 %v333, 82
          %v1562 = vpop.permute.xlu0 %1561
          %vm1563 = vcmp.lt.s32.totalorder %v341, 82
          %v1564 = vsel %vm1563, %v1560, %v1562
          %v1565 = vsel %vm1563, %v1562, %v1560
          %s1566 = scalar_lea.vmem [#allocation4], 86
          %v1567 = vld [vmem:[%s1566] sm:$0x3]
          %v1570 = vcombine.low %v1564, %v1565
          %v1572 = vunpack.c.l.s4 1966171168
          %v1573 = vunpack.c.0.s8 %v1572
          %v1574 = vlaneseq
          %v1575 = vshrl.u32 %v1574, 7
          %v1576 = vsub.s32 %v1573, %v1575
          %v1577 = vrot.slane %v1570, %v1576
          %v1579 = vunpack.c.l.s4 1966171168
          %v1580 = vunpack.c.0.s8 %v1579
          %v1581 = vlaneseq
          %v1582 = vshrl.u32 %v1581, 7
          %v1583 = vsub.s32 %v1580, %v1582
          %v1584 = vrot.slane %v1577, %v1583
          %v1586 = vmul.f32 %v1567, %v1584
          %v1587 = vadd.f32 %v1558, %v1586
          %1588 = vrot.lane.b32.xlu0 %v329, 81
          %v1589 = vpop.permute.xlu0 %1588
          %1590 = vrot.lane.b32.xlu0 %v333, 81
          %v1591 = vpop.permute.xlu0 %1590
          %vm1592 = vcmp.lt.s32.totalorder %v341, 81
          %v1593 = vsel %vm1592, %v1589, %v1591
          %v1594 = vsel %vm1592, %v1591, %v1589
          %s1595 = scalar_lea.vmem [#allocation4], 88
          %v1596 = vld [vmem:[%s1595] sm:$0x3]
          %v1599 = vcombine.low %v1593, %v1594
          %v1601 = vunpack.c.l.s4 1966171168
          %v1602 = vunpack.c.0.s8 %v1601
          %v1603 = vlaneseq
          %v1604 = vshrl.u32 %v1603, 7
          %v1605 = vsub.s32 %v1602, %v1604
          %v1606 = vrot.slane %v1599, %v1605
          %v1608 = vunpack.c.l.s4 1966171168
          %v1609 = vunpack.c.0.s8 %v1608
          %v1610 = vlaneseq
          %v1611 = vshrl.u32 %v1610, 7
          %v1612 = vsub.s32 %v1609, %v1611
          %v1613 = vrot.slane %v1606, %v1612
          %v1615 = vmul.f32 %v1596, %v1613
          %v1616 = vadd.f32 %v1587, %v1615
          %1617 = vrot.lane.b32.xlu0 %v329, 80
          %v1618 = vpop.permute.xlu0 %1617
          %1619 = vrot.lane.b32.xlu0 %v333, 80
          %v1620 = vpop.permute.xlu0 %1619
          %vm1621 = vcmp.lt.s32.totalorder %v341, 80
          %v1622 = vsel %vm1621, %v1618, %v1620
          %v1623 = vsel %vm1621, %v1620, %v1618
          %s1624 = scalar_lea.vmem [#allocation4], 90
          %v1625 = vld [vmem:[%s1624] sm:$0x3]
          %v1628 = vcombine.low %v1622, %v1623
          %v1630 = vunpack.c.l.s4 1966171168
          %v1631 = vunpack.c.0.s8 %v1630
          %v1632 = vlaneseq
          %v1633 = vshrl.u32 %v1632, 7
          %v1634 = vsub.s32 %v1631, %v1633
          %v1635 = vrot.slane %v1628, %v1634
          %v1637 = vunpack.c.l.s4 1966171168
          %v1638 = vunpack.c.0.s8 %v1637
          %v1639 = vlaneseq
          %v1640 = vshrl.u32 %v1639, 7
          %v1641 = vsub.s32 %v1638, %v1640
          %v1642 = vrot.slane %v1635, %v1641
          %v1644 = vmul.f32 %v1625, %v1642
          %v1645 = vadd.f32 %v1616, %v1644
          %1646 = vrot.lane.b32.xlu0 %v329, 79
          %v1647 = vpop.permute.xlu0 %1646
          %1648 = vrot.lane.b32.xlu0 %v333, 79
          %v1649 = vpop.permute.xlu0 %1648
          %vm1650 = vcmp.lt.s32.totalorder %v341, 79
          %v1651 = vsel %vm1650, %v1647, %v1649
          %v1652 = vsel %vm1650, %v1649, %v1647
          %s1653 = scalar_lea.vmem [#allocation4], 92
          %v1654 = vld [vmem:[%s1653] sm:$0x3]
          %v1657 = vcombine.low %v1651, %v1652
          %v1659 = vunpack.c.l.s4 1966171168
          %v1660 = vunpack.c.0.s8 %v1659
          %v1661 = vlaneseq
          %v1662 = vshrl.u32 %v1661, 7
          %v1663 = vsub.s32 %v1660, %v1662
          %v1664 = vrot.slane %v1657, %v1663
          %v1666 = vunpack.c.l.s4 1966171168
          %v1667 = vunpack.c.0.s8 %v1666
          %v1668 = vlaneseq
          %v1669 = vshrl.u32 %v1668, 7
          %v1670 = vsub.s32 %v1667, %v1669
          %v1671 = vrot.slane %v1664, %v1670
          %v1673 = vmul.f32 %v1654, %v1671
          %v1674 = vadd.f32 %v1645, %v1673
          %1675 = vrot.lane.b32.xlu0 %v329, 78
          %v1676 = vpop.permute.xlu0 %1675
          %1677 = vrot.lane.b32.xlu0 %v333, 78
          %v1678 = vpop.permute.xlu0 %1677
          %vm1679 = vcmp.lt.s32.totalorder %v341, 78
          %v1680 = vsel %vm1679, %v1676, %v1678
          %v1681 = vsel %vm1679, %v1678, %v1676
          %s1682 = scalar_lea.vmem [#allocation4], 94
          %v1683 = vld [vmem:[%s1682] sm:$0x3]
          %v1686 = vcombine.low %v1680, %v1681
          %v1688 = vunpack.c.l.s4 1966171168
          %v1689 = vunpack.c.0.s8 %v1688
          %v1690 = vlaneseq
          %v1691 = vshrl.u32 %v1690, 7
          %v1692 = vsub.s32 %v1689, %v1691
          %v1693 = vrot.slane %v1686, %v1692
          %v1695 = vunpack.c.l.s4 1966171168
          %v1696 = vunpack.c.0.s8 %v1695
          %v1697 = vlaneseq
          %v1698 = vshrl.u32 %v1697, 7
          %v1699 = vsub.s32 %v1696, %v1698
          %v1700 = vrot.slane %v1693, %v1699
          %v1702 = vmul.f32 %v1683, %v1700
          %v1703 = vadd.f32 %v1674, %v1702
          %1704 = vrot.lane.b32.xlu0 %v329, 77
          %v1705 = vpop.permute.xlu0 %1704
          %1706 = vrot.lane.b32.xlu0 %v333, 77
          %v1707 = vpop.permute.xlu0 %1706
          %vm1708 = vcmp.lt.s32.totalorder %v341, 77
          %v1709 = vsel %vm1708, %v1705, %v1707
          %v1710 = vsel %vm1708, %v1707, %v1705
          %s1711 = scalar_lea.vmem [#allocation4], 96
          %v1712 = vld [vmem:[%s1711] sm:$0x3]
          %v1715 = vcombine.low %v1709, %v1710
          %v1717 = vunpack.c.l.s4 1966171168
          %v1718 = vunpack.c.0.s8 %v1717
          %v1719 = vlaneseq
          %v1720 = vshrl.u32 %v1719, 7
          %v1721 = vsub.s32 %v1718, %v1720
          %v1722 = vrot.slane %v1715, %v1721
          %v1724 = vunpack.c.l.s4 1966171168
          %v1725 = vunpack.c.0.s8 %v1724
          %v1726 = vlaneseq
          %v1727 = vshrl.u32 %v1726, 7
          %v1728 = vsub.s32 %v1725, %v1727
          %v1729 = vrot.slane %v1722, %v1728
          %v1731 = vmul.f32 %v1712, %v1729
          %v1732 = vadd.f32 %v1703, %v1731
          %v1734 = vlaneseq
          %v1735 = vshrl.u32 %v1734, 7
          %v1736 = vsub.s32 0, %v1735
          %v1737 = vrot.slane %v324, %v1736
          %v1738 = vlaneseq
          %v1739 = vshrl.u32 %v1738, 7
          %v1740 = vsub.s32 1, %v1739
          %v1741 = vrot.slane %v324, %v1740
          %1744 = vrot.lane.b32.xlu0 %v1737, 51
          %v1745 = vpop.permute.xlu0 %1744
          %1746 = vrot.lane.b32.xlu0 %v1741, 51
          %v1747 = vpop.permute.xlu0 %1746
          %v1748 = vsel %vm342, %v1745, %v1747
          %v1749 = vsel %vm342, %v1747, %v1745
          %s1750 = scalar_lea.vmem [#allocation4], 98
          %v1751 = vld [vmem:[%s1750] sm:$0x3]
          %v1754 = vcombine.low %v1749, %v1748
          %v1756 = vunpack.c.l.s4 1966171168
          %v1757 = vunpack.c.0.s8 %v1756
          %v1758 = vlaneseq
          %v1759 = vshrl.u32 %v1758, 7
          %v1760 = vsub.s32 %v1757, %v1759
          %v1761 = vrot.slane %v1754, %v1760
          %v1763 = vunpack.c.l.s4 1966171168
          %v1764 = vunpack.c.0.s8 %v1763
          %v1765 = vlaneseq
          %v1766 = vshrl.u32 %v1765, 7
          %v1767 = vsub.s32 %v1764, %v1766
          %v1768 = vrot.slane %v1761, %v1767
          %v1770 = vmul.f32 %v1751, %v1768
          %v1771 = vadd.f32 %v1770, 0.0
          %1772 = vrot.lane.b32.xlu0 %v1737, 50
          %v1773 = vpop.permute.xlu0 %1772
          %1774 = vrot.lane.b32.xlu0 %v1741, 50
          %v1775 = vpop.permute.xlu0 %1774
          %v1776 = vsel %vm370, %v1773, %v1775
          %v1777 = vsel %vm370, %v1775, %v1773
          %s1778 = scalar_lea.vmem [#allocation4], 100
          %v1779 = vld [vmem:[%s1778] sm:$0x3]
          %v1782 = vcombine.low %v1777, %v1776
          %v1784 = vunpack.c.l.s4 1966171168
          %v1785 = vunpack.c.0.s8 %v1784
          %v1786 = vlaneseq
          %v1787 = vshrl.u32 %v1786, 7
          %v1788 = vsub.s32 %v1785, %v1787
          %v1789 = vrot.slane %v1782, %v1788
          %v1791 = vunpack.c.l.s4 1966171168
          %v1792 = vunpack.c.0.s8 %v1791
          %v1793 = vlaneseq
          %v1794 = vshrl.u32 %v1793, 7
          %v1795 = vsub.s32 %v1792, %v1794
          %v1796 = vrot.slane %v1789, %v1795
          %v1798 = vmul.f32 %v1779, %v1796
          %v1799 = vadd.f32 %v1771, %v1798
          %1800 = vrot.lane.b32.xlu0 %v1737, 49
          %v1801 = vpop.permute.xlu0 %1800
          %1802 = vrot.lane.b32.xlu0 %v1741, 49
          %v1803 = vpop.permute.xlu0 %1802
          %v1804 = vsel %vm399, %v1801, %v1803
          %v1805 = vsel %vm399, %v1803, %v1801
          %s1806 = scalar_lea.vmem [#allocation4], 102
          %v1807 = vld [vmem:[%s1806] sm:$0x3]
          %v1810 = vcombine.low %v1805, %v1804
          %v1812 = vunpack.c.l.s4 1966171168
          %v1813 = vunpack.c.0.s8 %v1812
          %v1814 = vlaneseq
          %v1815 = vshrl.u32 %v1814, 7
          %v1816 = vsub.s32 %v1813, %v1815
          %v1817 = vrot.slane %v1810, %v1816
          %v1819 = vunpack.c.l.s4 1966171168
          %v1820 = vunpack.c.0.s8 %v1819
          %v1821 = vlaneseq
          %v1822 = vshrl.u32 %v1821, 7
          %v1823 = vsub.s32 %v1820, %v1822
          %v1824 = vrot.slane %v1817, %v1823
          %v1826 = vmul.f32 %v1807, %v1824
          %v1827 = vadd.f32 %v1799, %v1826
          %1828 = vrot.lane.b32.xlu0 %v1737, 48
          %v1829 = vpop.permute.xlu0 %1828
          %1830 = vrot.lane.b32.xlu0 %v1741, 48
          %v1831 = vpop.permute.xlu0 %1830
          %v1832 = vsel %vm428, %v1829, %v1831
          %v1833 = vsel %vm428, %v1831, %v1829
          %s1834 = scalar_lea.vmem [#allocation4], 104
          %v1835 = vld [vmem:[%s1834] sm:$0x3]
          %v1838 = vcombine.low %v1833, %v1832
          %v1840 = vunpack.c.l.s4 1966171168
          %v1841 = vunpack.c.0.s8 %v1840
          %v1842 = vlaneseq
          %v1843 = vshrl.u32 %v1842, 7
          %v1844 = vsub.s32 %v1841, %v1843
          %v1845 = vrot.slane %v1838, %v1844
          %v1847 = vunpack.c.l.s4 1966171168
          %v1848 = vunpack.c.0.s8 %v1847
          %v1849 = vlaneseq
          %v1850 = vshrl.u32 %v1849, 7
          %v1851 = vsub.s32 %v1848, %v1850
          %v1852 = vrot.slane %v1845, %v1851
          %v1854 = vmul.f32 %v1835, %v1852
          %v1855 = vadd.f32 %v1827, %v1854
          %1856 = vrot.lane.b32.xlu0 %v1737, 47
          %v1857 = vpop.permute.xlu0 %1856
          %1858 = vrot.lane.b32.xlu0 %v1741, 47
          %v1859 = vpop.permute.xlu0 %1858
          %v1860 = vsel %vm457, %v1857, %v1859
          %v1861 = vsel %vm457, %v1859, %v1857
          %s1862 = scalar_lea.vmem [#allocation4], 106
          %v1863 = vld [vmem:[%s1862] sm:$0x3]
          %v1866 = vcombine.low %v1861, %v1860
          %v1868 = vunpack.c.l.s4 1966171168
          %v1869 = vunpack.c.0.s8 %v1868
          %v1870 = vlaneseq
          %v1871 = vshrl.u32 %v1870, 7
          %v1872 = vsub.s32 %v1869, %v1871
          %v1873 = vrot.slane %v1866, %v1872
          %v1875 = vunpack.c.l.s4 1966171168
          %v1876 = vunpack.c.0.s8 %v1875
          %v1877 = vlaneseq
          %v1878 = vshrl.u32 %v1877, 7
          %v1879 = vsub.s32 %v1876, %v1878
          %v1880 = vrot.slane %v1873, %v1879
          %v1882 = vmul.f32 %v1863, %v1880
          %v1883 = vadd.f32 %v1855, %v1882
          %1884 = vrot.lane.b32.xlu0 %v1737, 46
          %v1885 = vpop.permute.xlu0 %1884
          %1886 = vrot.lane.b32.xlu0 %v1741, 46
          %v1887 = vpop.permute.xlu0 %1886
          %v1888 = vsel %vm486, %v1885, %v1887
          %v1889 = vsel %vm486, %v1887, %v1885
          %s1890 = scalar_lea.vmem [#allocation4], 108
          %v1891 = vld [vmem:[%s1890] sm:$0x3]
          %v1894 = vcombine.low %v1889, %v1888
          %v1896 = vunpack.c.l.s4 1966171168
          %v1897 = vunpack.c.0.s8 %v1896
          %v1898 = vlaneseq
          %v1899 = vshrl.u32 %v1898, 7
          %v1900 = vsub.s32 %v1897, %v1899
          %v1901 = vrot.slane %v1894, %v1900
          %v1903 = vunpack.c.l.s4 1966171168
          %v1904 = vunpack.c.0.s8 %v1903
          %v1905 = vlaneseq
          %v1906 = vshrl.u32 %v1905, 7
          %v1907 = vsub.s32 %v1904, %v1906
          %v1908 = vrot.slane %v1901, %v1907
          %v1910 = vmul.f32 %v1891, %v1908
          %v1911 = vadd.f32 %v1883, %v1910
          %1912 = vrot.lane.b32.xlu0 %v1737, 45
          %v1913 = vpop.permute.xlu0 %1912
          %1914 = vrot.lane.b32.xlu0 %v1741, 45
          %v1915 = vpop.permute.xlu0 %1914
          %v1916 = vsel %vm515, %v1913, %v1915
          %v1917 = vsel %vm515, %v1915, %v1913
          %s1918 = scalar_lea.vmem [#allocation4], 110
          %v1919 = vld [vmem:[%s1918] sm:$0x3]
          %v1922 = vcombine.low %v1917, %v1916
          %v1924 = vunpack.c.l.s4 1966171168
          %v1925 = vunpack.c.0.s8 %v1924
          %v1926 = vlaneseq
          %v1927 = vshrl.u32 %v1926, 7
          %v1928 = vsub.s32 %v1925, %v1927
          %v1929 = vrot.slane %v1922, %v1928
          %v1931 = vunpack.c.l.s4 1966171168
          %v1932 = vunpack.c.0.s8 %v1931
          %v1933 = vlaneseq
          %v1934 = vshrl.u32 %v1933, 7
          %v1935 = vsub.s32 %v1932, %v1934
          %v1936 = vrot.slane %v1929, %v1935
          %v1938 = vmul.f32 %v1919, %v1936
          %v1939 = vadd.f32 %v1911, %v1938
          %1940 = vrot.lane.b32.xlu0 %v1737, 35
          %v1941 = vpop.permute.xlu0 %1940
          %1942 = vrot.lane.b32.xlu0 %v1741, 35
          %v1943 = vpop.permute.xlu0 %1942
          %v1944 = vsel %vm544, %v1941, %v1943
          %v1945 = vsel %vm544, %v1943, %v1941
          %s1946 = scalar_lea.vmem [#allocation4], 112
          %v1947 = vld [vmem:[%s1946] sm:$0x3]
          %v1950 = vcombine.low %v1945, %v1944
          %v1952 = vunpack.c.l.s4 1966171168
          %v1953 = vunpack.c.0.s8 %v1952
          %v1954 = vlaneseq
          %v1955 = vshrl.u32 %v1954, 7
          %v1956 = vsub.s32 %v1953, %v1955
          %v1957 = vrot.slane %v1950, %v1956
          %v1959 = vunpack.c.l.s4 1966171168
          %v1960 = vunpack.c.0.s8 %v1959
          %v1961 = vlaneseq
          %v1962 = vshrl.u32 %v1961, 7
          %v1963 = vsub.s32 %v1960, %v1962
          %v1964 = vrot.slane %v1957, %v1963
          %v1966 = vmul.f32 %v1947, %v1964
          %v1967 = vadd.f32 %v1939, %v1966
          %1968 = vrot.lane.b32.xlu0 %v1737, 34
          %v1969 = vpop.permute.xlu0 %1968
          %1970 = vrot.lane.b32.xlu0 %v1741, 34
          %v1971 = vpop.permute.xlu0 %1970
          %v1972 = vsel %vm573, %v1969, %v1971
          %v1973 = vsel %vm573, %v1971, %v1969
          %s1974 = scalar_lea.vmem [#allocation4], 114
          %v1975 = vld [vmem:[%s1974] sm:$0x3]
          %v1978 = vcombine.low %v1973, %v1972
          %v1980 = vunpack.c.l.s4 1966171168
          %v1981 = vunpack.c.0.s8 %v1980
          %v1982 = vlaneseq
          %v1983 = vshrl.u32 %v1982, 7
          %v1984 = vsub.s32 %v1981, %v1983
          %v1985 = vrot.slane %v1978, %v1984
          %v1987 = vunpack.c.l.s4 1966171168
          %v1988 = vunpack.c.0.s8 %v1987
          %v1989 = vlaneseq
          %v1990 = vshrl.u32 %v1989, 7
          %v1991 = vsub.s32 %v1988, %v1990
          %v1992 = vrot.slane %v1985, %v1991
          %v1994 = vmul.f32 %v1975, %v1992
          %v1995 = vadd.f32 %v1967, %v1994
          %1996 = vrot.lane.b32.xlu0 %v1737, 33
          %v1997 = vpop.permute.xlu0 %1996
          %1998 = vrot.lane.b32.xlu0 %v1741, 33
          %v1999 = vpop.permute.xlu0 %1998
          %v2000 = vsel %vm602, %v1997, %v1999
          %v2001 = vsel %vm602, %v1999, %v1997
          %s2002 = scalar_lea.vmem [#allocation4], 116
          %v2003 = vld [vmem:[%s2002] sm:$0x3]
          %v2006 = vcombine.low %v2001, %v2000
          %v2008 = vunpack.c.l.s4 1966171168
          %v2009 = vunpack.c.0.s8 %v2008
          %v2010 = vlaneseq
          %v2011 = vshrl.u32 %v2010, 7
          %v2012 = vsub.s32 %v2009, %v2011
          %v2013 = vrot.slane %v2006, %v2012
          %v2015 = vunpack.c.l.s4 1966171168
          %v2016 = vunpack.c.0.s8 %v2015
          %v2017 = vlaneseq
          %v2018 = vshrl.u32 %v2017, 7
          %v2019 = vsub.s32 %v2016, %v2018
          %v2020 = vrot.slane %v2013, %v2019
          %v2022 = vmul.f32 %v2003, %v2020
          %v2023 = vadd.f32 %v1995, %v2022
          %2024 = vrot.lane.b32.xlu0 %v1737, 32
          %v2025 = vpop.permute.xlu0 %2024
          %2026 = vrot.lane.b32.xlu0 %v1741, 32
          %v2027 = vpop.permute.xlu0 %2026
          %v2028 = vsel %vm631, %v2025, %v2027
          %v2029 = vsel %vm631, %v2027, %v2025
          %s2030 = scalar_lea.vmem [#allocation4], 118
          %v2031 = vld [vmem:[%s2030] sm:$0x3]
          %v2034 = vcombine.low %v2029, %v2028
          %v2036 = vunpack.c.l.s4 1966171168
          %v2037 = vunpack.c.0.s8 %v2036
          %v2038 = vlaneseq
          %v2039 = vshrl.u32 %v2038, 7
          %v2040 = vsub.s32 %v2037, %v2039
          %v2041 = vrot.slane %v2034, %v2040
          %v2043 = vunpack.c.l.s4 1966171168
          %v2044 = vunpack.c.0.s8 %v2043
          %v2045 = vlaneseq
          %v2046 = vshrl.u32 %v2045, 7
          %v2047 = vsub.s32 %v2044, %v2046
          %v2048 = vrot.slane %v2041, %v2047
          %v2050 = vmul.f32 %v2031, %v2048
          %v2051 = vadd.f32 %v2023, %v2050
          %2052 = vrot.lane.b32.xlu0 %v1737, 31
          %v2053 = vpop.permute.xlu0 %2052
          %2054 = vrot.lane.b32.xlu0 %v1741, 31
          %v2055 = vpop.permute.xlu0 %2054
          %v2056 = vsel %vm660, %v2053, %v2055
          %v2057 = vsel %vm660, %v2055, %v2053
          %s2058 = scalar_lea.vmem [#allocation4], 120
          %v2059 = vld [vmem:[%s2058] sm:$0x3]
          %v2062 = vcombine.low %v2057, %v2056
          %v2064 = vunpack.c.l.s4 1966171168
          %v2065 = vunpack.c.0.s8 %v2064
          %v2066 = vlaneseq
          %v2067 = vshrl.u32 %v2066, 7
          %v2068 = vsub.s32 %v2065, %v2067
          %v2069 = vrot.slane %v2062, %v2068
          %v2071 = vunpack.c.l.s4 1966171168
          %v2072 = vunpack.c.0.s8 %v2071
          %v2073 = vlaneseq
          %v2074 = vshrl.u32 %v2073, 7
          %v2075 = vsub.s32 %v2072, %v2074
          %v2076 = vrot.slane %v2069, %v2075
          %v2078 = vmul.f32 %v2059, %v2076
          %v2079 = vadd.f32 %v2051, %v2078
          %2080 = vrot.lane.b32.xlu0 %v1737, 30
          %v2081 = vpop.permute.xlu0 %2080
          %2082 = vrot.lane.b32.xlu0 %v1741, 30
          %v2083 = vpop.permute.xlu0 %2082
          %v2084 = vsel %vm689, %v2081, %v2083
          %v2085 = vsel %vm689, %v2083, %v2081
          %s2086 = scalar_lea.vmem [#allocation4], 122
          %v2087 = vld [vmem:[%s2086] sm:$0x3]
          %v2090 = vcombine.low %v2085, %v2084
          %v2092 = vunpack.c.l.s4 1966171168
          %v2093 = vunpack.c.0.s8 %v2092
          %v2094 = vlaneseq
          %v2095 = vshrl.u32 %v2094, 7
          %v2096 = vsub.s32 %v2093, %v2095
          %v2097 = vrot.slane %v2090, %v2096
          %v2099 = vunpack.c.l.s4 1966171168
          %v2100 = vunpack.c.0.s8 %v2099
          %v2101 = vlaneseq
          %v2102 = vshrl.u32 %v2101, 7
          %v2103 = vsub.s32 %v2100, %v2102
          %v2104 = vrot.slane %v2097, %v2103
          %v2106 = vmul.f32 %v2087, %v2104
          %v2107 = vadd.f32 %v2079, %v2106
          %2108 = vrot.lane.b32.xlu0 %v1737, 29
          %v2109 = vpop.permute.xlu0 %2108
          %2110 = vrot.lane.b32.xlu0 %v1741, 29
          %v2111 = vpop.permute.xlu0 %2110
          %v2112 = vsel %vm718, %v2109, %v2111
          %v2113 = vsel %vm718, %v2111, %v2109
          %s2114 = scalar_lea.vmem [#allocation4], 124
          %v2115 = vld [vmem:[%s2114] sm:$0x3]
          %v2118 = vcombine.low %v2113, %v2112
          %v2120 = vunpack.c.l.s4 1966171168
          %v2121 = vunpack.c.0.s8 %v2120
          %v2122 = vlaneseq
          %v2123 = vshrl.u32 %v2122, 7
          %v2124 = vsub.s32 %v2121, %v2123
          %v2125 = vrot.slane %v2118, %v2124
          %v2127 = vunpack.c.l.s4 1966171168
          %v2128 = vunpack.c.0.s8 %v2127
          %v2129 = vlaneseq
          %v2130 = vshrl.u32 %v2129, 7
          %v2131 = vsub.s32 %v2128, %v2130
          %v2132 = vrot.slane %v2125, %v2131
          %v2134 = vmul.f32 %v2115, %v2132
          %v2135 = vadd.f32 %v2107, %v2134
          %2136 = vrot.lane.b32.xlu0 %v1737, 19
          %v2137 = vpop.permute.xlu0 %2136
          %2138 = vrot.lane.b32.xlu0 %v1741, 19
          %v2139 = vpop.permute.xlu0 %2138
          %v2140 = vsel %vm747, %v2137, %v2139
          %v2141 = vsel %vm747, %v2139, %v2137
          %s2142 = scalar_lea.vmem [#allocation4], 126
          %v2143 = vld [vmem:[%s2142] sm:$0x3]
          %v2146 = vcombine.low %v2141, %v2140
          %v2148 = vunpack.c.l.s4 1966171168
          %v2149 = vunpack.c.0.s8 %v2148
          %v2150 = vlaneseq
          %v2151 = vshrl.u32 %v2150, 7
          %v2152 = vsub.s32 %v2149, %v2151
          %v2153 = vrot.slane %v2146, %v2152
          %v2155 = vunpack.c.l.s4 1966171168
          %v2156 = vunpack.c.0.s8 %v2155
          %v2157 = vlaneseq
          %v2158 = vshrl.u32 %v2157, 7
          %v2159 = vsub.s32 %v2156, %v2158
          %v2160 = vrot.slane %v2153, %v2159
          %v2162 = vmul.f32 %v2143, %v2160
          %v2163 = vadd.f32 %v2135, %v2162
          %2164 = vrot.lane.b32.xlu0 %v1737, 18
          %v2165 = vpop.permute.xlu0 %2164
          %2166 = vrot.lane.b32.xlu0 %v1741, 18
          %v2167 = vpop.permute.xlu0 %2166
          %v2168 = vsel %vm776, %v2165, %v2167
          %v2169 = vsel %vm776, %v2167, %v2165
          %s2170 = scalar_lea.vmem [#allocation4], 128
          %v2171 = vld [vmem:[%s2170] sm:$0x3]
          %v2174 = vcombine.low %v2169, %v2168
          %v2176 = vunpack.c.l.s4 1966171168
          %v2177 = vunpack.c.0.s8 %v2176
          %v2178 = vlaneseq
          %v2179 = vshrl.u32 %v2178, 7
          %v2180 = vsub.s32 %v2177, %v2179
          %v2181 = vrot.slane %v2174, %v2180
          %v2183 = vunpack.c.l.s4 1966171168
          %v2184 = vunpack.c.0.s8 %v2183
          %v2185 = vlaneseq
          %v2186 = vshrl.u32 %v2185, 7
          %v2187 = vsub.s32 %v2184, %v2186
          %v2188 = vrot.slane %v2181, %v2187
          %v2190 = vmul.f32 %v2171, %v2188
          %v2191 = vadd.f32 %v2163, %v2190
          %2192 = vrot.lane.b32.xlu0 %v1737, 17
          %v2193 = vpop.permute.xlu0 %2192
          %2194 = vrot.lane.b32.xlu0 %v1741, 17
          %v2195 = vpop.permute.xlu0 %2194
          %v2196 = vsel %vm805, %v2193, %v2195
          %v2197 = vsel %vm805, %v2195, %v2193
          %s2198 = scalar_lea.vmem [#allocation4], 130
          %v2199 = vld [vmem:[%s2198] sm:$0x3]
          %v2202 = vcombine.low %v2197, %v2196
          %v2204 = vunpack.c.l.s4 1966171168
          %v2205 = vunpack.c.0.s8 %v2204
          %v2206 = vlaneseq
          %v2207 = vshrl.u32 %v2206, 7
          %v2208 = vsub.s32 %v2205, %v2207
          %v2209 = vrot.slane %v2202, %v2208
          %v2211 = vunpack.c.l.s4 1966171168
          %v2212 = vunpack.c.0.s8 %v2211
          %v2213 = vlaneseq
          %v2214 = vshrl.u32 %v2213, 7
          %v2215 = vsub.s32 %v2212, %v2214
          %v2216 = vrot.slane %v2209, %v2215
          %v2218 = vmul.f32 %v2199, %v2216
          %v2219 = vadd.f32 %v2191, %v2218
          %2220 = vrot.lane.b32.xlu0 %v1737, 16
          %v2221 = vpop.permute.xlu0 %2220
          %2222 = vrot.lane.b32.xlu0 %v1741, 16
          %v2223 = vpop.permute.xlu0 %2222
          %v2224 = vsel %vm834, %v2221, %v2223
          %v2225 = vsel %vm834, %v2223, %v2221
          %s2226 = scalar_lea.vmem [#allocation4], 132
          %v2227 = vld [vmem:[%s2226] sm:$0x3]
          %v2230 = vcombine.low %v2225, %v2224
          %v2232 = vunpack.c.l.s4 1966171168
          %v2233 = vunpack.c.0.s8 %v2232
          %v2234 = vlaneseq
          %v2235 = vshrl.u32 %v2234, 7
          %v2236 = vsub.s32 %v2233, %v2235
          %v2237 = vrot.slane %v2230, %v2236
          %v2239 = vunpack.c.l.s4 1966171168
          %v2240 = vunpack.c.0.s8 %v2239
          %v2241 = vlaneseq
          %v2242 = vshrl.u32 %v2241, 7
          %v2243 = vsub.s32 %v2240, %v2242
          %v2244 = vrot.slane %v2237, %v2243
          %v2246 = vmul.f32 %v2227, %v2244
          %v2247 = vadd.f32 %v2219, %v2246
          %2248 = vrot.lane.b32.xlu0 %v1737, 15
          %v2249 = vpop.permute.xlu0 %2248
          %2250 = vrot.lane.b32.xlu0 %v1741, 15
          %v2251 = vpop.permute.xlu0 %2250
          %v2252 = vsel %vm863, %v2249, %v2251
          %v2253 = vsel %vm863, %v2251, %v2249
          %s2254 = scalar_lea.vmem [#allocation4], 134
          %v2255 = vld [vmem:[%s2254] sm:$0x3]
          %v2258 = vcombine.low %v2253, %v2252
          %v2260 = vunpack.c.l.s4 1966171168
          %v2261 = vunpack.c.0.s8 %v2260
          %v2262 = vlaneseq
          %v2263 = vshrl.u32 %v2262, 7
          %v2264 = vsub.s32 %v2261, %v2263
          %v2265 = vrot.slane %v2258, %v2264
          %v2267 = vunpack.c.l.s4 1966171168
          %v2268 = vunpack.c.0.s8 %v2267
          %v2269 = vlaneseq
          %v2270 = vshrl.u32 %v2269, 7
          %v2271 = vsub.s32 %v2268, %v2270
          %v2272 = vrot.slane %v2265, %v2271
          %v2274 = vmul.f32 %v2255, %v2272
          %v2275 = vadd.f32 %v2247, %v2274
          %2276 = vrot.lane.b32.xlu0 %v1737, 14
          %v2277 = vpop.permute.xlu0 %2276
          %2278 = vrot.lane.b32.xlu0 %v1741, 14
          %v2279 = vpop.permute.xlu0 %2278
          %v2280 = vsel %vm892, %v2277, %v2279
          %v2281 = vsel %vm892, %v2279, %v2277
          %s2282 = scalar_lea.vmem [#allocation4], 136
          %v2283 = vld [vmem:[%s2282] sm:$0x3]
          %v2286 = vcombine.low %v2281, %v2280
          %v2288 = vunpack.c.l.s4 1966171168
          %v2289 = vunpack.c.0.s8 %v2288
          %v2290 = vlaneseq
          %v2291 = vshrl.u32 %v2290, 7
          %v2292 = vsub.s32 %v2289, %v2291
          %v2293 = vrot.slane %v2286, %v2292
          %v2295 = vunpack.c.l.s4 1966171168
          %v2296 = vunpack.c.0.s8 %v2295
          %v2297 = vlaneseq
          %v2298 = vshrl.u32 %v2297, 7
          %v2299 = vsub.s32 %v2296, %v2298
          %v2300 = vrot.slane %v2293, %v2299
          %v2302 = vmul.f32 %v2283, %v2300
          %v2303 = vadd.f32 %v2275, %v2302
          %2304 = vrot.lane.b32.xlu0 %v1737, 13
          %v2305 = vpop.permute.xlu0 %2304
          %2306 = vrot.lane.b32.xlu0 %v1741, 13
          %v2307 = vpop.permute.xlu0 %2306
          %v2308 = vsel %vm921, %v2305, %v2307
          %v2309 = vsel %vm921, %v2307, %v2305
          %s2310 = scalar_lea.vmem [#allocation4], 138
          %v2311 = vld [vmem:[%s2310] sm:$0x3]
          %v2314 = vcombine.low %v2309, %v2308
          %v2316 = vunpack.c.l.s4 1966171168
          %v2317 = vunpack.c.0.s8 %v2316
          %v2318 = vlaneseq
          %v2319 = vshrl.u32 %v2318, 7
          %v2320 = vsub.s32 %v2317, %v2319
          %v2321 = vrot.slane %v2314, %v2320
          %v2323 = vunpack.c.l.s4 1966171168
          %v2324 = vunpack.c.0.s8 %v2323
          %v2325 = vlaneseq
          %v2326 = vshrl.u32 %v2325, 7
          %v2327 = vsub.s32 %v2324, %v2326
          %v2328 = vrot.slane %v2321, %v2327
          %v2330 = vmul.f32 %v2311, %v2328
          %v2331 = vadd.f32 %v2303, %v2330
          %2332 = vrot.lane.b32.xlu0 %v1737, 3
          %v2333 = vpop.permute.xlu0 %2332
          %2334 = vrot.lane.b32.xlu0 %v1741, 3
          %v2335 = vpop.permute.xlu0 %2334
          %v2336 = vsel %vm950, %v2333, %v2335
          %v2337 = vsel %vm950, %v2335, %v2333
          %s2338 = scalar_lea.vmem [#allocation4], 140
          %v2339 = vld [vmem:[%s2338] sm:$0x3]
          %v2342 = vcombine.low %v2337, %v2336
          %v2344 = vunpack.c.l.s4 1966171168
          %v2345 = vunpack.c.0.s8 %v2344
          %v2346 = vlaneseq
          %v2347 = vshrl.u32 %v2346, 7
          %v2348 = vsub.s32 %v2345, %v2347
          %v2349 = vrot.slane %v2342, %v2348
          %v2351 = vunpack.c.l.s4 1966171168
          %v2352 = vunpack.c.0.s8 %v2351
          %v2353 = vlaneseq
          %v2354 = vshrl.u32 %v2353, 7
          %v2355 = vsub.s32 %v2352, %v2354
          %v2356 = vrot.slane %v2349, %v2355
          %v2358 = vmul.f32 %v2339, %v2356
          %v2359 = vadd.f32 %v2331, %v2358
          %2360 = vrot.lane.b32.xlu0 %v1737, 2
          %v2361 = vpop.permute.xlu0 %2360
          %2362 = vrot.lane.b32.xlu0 %v1741, 2
          %v2363 = vpop.permute.xlu0 %2362
          %v2364 = vsel %vm979, %v2361, %v2363
          %v2365 = vsel %vm979, %v2363, %v2361
          %s2366 = scalar_lea.vmem [#allocation4], 142
          %v2367 = vld [vmem:[%s2366] sm:$0x3]
          %v2370 = vcombine.low %v2365, %v2364
          %v2372 = vunpack.c.l.s4 1966171168
          %v2373 = vunpack.c.0.s8 %v2372
          %v2374 = vlaneseq
          %v2375 = vshrl.u32 %v2374, 7
          %v2376 = vsub.s32 %v2373, %v2375
          %v2377 = vrot.slane %v2370, %v2376
          %v2379 = vunpack.c.l.s4 1966171168
          %v2380 = vunpack.c.0.s8 %v2379
          %v2381 = vlaneseq
          %v2382 = vshrl.u32 %v2381, 7
          %v2383 = vsub.s32 %v2380, %v2382
          %v2384 = vrot.slane %v2377, %v2383
          %v2386 = vmul.f32 %v2367, %v2384
          %v2387 = vadd.f32 %v2359, %v2386
          %2388 = vrot.lane.b32.xlu0 %v1737, 1
          %v2389 = vpop.permute.xlu0 %2388
          %2390 = vrot.lane.b32.xlu0 %v1741, 1
          %v2391 = vpop.permute.xlu0 %2390
          %v2392 = vsel %vm1008, %v2389, %v2391
          %v2393 = vsel %vm1008, %v2391, %v2389
          %s2394 = scalar_lea.vmem [#allocation4], 144
          %v2395 = vld [vmem:[%s2394] sm:$0x3]
          %v2398 = vcombine.low %v2393, %v2392
          %v2400 = vunpack.c.l.s4 1966171168
          %v2401 = vunpack.c.0.s8 %v2400
          %v2402 = vlaneseq
          %v2403 = vshrl.u32 %v2402, 7
          %v2404 = vsub.s32 %v2401, %v2403
          %v2405 = vrot.slane %v2398, %v2404
          %v2407 = vunpack.c.l.s4 1966171168
          %v2408 = vunpack.c.0.s8 %v2407
          %v2409 = vlaneseq
          %v2410 = vshrl.u32 %v2409, 7
          %v2411 = vsub.s32 %v2408, %v2410
          %v2412 = vrot.slane %v2405, %v2411
          %v2414 = vmul.f32 %v2395, %v2412
          %v2415 = vadd.f32 %v2387, %v2414
          %s2416 = scalar_lea.vmem [#allocation4], 146
          %v2417 = vld [vmem:[%s2416] sm:$0x3]
          %v2418 = vmul.f32 %v2417, %v324
          %v2419 = vadd.f32 %v2415, %v2418
          %2420 = vrot.lane.b32.xlu0 %v1737, 127
          %v2421 = vpop.permute.xlu0 %2420
          %2422 = vrot.lane.b32.xlu0 %v1741, 127
          %v2423 = vpop.permute.xlu0 %2422
          %v2424 = vsel %vm1041, %v2421, %v2423
          %v2425 = vsel %vm1041, %v2423, %v2421
          %s2426 = scalar_lea.vmem [#allocation4], 148
          %v2427 = vld [vmem:[%s2426] sm:$0x3]
          %v2430 = vcombine.low %v2424, %v2425
          %v2432 = vunpack.c.l.s4 1966171168
          %v2433 = vunpack.c.0.s8 %v2432
          %v2434 = vlaneseq
          %v2435 = vshrl.u32 %v2434, 7
          %v2436 = vsub.s32 %v2433, %v2435
          %v2437 = vrot.slane %v2430, %v2436
          %v2439 = vunpack.c.l.s4 1966171168
          %v2440 = vunpack.c.0.s8 %v2439
          %v2441 = vlaneseq
          %v2442 = vshrl.u32 %v2441, 7
          %v2443 = vsub.s32 %v2440, %v2442
          %v2444 = vrot.slane %v2437, %v2443
          %v2446 = vmul.f32 %v2427, %v2444
          %v2447 = vadd.f32 %v2419, %v2446
          %2448 = vrot.lane.b32.xlu0 %v1737, 126
          %v2449 = vpop.permute.xlu0 %2448
          %2450 = vrot.lane.b32.xlu0 %v1741, 126
          %v2451 = vpop.permute.xlu0 %2450
          %v2452 = vsel %vm1070, %v2449, %v2451
          %v2453 = vsel %vm1070, %v2451, %v2449
          %s2454 = scalar_lea.vmem [#allocation4], 150
          %v2455 = vld [vmem:[%s2454] sm:$0x3]
          %v2458 = vcombine.low %v2452, %v2453
          %v2460 = vunpack.c.l.s4 1966171168
          %v2461 = vunpack.c.0.s8 %v2460
          %v2462 = vlaneseq
          %v2463 = vshrl.u32 %v2462, 7
          %v2464 = vsub.s32 %v2461, %v2463
          %v2465 = vrot.slane %v2458, %v2464
          %v2467 = vunpack.c.l.s4 1966171168
          %v2468 = vunpack.c.0.s8 %v2467
          %v2469 = vlaneseq
          %v2470 = vshrl.u32 %v2469, 7
          %v2471 = vsub.s32 %v2468, %v2470
          %v2472 = vrot.slane %v2465, %v2471
          %v2474 = vmul.f32 %v2455, %v2472
          %v2475 = vadd.f32 %v2447, %v2474
          %2476 = vrot.lane.b32.xlu0 %v1737, 125
          %v2477 = vpop.permute.xlu0 %2476
          %2478 = vrot.lane.b32.xlu0 %v1741, 125
          %v2479 = vpop.permute.xlu0 %2478
          %v2480 = vsel %vm1099, %v2477, %v2479
          %v2481 = vsel %vm1099, %v2479, %v2477
          %s2482 = scalar_lea.vmem [#allocation4], 152
          %v2483 = vld [vmem:[%s2482] sm:$0x3]
          %v2486 = vcombine.low %v2480, %v2481
          %v2488 = vunpack.c.l.s4 1966171168
          %v2489 = vunpack.c.0.s8 %v2488
          %v2490 = vlaneseq
          %v2491 = vshrl.u32 %v2490, 7
          %v2492 = vsub.s32 %v2489, %v2491
          %v2493 = vrot.slane %v2486, %v2492
          %v2495 = vunpack.c.l.s4 1966171168
          %v2496 = vunpack.c.0.s8 %v2495
          %v2497 = vlaneseq
          %v2498 = vshrl.u32 %v2497, 7
          %v2499 = vsub.s32 %v2496, %v2498
          %v2500 = vrot.slane %v2493, %v2499
          %v2502 = vmul.f32 %v2483, %v2500
          %v2503 = vadd.f32 %v2475, %v2502
          %2504 = vrot.lane.b32.xlu0 %v1737, 115
          %v2505 = vpop.permute.xlu0 %2504
          %2506 = vrot.lane.b32.xlu0 %v1741, 115
          %v2507 = vpop.permute.xlu0 %2506
          %v2508 = vsel %vm1128, %v2505, %v2507
          %v2509 = vsel %vm1128, %v2507, %v2505
          %s2510 = scalar_lea.vmem [#allocation4], 154
          %v2511 = vld [vmem:[%s2510] sm:$0x3]
          %v2514 = vcombine.low %v2508, %v2509
          %v2516 = vunpack.c.l.s4 1966171168
          %v2517 = vunpack.c.0.s8 %v2516
          %v2518 = vlaneseq
          %v2519 = vshrl.u32 %v2518, 7
          %v2520 = vsub.s32 %v2517, %v2519
          %v2521 = vrot.slane %v2514, %v2520
          %v2523 = vunpack.c.l.s4 1966171168
          %v2524 = vunpack.c.0.s8 %v2523
          %v2525 = vlaneseq
          %v2526 = vshrl.u32 %v2525, 7
          %v2527 = vsub.s32 %v2524, %v2526
          %v2528 = vrot.slane %v2521, %v2527
          %v2530 = vmul.f32 %v2511, %v2528
          %v2531 = vadd.f32 %v2503, %v2530
          %2532 = vrot.lane.b32.xlu0 %v1737, 114
          %v2533 = vpop.permute.xlu0 %2532
          %2534 = vrot.lane.b32.xlu0 %v1741, 114
          %v2535 = vpop.permute.xlu0 %2534
          %v2536 = vsel %vm1157, %v2533, %v2535
          %v2537 = vsel %vm1157, %v2535, %v2533
          %s2538 = scalar_lea.vmem [#allocation4], 156
          %v2539 = vld [vmem:[%s2538] sm:$0x3]
          %v2542 = vcombine.low %v2536, %v2537
          %v2544 = vunpack.c.l.s4 1966171168
          %v2545 = vunpack.c.0.s8 %v2544
          %v2546 = vlaneseq
          %v2547 = vshrl.u32 %v2546, 7
          %v2548 = vsub.s32 %v2545, %v2547
          %v2549 = vrot.slane %v2542, %v2548
          %v2551 = vunpack.c.l.s4 1966171168
          %v2552 = vunpack.c.0.s8 %v2551
          %v2553 = vlaneseq
          %v2554 = vshrl.u32 %v2553, 7
          %v2555 = vsub.s32 %v2552, %v2554
          %v2556 = vrot.slane %v2549, %v2555
          %v2558 = vmul.f32 %v2539, %v2556
          %v2559 = vadd.f32 %v2531, %v2558
          %2560 = vrot.lane.b32.xlu0 %v1737, 113
          %v2561 = vpop.permute.xlu0 %2560
          %2562 = vrot.lane.b32.xlu0 %v1741, 113
          %v2563 = vpop.permute.xlu0 %2562
          %v2564 = vsel %vm1186, %v2561, %v2563
          %v2565 = vsel %vm1186, %v2563, %v2561
          %s2566 = scalar_lea.vmem [#allocation4], 158
          %v2567 = vld [vmem:[%s2566] sm:$0x3]
          %v2570 = vcombine.low %v2564, %v2565
          %v2572 = vunpack.c.l.s4 1966171168
          %v2573 = vunpack.c.0.s8 %v2572
          %v2574 = vlaneseq
          %v2575 = vshrl.u32 %v2574, 7
          %v2576 = vsub.s32 %v2573, %v2575
          %v2577 = vrot.slane %v2570, %v2576
          %v2579 = vunpack.c.l.s4 1966171168
          %v2580 = vunpack.c.0.s8 %v2579
          %v2581 = vlaneseq
          %v2582 = vshrl.u32 %v2581, 7
          %v2583 = vsub.s32 %v2580, %v2582
          %v2584 = vrot.slane %v2577, %v2583
          %v2586 = vmul.f32 %v2567, %v2584
          %v2587 = vadd.f32 %v2559, %v2586
          %2588 = vrot.lane.b32.xlu0 %v1737, 112
          %v2589 = vpop.permute.xlu0 %2588
          %2590 = vrot.lane.b32.xlu0 %v1741, 112
          %v2591 = vpop.permute.xlu0 %2590
          %v2592 = vsel %vm1215, %v2589, %v2591
          %v2593 = vsel %vm1215, %v2591, %v2589
          %s2594 = scalar_lea.vmem [#allocation4], 160
          %v2595 = vld [vmem:[%s2594] sm:$0x3]
          %v2598 = vcombine.low %v2592, %v2593
          %v2600 = vunpack.c.l.s4 1966171168
          %v2601 = vunpack.c.0.s8 %v2600
          %v2602 = vlaneseq
          %v2603 = vshrl.u32 %v2602, 7
          %v2604 = vsub.s32 %v2601, %v2603
          %v2605 = vrot.slane %v2598, %v2604
          %v2607 = vunpack.c.l.s4 1966171168
          %v2608 = vunpack.c.0.s8 %v2607
          %v2609 = vlaneseq
          %v2610 = vshrl.u32 %v2609, 7
          %v2611 = vsub.s32 %v2608, %v2610
          %v2612 = vrot.slane %v2605, %v2611
          %v2614 = vmul.f32 %v2595, %v2612
          %v2615 = vadd.f32 %v2587, %v2614
          %2616 = vrot.lane.b32.xlu0 %v1737, 111
          %v2617 = vpop.permute.xlu0 %2616
          %2618 = vrot.lane.b32.xlu0 %v1741, 111
          %v2619 = vpop.permute.xlu0 %2618
          %v2620 = vsel %vm1244, %v2617, %v2619
          %v2621 = vsel %vm1244, %v2619, %v2617
          %s2622 = scalar_lea.vmem [#allocation4], 162
          %v2623 = vld [vmem:[%s2622] sm:$0x3]
          %v2626 = vcombine.low %v2620, %v2621
          %v2628 = vunpack.c.l.s4 1966171168
          %v2629 = vunpack.c.0.s8 %v2628
          %v2630 = vlaneseq
          %v2631 = vshrl.u32 %v2630, 7
          %v2632 = vsub.s32 %v2629, %v2631
          %v2633 = vrot.slane %v2626, %v2632
          %v2635 = vunpack.c.l.s4 1966171168
          %v2636 = vunpack.c.0.s8 %v2635
          %v2637 = vlaneseq
          %v2638 = vshrl.u32 %v2637, 7
          %v2639 = vsub.s32 %v2636, %v2638
          %v2640 = vrot.slane %v2633, %v2639
          %v2642 = vmul.f32 %v2623, %v2640
          %v2643 = vadd.f32 %v2615, %v2642
          %2644 = vrot.lane.b32.xlu0 %v1737, 110
          %v2645 = vpop.permute.xlu0 %2644
          %2646 = vrot.lane.b32.xlu0 %v1741, 110
          %v2647 = vpop.permute.xlu0 %2646
          %v2648 = vsel %vm1273, %v2645, %v2647
          %v2649 = vsel %vm1273, %v2647, %v2645
          %s2650 = scalar_lea.vmem [#allocation4], 164
          %v2651 = vld [vmem:[%s2650] sm:$0x3]
          %v2654 = vcombine.low %v2648, %v2649
          %v2656 = vunpack.c.l.s4 1966171168
          %v2657 = vunpack.c.0.s8 %v2656
          %v2658 = vlaneseq
          %v2659 = vshrl.u32 %v2658, 7
          %v2660 = vsub.s32 %v2657, %v2659
          %v2661 = vrot.slane %v2654, %v2660
          %v2663 = vunpack.c.l.s4 1966171168
          %v2664 = vunpack.c.0.s8 %v2663
          %v2665 = vlaneseq
          %v2666 = vshrl.u32 %v2665, 7
          %v2667 = vsub.s32 %v2664, %v2666
          %v2668 = vrot.slane %v2661, %v2667
          %v2670 = vmul.f32 %v2651, %v2668
          %v2671 = vadd.f32 %v2643, %v2670
          %2672 = vrot.lane.b32.xlu0 %v1737, 109
          %v2673 = vpop.permute.xlu0 %2672
          %2674 = vrot.lane.b32.xlu0 %v1741, 109
          %v2675 = vpop.permute.xlu0 %2674
          %v2676 = vsel %vm1302, %v2673, %v2675
          %v2677 = vsel %vm1302, %v2675, %v2673
          %s2678 = scalar_lea.vmem [#allocation4], 166
          %v2679 = vld [vmem:[%s2678] sm:$0x3]
          %v2682 = vcombine.low %v2676, %v2677
          %v2684 = vunpack.c.l.s4 1966171168
          %v2685 = vunpack.c.0.s8 %v2684
          %v2686 = vlaneseq
          %v2687 = vshrl.u32 %v2686, 7
          %v2688 = vsub.s32 %v2685, %v2687
          %v2689 = vrot.slane %v2682, %v2688
          %v2691 = vunpack.c.l.s4 1966171168
          %v2692 = vunpack.c.0.s8 %v2691
          %v2693 = vlaneseq
          %v2694 = vshrl.u32 %v2693, 7
          %v2695 = vsub.s32 %v2692, %v2694
          %v2696 = vrot.slane %v2689, %v2695
          %v2698 = vmul.f32 %v2679, %v2696
          %v2699 = vadd.f32 %v2671, %v2698
          %2700 = vrot.lane.b32.xlu0 %v1737, 99
          %v2701 = vpop.permute.xlu0 %2700
          %2702 = vrot.lane.b32.xlu0 %v1741, 99
          %v2703 = vpop.permute.xlu0 %2702
          %v2704 = vsel %vm1331, %v2701, %v2703
          %v2705 = vsel %vm1331, %v2703, %v2701
          %s2706 = scalar_lea.vmem [#allocation4], 168
          %v2707 = vld [vmem:[%s2706] sm:$0x3]
          %v2710 = vcombine.low %v2704, %v2705
          %v2712 = vunpack.c.l.s4 1966171168
          %v2713 = vunpack.c.0.s8 %v2712
          %v2714 = vlaneseq
          %v2715 = vshrl.u32 %v2714, 7
          %v2716 = vsub.s32 %v2713, %v2715
          %v2717 = vrot.slane %v2710, %v2716
          %v2719 = vunpack.c.l.s4 1966171168
          %v2720 = vunpack.c.0.s8 %v2719
          %v2721 = vlaneseq
          %v2722 = vshrl.u32 %v2721, 7
          %v2723 = vsub.s32 %v2720, %v2722
          %v2724 = vrot.slane %v2717, %v2723
          %v2726 = vmul.f32 %v2707, %v2724
          %v2727 = vadd.f32 %v2699, %v2726
          %2728 = vrot.lane.b32.xlu0 %v1737, 98
          %v2729 = vpop.permute.xlu0 %2728
          %2730 = vrot.lane.b32.xlu0 %v1741, 98
          %v2731 = vpop.permute.xlu0 %2730
          %v2732 = vsel %vm1360, %v2729, %v2731
          %v2733 = vsel %vm1360, %v2731, %v2729
          %s2734 = scalar_lea.vmem [#allocation4], 170
          %v2735 = vld [vmem:[%s2734] sm:$0x3]
          %v2738 = vcombine.low %v2732, %v2733
          %v2740 = vunpack.c.l.s4 1966171168
          %v2741 = vunpack.c.0.s8 %v2740
          %v2742 = vlaneseq
          %v2743 = vshrl.u32 %v2742, 7
          %v2744 = vsub.s32 %v2741, %v2743
          %v2745 = vrot.slane %v2738, %v2744
          %v2747 = vunpack.c.l.s4 1966171168
          %v2748 = vunpack.c.0.s8 %v2747
          %v2749 = vlaneseq
          %v2750 = vshrl.u32 %v2749, 7
          %v2751 = vsub.s32 %v2748, %v2750
          %v2752 = vrot.slane %v2745, %v2751
          %v2754 = vmul.f32 %v2735, %v2752
          %v2755 = vadd.f32 %v2727, %v2754
          %2756 = vrot.lane.b32.xlu0 %v1737, 97
          %v2757 = vpop.permute.xlu0 %2756
          %2758 = vrot.lane.b32.xlu0 %v1741, 97
          %v2759 = vpop.permute.xlu0 %2758
          %v2760 = vsel %vm1389, %v2757, %v2759
          %v2761 = vsel %vm1389, %v2759, %v2757
          %s2762 = scalar_lea.vmem [#allocation4], 172
          %v2763 = vld [vmem:[%s2762] sm:$0x3]
          %v2766 = vcombine.low %v2760, %v2761
          %v2768 = vunpack.c.l.s4 1966171168
          %v2769 = vunpack.c.0.s8 %v2768
          %v2770 = vlaneseq
          %v2771 = vshrl.u32 %v2770, 7
          %v2772 = vsub.s32 %v2769, %v2771
          %v2773 = vrot.slane %v2766, %v2772
          %v2775 = vunpack.c.l.s4 1966171168
          %v2776 = vunpack.c.0.s8 %v2775
          %v2777 = vlaneseq
          %v2778 = vshrl.u32 %v2777, 7
          %v2779 = vsub.s32 %v2776, %v2778
          %v2780 = vrot.slane %v2773, %v2779
          %v2782 = vmul.f32 %v2763, %v2780
          %v2783 = vadd.f32 %v2755, %v2782
          %2784 = vrot.lane.b32.xlu0 %v1737, 96
          %v2785 = vpop.permute.xlu0 %2784
          %2786 = vrot.lane.b32.xlu0 %v1741, 96
          %v2787 = vpop.permute.xlu0 %2786
          %v2788 = vsel %vm1418, %v2785, %v2787
          %v2789 = vsel %vm1418, %v2787, %v2785
          %s2790 = scalar_lea.vmem [#allocation4], 174
          %v2791 = vld [vmem:[%s2790] sm:$0x3]
          %v2794 = vcombine.low %v2788, %v2789
          %v2796 = vunpack.c.l.s4 1966171168
          %v2797 = vunpack.c.0.s8 %v2796
          %v2798 = vlaneseq
          %v2799 = vshrl.u32 %v2798, 7
          %v2800 = vsub.s32 %v2797, %v2799
          %v2801 = vrot.slane %v2794, %v2800
          %v2803 = vunpack.c.l.s4 1966171168
          %v2804 = vunpack.c.0.s8 %v2803
          %v2805 = vlaneseq
          %v2806 = vshrl.u32 %v2805, 7
          %v2807 = vsub.s32 %v2804, %v2806
          %v2808 = vrot.slane %v2801, %v2807
          %v2810 = vmul.f32 %v2791, %v2808
          %v2811 = vadd.f32 %v2783, %v2810
          %2812 = vrot.lane.b32.xlu0 %v1737, 95
          %v2813 = vpop.permute.xlu0 %2812
          %2814 = vrot.lane.b32.xlu0 %v1741, 95
          %v2815 = vpop.permute.xlu0 %2814
          %v2816 = vsel %vm1447, %v2813, %v2815
          %v2817 = vsel %vm1447, %v2815, %v2813
          %s2818 = scalar_lea.vmem [#allocation4], 176
          %v2819 = vld [vmem:[%s2818] sm:$0x3]
          %v2822 = vcombine.low %v2816, %v2817
          %v2824 = vunpack.c.l.s4 1966171168
          %v2825 = vunpack.c.0.s8 %v2824
          %v2826 = vlaneseq
          %v2827 = vshrl.u32 %v2826, 7
          %v2828 = vsub.s32 %v2825, %v2827
          %v2829 = vrot.slane %v2822, %v2828
          %v2831 = vunpack.c.l.s4 1966171168
          %v2832 = vunpack.c.0.s8 %v2831
          %v2833 = vlaneseq
          %v2834 = vshrl.u32 %v2833, 7
          %v2835 = vsub.s32 %v2832, %v2834
          %v2836 = vrot.slane %v2829, %v2835
          %v2838 = vmul.f32 %v2819, %v2836
          %v2839 = vadd.f32 %v2811, %v2838
          %2840 = vrot.lane.b32.xlu0 %v1737, 94
          %v2841 = vpop.permute.xlu0 %2840
          %2842 = vrot.lane.b32.xlu0 %v1741, 94
          %v2843 = vpop.permute.xlu0 %2842
          %v2844 = vsel %vm1476, %v2841, %v2843
          %v2845 = vsel %vm1476, %v2843, %v2841
          %s2846 = scalar_lea.vmem [#allocation4], 178
          %v2847 = vld [vmem:[%s2846] sm:$0x3]
          %v2850 = vcombine.low %v2844, %v2845
          %v2852 = vunpack.c.l.s4 1966171168
          %v2853 = vunpack.c.0.s8 %v2852
          %v2854 = vlaneseq
          %v2855 = vshrl.u32 %v2854, 7
          %v2856 = vsub.s32 %v2853, %v2855
          %v2857 = vrot.slane %v2850, %v2856
          %v2859 = vunpack.c.l.s4 1966171168
          %v2860 = vunpack.c.0.s8 %v2859
          %v2861 = vlaneseq
          %v2862 = vshrl.u32 %v2861, 7
          %v2863 = vsub.s32 %v2860, %v2862
          %v2864 = vrot.slane %v2857, %v2863
          %v2866 = vmul.f32 %v2847, %v2864
          %v2867 = vadd.f32 %v2839, %v2866
          %2868 = vrot.lane.b32.xlu0 %v1737, 93
          %v2869 = vpop.permute.xlu0 %2868
          %2870 = vrot.lane.b32.xlu0 %v1741, 93
          %v2871 = vpop.permute.xlu0 %2870
          %v2872 = vsel %vm1505, %v2869, %v2871
          %v2873 = vsel %vm1505, %v2871, %v2869
          %s2874 = scalar_lea.vmem [#allocation4], 180
          %v2875 = vld [vmem:[%s2874] sm:$0x3]
          %v2878 = vcombine.low %v2872, %v2873
          %v2880 = vunpack.c.l.s4 1966171168
          %v2881 = vunpack.c.0.s8 %v2880
          %v2882 = vlaneseq
          %v2883 = vshrl.u32 %v2882, 7
          %v2884 = vsub.s32 %v2881, %v2883
          %v2885 = vrot.slane %v2878, %v2884
          %v2887 = vunpack.c.l.s4 1966171168
          %v2888 = vunpack.c.0.s8 %v2887
          %v2889 = vlaneseq
          %v2890 = vshrl.u32 %v2889, 7
          %v2891 = vsub.s32 %v2888, %v2890
          %v2892 = vrot.slane %v2885, %v2891
          %v2894 = vmul.f32 %v2875, %v2892
          %v2895 = vadd.f32 %v2867, %v2894
          %2896 = vrot.lane.b32.xlu0 %v1737, 83
          %v2897 = vpop.permute.xlu0 %2896
          %2898 = vrot.lane.b32.xlu0 %v1741, 83
          %v2899 = vpop.permute.xlu0 %2898
          %v2900 = vsel %vm1534, %v2897, %v2899
          %v2901 = vsel %vm1534, %v2899, %v2897
          %s2902 = scalar_lea.vmem [#allocation4], 182
          %v2903 = vld [vmem:[%s2902] sm:$0x3]
          %v2906 = vcombine.low %v2900, %v2901
          %v2908 = vunpack.c.l.s4 1966171168
          %v2909 = vunpack.c.0.s8 %v2908
          %v2910 = vlaneseq
          %v2911 = vshrl.u32 %v2910, 7
          %v2912 = vsub.s32 %v2909, %v2911
          %v2913 = vrot.slane %v2906, %v2912
          %v2915 = vunpack.c.l.s4 1966171168
          %v2916 = vunpack.c.0.s8 %v2915
          %v2917 = vlaneseq
          %v2918 = vshrl.u32 %v2917, 7
          %v2919 = vsub.s32 %v2916, %v2918
          %v2920 = vrot.slane %v2913, %v2919
          %v2922 = vmul.f32 %v2903, %v2920
          %v2923 = vadd.f32 %v2895, %v2922
          %2924 = vrot.lane.b32.xlu0 %v1737, 82
          %v2925 = vpop.permute.xlu0 %2924
          %2926 = vrot.lane.b32.xlu0 %v1741, 82
          %v2927 = vpop.permute.xlu0 %2926
          %v2928 = vsel %vm1563, %v2925, %v2927
          %v2929 = vsel %vm1563, %v2927, %v2925
          %s2930 = scalar_lea.vmem [#allocation4], 184
          %v2931 = vld [vmem:[%s2930] sm:$0x3]
          %v2934 = vcombine.low %v2928, %v2929
          %v2936 = vunpack.c.l.s4 1966171168
          %v2937 = vunpack.c.0.s8 %v2936
          %v2938 = vlaneseq
          %v2939 = vshrl.u32 %v2938, 7
          %v2940 = vsub.s32 %v2937, %v2939
          %v2941 = vrot.slane %v2934, %v2940
          %v2943 = vunpack.c.l.s4 1966171168
          %v2944 = vunpack.c.0.s8 %v2943
          %v2945 = vlaneseq
          %v2946 = vshrl.u32 %v2945, 7
          %v2947 = vsub.s32 %v2944, %v2946
          %v2948 = vrot.slane %v2941, %v2947
          %v2950 = vmul.f32 %v2931, %v2948
          %v2951 = vadd.f32 %v2923, %v2950
          %2952 = vrot.lane.b32.xlu0 %v1737, 81
          %v2953 = vpop.permute.xlu0 %2952
          %2954 = vrot.lane.b32.xlu0 %v1741, 81
          %v2955 = vpop.permute.xlu0 %2954
          %v2956 = vsel %vm1592, %v2953, %v2955
          %v2957 = vsel %vm1592, %v2955, %v2953
          %s2958 = scalar_lea.vmem [#allocation4], 186
          %v2959 = vld [vmem:[%s2958] sm:$0x3]
          %v2962 = vcombine.low %v2956, %v2957
          %v2964 = vunpack.c.l.s4 1966171168
          %v2965 = vunpack.c.0.s8 %v2964
          %v2966 = vlaneseq
          %v2967 = vshrl.u32 %v2966, 7
          %v2968 = vsub.s32 %v2965, %v2967
          %v2969 = vrot.slane %v2962, %v2968
          %v2971 = vunpack.c.l.s4 1966171168
          %v2972 = vunpack.c.0.s8 %v2971
          %v2973 = vlaneseq
          %v2974 = vshrl.u32 %v2973, 7
          %v2975 = vsub.s32 %v2972, %v2974
          %v2976 = vrot.slane %v2969, %v2975
          %v2978 = vmul.f32 %v2959, %v2976
          %v2979 = vadd.f32 %v2951, %v2978
          %2980 = vrot.lane.b32.xlu0 %v1737, 80
          %v2981 = vpop.permute.xlu0 %2980
          %2982 = vrot.lane.b32.xlu0 %v1741, 80
          %v2983 = vpop.permute.xlu0 %2982
          %v2984 = vsel %vm1621, %v2981, %v2983
          %v2985 = vsel %vm1621, %v2983, %v2981
          %s2986 = scalar_lea.vmem [#allocation4], 188
          %v2987 = vld [vmem:[%s2986] sm:$0x3]
          %v2990 = vcombine.low %v2984, %v2985
          %v2992 = vunpack.c.l.s4 1966171168
          %v2993 = vunpack.c.0.s8 %v2992
          %v2994 = vlaneseq
          %v2995 = vshrl.u32 %v2994, 7
          %v2996 = vsub.s32 %v2993, %v2995
          %v2997 = vrot.slane %v2990, %v2996
          %v2999 = vunpack.c.l.s4 1966171168
          %v3000 = vunpack.c.0.s8 %v2999
          %v3001 = vlaneseq
          %v3002 = vshrl.u32 %v3001, 7
          %v3003 = vsub.s32 %v3000, %v3002
          %v3004 = vrot.slane %v2997, %v3003
          %v3006 = vmul.f32 %v2987, %v3004
          %v3007 = vadd.f32 %v2979, %v3006
          %3008 = vrot.lane.b32.xlu0 %v1737, 79
          %v3009 = vpop.permute.xlu0 %3008
          %3010 = vrot.lane.b32.xlu0 %v1741, 79
          %v3011 = vpop.permute.xlu0 %3010
          %v3012 = vsel %vm1650, %v3009, %v3011
          %v3013 = vsel %vm1650, %v3011, %v3009
          %s3014 = scalar_lea.vmem [#allocation4], 190
          %v3015 = vld [vmem:[%s3014] sm:$0x3]
          %v3018 = vcombine.low %v3012, %v3013
          %v3020 = vunpack.c.l.s4 1966171168
          %v3021 = vunpack.c.0.s8 %v3020
          %v3022 = vlaneseq
          %v3023 = vshrl.u32 %v3022, 7
          %v3024 = vsub.s32 %v3021, %v3023
          %v3025 = vrot.slane %v3018, %v3024
          %v3027 = vunpack.c.l.s4 1966171168
          %v3028 = vunpack.c.0.s8 %v3027
          %v3029 = vlaneseq
          %v3030 = vshrl.u32 %v3029, 7
          %v3031 = vsub.s32 %v3028, %v3030
          %v3032 = vrot.slane %v3025, %v3031
          %v3034 = vmul.f32 %v3015, %v3032
          %v3035 = vadd.f32 %v3007, %v3034
          %3036 = vrot.lane.b32.xlu0 %v1737, 78
          %v3037 = vpop.permute.xlu0 %3036
          %3038 = vrot.lane.b32.xlu0 %v1741, 78
          %v3039 = vpop.permute.xlu0 %3038
          %v3040 = vsel %vm1679, %v3037, %v3039
          %v3041 = vsel %vm1679, %v3039, %v3037
          %s3042 = scalar_lea.vmem [#allocation4], 192
          %v3043 = vld [vmem:[%s3042] sm:$0x3]
          %v3046 = vcombine.low %v3040, %v3041
          %v3048 = vunpack.c.l.s4 1966171168
          %v3049 = vunpack.c.0.s8 %v3048
          %v3050 = vlaneseq
          %v3051 = vshrl.u32 %v3050, 7
          %v3052 = vsub.s32 %v3049, %v3051
          %v3053 = vrot.slane %v3046, %v3052
          %v3055 = vunpack.c.l.s4 1966171168
          %v3056 = vunpack.c.0.s8 %v3055
          %v3057 = vlaneseq
          %v3058 = vshrl.u32 %v3057, 7
          %v3059 = vsub.s32 %v3056, %v3058
          %v3060 = vrot.slane %v3053, %v3059
          %v3062 = vmul.f32 %v3043, %v3060
          %v3063 = vadd.f32 %v3035, %v3062
          %3064 = vrot.lane.b32.xlu0 %v1737, 77
          %v3065 = vpop.permute.xlu0 %3064
          %3066 = vrot.lane.b32.xlu0 %v1741, 77
          %v3067 = vpop.permute.xlu0 %3066
          %v3068 = vsel %vm1708, %v3065, %v3067
          %v3069 = vsel %vm1708, %v3067, %v3065
          %s3070 = scalar_lea.vmem [#allocation4], 194
          %v3071 = vld [vmem:[%s3070] sm:$0x3]
          %v3074 = vcombine.low %v3068, %v3069
          %v3076 = vunpack.c.l.s4 1966171168
          %v3077 = vunpack.c.0.s8 %v3076
          %v3078 = vlaneseq
          %v3079 = vshrl.u32 %v3078, 7
          %v3080 = vsub.s32 %v3077, %v3079
          %v3081 = vrot.slane %v3074, %v3080
          %v3083 = vunpack.c.l.s4 1966171168
          %v3084 = vunpack.c.0.s8 %v3083
          %v3085 = vlaneseq
          %v3086 = vshrl.u32 %v3085, 7
          %v3087 = vsub.s32 %v3084, %v3086
          %v3088 = vrot.slane %v3081, %v3087
          %v3090 = vmul.f32 %v3071, %v3088
          %v3091 = vadd.f32 %v3063, %v3090
          %v3092 = vadd.f32 %v1732, %v3091
          %v3093 = vxor.u32 %v3092, 2147483648
          %v3094 = vmul.f32 %v3093, 1.442695
          %v3095 = vpow.pop %v3094
          %v3096 = vadd.f32 %v3095, 1.0
          %v3097 = vrcp.pop %v3096
          %v3098 = vmul.f32 1.0, %v3097
          %v3099 = vlaneseq
          %vm3100 = vcmp.ge.s32.totalorder %v3099, 0
          %vm3101 = vcmp.lt.s32.totalorder %v3099, 256
          %vm3102 = vmand %vm3100, %vm3101
          %3103 = vst.msk [vmem:[%s190] sm:$0x3] %vm3102, %v3098
        $region48: #{tpu_custom_call.1} parent=27 // pred_fallthru
          _
        %s3104 = sand.u32 %s89, 1
        %s3105 = scalar_lea.sflag [#allocation6], %s3104
        %s3106 = sand.u32 %s89, 1
        %s3107 = smul.addr %s3106, 2
        %s3108 = scalar_lea.vmem [#allocation9], %s3107
        // Predicated region
        $region49: #{tpu_custom_call.1} parent=27 // pred_check
          %p3109 = pneg %p99
        $region50: #{tpu_custom_call.1} parent=27 // pred_check_branch
          %3111 = sbr.rel (%p3109) target = $region52
        $region51: #{tpu_custom_call.1} parent=27 // pred_region
          %s3113 = ssub.s32 32, 32
          %3114 = vsyncadd %s3105, %s3113
          %s3115 = smul.addr %s24, 2
          %s3116 = smul.addr %s3115, 16
          %s3117 = scalar_lea.hbm %s2, %s3116
          %s3119 = sshll.u32 %s3108, 4
          %s3120 = int_to_ptr.vmem [resolvable:$true] %s3119
          %3122 = dma.vmem_to_hbm [thread:$0]  %s3120, 32, %s3117, %s3105
        $region52: #{tpu_custom_call.1} parent=27 // pred_fallthru
          _
      $region28: #{tpu_custom_call.1} parent=5 // pred_fallthru
        _
      %p3123 = scmp.le.s32.totalorder 2, %s15
      // Predicated region
      $region53: #{tpu_custom_call.1} parent=5 // pred_check
        %p3124 = pneg %p3123
      $region54: #{tpu_custom_call.1} parent=5 // pred_check_branch
        %3126 = sbr.rel (%p3124) target = $region56
      $region55: #{tpu_custom_call.1} parent=5 // pred_region
        %s3127 = ssub.s32 %s15, 2
        // Predicated region
        $region57: #{tpu_custom_call.1} parent=55 // pred_check
          %p3128 = pneg %p105
        $region58: #{tpu_custom_call.1} parent=55 // pred_check_branch
          %3130 = sbr.rel (%p3128) target = $region60
        $region59: #{tpu_custom_call.1} parent=55 // pred_region
          %s3131 = sand.u32 %s90, 1
          %s3132 = scalar_lea.sflag [#allocation6], %s3131
          %s3133 = sand.u32 %s90, 1
          %s3134 = smul.addr %s3133, 2
          %s3135 = scalar_lea.vmem [#allocation9], %s3134
          %3136 = dma.done %s3132, 32
        $region60: #{tpu_custom_call.1} parent=55 // pred_fallthru
          _
      $region56: #{tpu_custom_call.1} parent=5 // pred_fallthru
        _
    $region6: #{tpu_custom_call.1} parent=1 // loop_footer
      %s19 = sadd.s32 1, %s15
    $region7: #{tpu_custom_call.1} parent=1 // loop_footer_branch
      %14 = sbr.rel target = $region3
    $region8: #{tpu_custom_call.1} parent=1 // loop_exit
      _
    %3137 = vsyncpa [#allocation5], 1
    %s3138 = scalar_lea.sflag [#allocation5], 1
    %3139 = vsyncpa %s3138, 1
    %3140 = vsyncpa [#allocation8], 1
    %s3141 = scalar_lea.sflag [#allocation8], 1
    %3142 = vsyncpa %s3141, 1
    %3143 = vsyncpa [#allocation6], 1
    %s3144 = scalar_lea.sflag [#allocation6], 1
    %3145 = vsyncpa %s3144, 1

</llo_original>
